<compile_context>
chip_gen: v5e
topology: v5e:2x2
jax: 0.10.0
libtpu: 0.0.40
codegen_flags: <defaults>
</compile_context>

<pallas_src>
import functools

import jax
import jax.numpy as jnp
from jax.experimental import pallas as pl
from jax.experimental.pallas import tpu as pltpu

LN_EPS = 1e-6      # norm_layer = partial(nn.LayerNorm, eps=1e-6)
LN_EPS_SG = 1e-5   # SpatialGate's default nn.LayerNorm eps
BN_EPS = 1e-5      # nn.BatchNorm2d default eps

# Rows of the packed per-channel parameter array (width C, zero padded where
# the underlying vector is shorter than C).
(_NORM_G, _NORM_B, _DW_B, _CI_B1, _CI_B2, _SI_B1, _SI_W2, _SI_B2,
 _PROJ_B, _N3_G, _N3_B, _FC1_B, _SGN_G, _SGN_B, _SGC_B, _FC2_B) = range(16)
_N_PROWS = 16


# ----------------------------- in-kernel math -----------------------------

def _gelu(x):
    # exact (erf) GELU, matching nn.GELU(approximate='none')
    return 0.5 * x * (1.0 + jax.lax.erf(x * 0.7071067811865476))


def _layernorm(x, g, b, eps):
    mu = jnp.mean(x, axis=-1, keepdims=True)
    xc = x - mu
    var = jnp.mean(xc * xc, axis=-1, keepdims=True)
    return xc * jax.lax.rsqrt(var + eps) * g + b


def _dwconv3x3_flat(x, w, b, not_left, not_right, H, W):
    """Depthwise 3x3 'same' conv (zero padding) on a flattened (H*W, C) image.

    The halo is handled entirely in-register: the flattened activation is
    zero-extended by an 8-aligned number of rows on each side (aligned sublane
    concat) so every (dy, dx) tap is a static shifted slice of the extended
    value; column wrap-around at the left/right image border is zeroed with
    the precomputed (H*W, 1) float masks.
    """
    HW, C = x.shape
    pad = ((W + 1 + 7) // 8) * 8                 # aligned halo rows (>= W+1)
    z = jnp.zeros((pad, C), x.dtype)
    xe = jnp.concatenate([z, x, z], axis=0)      # (HW + 2*pad, C)
    acc = None
    for dy in range(3):
        for dx in range(3):
            t = (dy - 1) * W + (dx - 1)
            tap = xe[pad + t:pad + t + HW, :] * w[dy, dx, :]
            if dx == 0:
                tap = tap * not_left             # column 0 has no left neighbor
            elif dx == 2:
                tap = tap * not_right            # column W-1 has no right one
            acc = tap if acc is None else acc + tap
    return acc + b


# -------------------------------- kernel -----------------------------------

def vss_block_kernel(x_ref, cmask_ref, pC_ref, dw_w_ref, ci_w1_ref, ci_w2_ref,
                     si_w1_ref, proj_w_ref, fc1_w_ref, sgc_w_ref, fc2_w_ref,
                     o_ref, *, H, W, C):
    f32 = jnp.float32
    HW = H * W
    Ch, C8, C16 = C // 2, C // 8, C // 16

    pv = pC_ref[...].astype(f32)                         # (16, C) packed vecs
    row = lambda r, width=C: pv[r:r + 1, :width]         # (1, width)

    not_left = cmask_ref[:, 0:1]                         # (HW, 1) f32 masks
    not_right = cmask_ref[:, 1:2]

    x = x_ref[0].astype(f32)                             # (HW, C)

    # ---- norm: LayerNorm(eps=1e-6)
    x_norm = _layernorm(x, row(_NORM_G), row(_NORM_B), LN_EPS)

    # TODO(synk): SS2D (self.op) source not provided -> identity passthrough.
    vss = x_norm

    # ---- dwconv branch: depthwise 3x3 (BatchNorm folded into weights) + GELU
    conv_x = _gelu(_dwconv3x3_flat(x_norm, dw_w_ref[...].astype(f32),
                                   row(_DW_B), not_left, not_right, H, W))

    # ---- channel_interaction: global avg pool -> 1x1 -> GELU -> 1x1
    avg = jnp.mean(conv_x, axis=0, keepdims=True)        # (1, C)
    hc = _gelu(jnp.dot(avg, ci_w1_ref[...],
                       preferred_element_type=f32) + row(_CI_B1, C8))
    cmap = jnp.dot(hc, ci_w2_ref[...],
                   preferred_element_type=f32) + row(_CI_B2)     # (1, C)

    # ---- spatial_interaction(vss): 1x1 -> GELU -> N=1 "conv" as lane reduce
    hs = _gelu(jnp.dot(vss, si_w1_ref[...],
                       preferred_element_type=f32) + row(_SI_B1, C16))
    s_logit = (jnp.sum(hs * row(_SI_W2, C16), axis=-1, keepdims=True)
               + pv[_SI_B2:_SI_B2 + 1, 0:1])                     # (HW, 1)

    # ---- sigmoid gating + proj + residual (+ x_norm, as in the reference)
    y = vss * jax.nn.sigmoid(cmap) + jax.nn.sigmoid(s_logit) * conv_x
    y = jnp.dot(y, proj_w_ref[...], preferred_element_type=f32) + row(_PROJ_B)
    y = y + x_norm
    nb = _layernorm(y, row(_N3_G), row(_N3_B), LN_EPS)           # norm3 output

    # ---- SGFN: fc1 + GELU + SpatialGate (LN + depthwise 3x3 gate) + fc2
    h = _gelu(jnp.dot(nb, fc1_w_ref[...],
                      preferred_element_type=f32) + row(_FC1_B))  # (HW, C)
    x1 = h[:, :Ch]
    x2 = _layernorm(h[:, Ch:], row(_SGN_G, Ch), row(_SGN_B, Ch), LN_EPS_SG)
    x2 = _dwconv3x3_flat(x2, sgc_w_ref[...].astype(f32), row(_SGC_B, Ch),
                         not_left, not_right, H, W)
    out = jnp.dot(x1 * x2, fc2_w_ref[...],
                  preferred_element_type=f32) + row(_FC2_B)
    out = out + nb                                               # + norm3 out

    o_ref[0] = out.astype(o_ref.dtype)


# ------------------------------- wrapper -----------------------------------

def vss_block_forward(x, p):
    """x: (B, H, W, C) float32 -> (B, H, W, C) float32."""
    B, H, W, C = x.shape
    HW = H * W
    Ch, C8, C16 = C // 2, C // 8, C // 16
    f32 = jnp.float32

    # ---- Fold the inference-mode BatchNorms into the preceding convs.
    dw_s = p["dwbn_g"] * jax.lax.rsqrt(p["dwbn_v"] + BN_EPS)          # (C,)
    dw_w = p["dw_w"] * dw_s
    dw_b = (p["dw_b"] - p["dwbn_m"]) * dw_s + p["dwbn_b"]

    ci_s = p["ci_bn_g"] * jax.lax.rsqrt(p["ci_bn_v"] + BN_EPS)        # (C8,)
    ci_w1 = p["ci_w1"] * ci_s
    ci_b1 = (p["ci_b1"] - p["ci_bn_m"]) * ci_s + p["ci_bn_b"]

    si_s = p["si_bn_g"] * jax.lax.rsqrt(p["si_bn_v"] + BN_EPS)        # (C16,)
    si_w1 = p["si_w1"] * si_s
    si_b1 = (p["si_b1"] - p["si_bn_m"]) * si_s + p["si_bn_b"]

    # ---- Pack all per-channel vectors into one (16, C) array (zero padded).
    def pad_c(v):
        return jnp.zeros((C,), f32).at[:v.shape[0]].set(v.astype(f32))

    rows = [None] * _N_PROWS
    rows[_NORM_G], rows[_NORM_B] = p["norm_g"], p["norm_b"]
    rows[_DW_B] = dw_b
    rows[_CI_B1], rows[_CI_B2] = pad_c(ci_b1), p["ci_b2"]
    rows[_SI_B1], rows[_SI_W2] = pad_c(si_b1), pad_c(p["si_w2"])
    rows[_SI_B2] = pad_c(p["si_b2"][None])
    rows[_PROJ_B] = p["proj_b"]
    rows[_N3_G], rows[_N3_B] = p["n3_g"], p["n3_b"]
    rows[_FC1_B] = p["fc1_b"]
    rows[_SGN_G], rows[_SGN_B] = pad_c(p["sgn_g"]), pad_c(p["sgn_b"])
    rows[_SGC_B] = pad_c(p["sgc_b"])
    rows[_FC2_B] = p["fc2_b"]
    pC = jnp.stack([r.astype(f32) for r in rows])                     # (16, C)

    # Column-boundary masks for the two depthwise 3x3 convs.
    col = jnp.arange(HW, dtype=jnp.int32) % W
    cmask = jnp.stack([(col >= 1), (col <= W - 2)], axis=1).astype(f32)

    x_flat = x.reshape(B, HW, C)

    rep2 = lambda shape: pl.BlockSpec(shape, lambda b: (0, 0))
    rep3 = lambda shape: pl.BlockSpec(shape, lambda b: (0, 0, 0))

    out = pl.pallas_call(
        functools.partial(vss_block_kernel, H=H, W=W, C=C),
        out_shape=jax.ShapeDtypeStruct((B, HW, C), x.dtype),
        grid=(B,),
        in_specs=[
            pl.BlockSpec((1, HW, C), lambda b: (b, 0, 0)),   # x
            rep2((HW, 2)),                                   # column masks
            rep2((_N_PROWS, C)),                             # packed vectors
            rep3((3, 3, C)),                                 # dw_w (BN folded)
            rep2((C, C8)),                                   # ci_w1 (BN folded)
            rep2((C8, C)),                                   # ci_w2
            rep2((C, C16)),                                  # si_w1 (BN folded)
            rep2((C, C)),                                    # proj_w
            rep2((C, C)),                                    # fc1_w
            rep3((3, 3, Ch)),                                # sgc_w
            rep2((Ch, C)),                                   # fc2_w
        ],
        out_specs=pl.BlockSpec((1, HW, C), lambda b: (b, 0, 0)),
        compiler_params=pltpu.CompilerParams(
            dimension_semantics=("parallel",)),
    )(x_flat, cmask, pC, dw_w, ci_w1, p["ci_w2"], si_w1,
      p["proj_w"], p["fc1_w"], p["sgc_w"], p["fc2_w"])

    return out.reshape(B, H, W, C)


# --------------------------- parameter init --------------------------------

def init_params(key, C):
    keys = iter(jax.random.split(key, 48))

    def nrm(shape, scale=0.02):
        return (scale * jax.random.normal(next(keys), shape)).astype(jnp.float32)

    def pos(shape):
        return (0.5 + jax.random.uniform(next(keys), shape)).astype(jnp.float32)

    ones = lambda s: jnp.ones(s, jnp.float32)
    Ch, C8, C16 = C // 2, C // 8, C // 16
    p = {}
    # norm (LayerNorm, eps 1e-6)
    p["norm_g"] = ones((C,)) + nrm((C,)); p["norm_b"] = nrm((C,))
    # dwconv: depthwise 3x3 + BatchNorm2d
    p["dw_w"] = nrm((3, 3, C), 0.1); p["dw_b"] = nrm((C,))
    p["dwbn_g"] = ones((C,)) + nrm((C,)); p["dwbn_b"] = nrm((C,))
    p["dwbn_m"] = nrm((C,)); p["dwbn_v"] = pos((C,))
    # channel_interaction: 1x1 (C->C/8) + BN + GELU + 1x1 (C/8->C)
    p["ci_w1"] = nrm((C, C8), 0.1); p["ci_b1"] = nrm((C8,))
    p["ci_bn_g"] = ones((C8,)) + nrm((C8,)); p["ci_bn_b"] = nrm((C8,))
    p["ci_bn_m"] = nrm((C8,)); p["ci_bn_v"] = pos((C8,))
    p["ci_w2"] = nrm((C8, C), 0.1); p["ci_b2"] = nrm((C,))
    # spatial_interaction: 1x1 (C->C/16) + BN + GELU + 1x1 (C/16->1)
    p["si_w1"] = nrm((C, C16), 0.1); p["si_b1"] = nrm((C16,))
    p["si_bn_g"] = ones((C16,)) + nrm((C16,)); p["si_bn_b"] = nrm((C16,))
    p["si_bn_m"] = nrm((C16,)); p["si_bn_v"] = pos((C16,))
    p["si_w2"] = nrm((C16,), 0.1); p["si_b2"] = nrm(())
    # proj Linear, norm3
    p["proj_w"] = nrm((C, C), 0.1); p["proj_b"] = nrm((C,))
    p["n3_g"] = ones((C,)) + nrm((C,)); p["n3_b"] = nrm((C,))
    # SGFN: fc1 (C->C), SpatialGate LN + dwconv (C/2), fc2 (C/2->C)
    p["fc1_w"] = nrm((C, C), 0.1); p["fc1_b"] = nrm((C,))
    p["sgn_g"] = ones((Ch,)) + nrm((Ch,)); p["sgn_b"] = nrm((Ch,))
    p["sgc_w"] = nrm((3, 3, Ch), 0.1); p["sgc_b"] = nrm((Ch,))
    p["fc2_w"] = nrm((Ch, C), 0.1); p["fc2_b"] = nrm((C,))
    return p


if __name__ == "__main__":
    B, H, W, C = 2, 8, 8, 32
    key = jax.random.PRNGKey(0)
    kx, kp = jax.random.split(key)
    x = jax.random.normal(kx, (B, H, W, C), jnp.float32)
    params = init_params(kp, C)

    out = jax.jit(vss_block_forward)(x, params)
    out = jax.block_until_ready(out)
    assert out.shape == (B, H, W, C) and bool(jnp.all(jnp.isfinite(out)))
    print("KERNEL_OK")
</pallas_src>

<mosaic_0001>
module attributes {stable_mosaic.version = 11 : i64} {
  func.func @vss_block_kernel(%arg0: i32, %arg1: memref<1x64x32xf32, #tpu.memory_space<vmem>>, %arg2: memref<64x2xf32, #tpu.memory_space<vmem>>, %arg3: memref<16x32xf32, #tpu.memory_space<vmem>>, %arg4: memref<3x3x32xf32, #tpu.memory_space<vmem>>, %arg5: memref<32x4xf32, #tpu.memory_space<vmem>>, %arg6: memref<4x32xf32, #tpu.memory_space<vmem>>, %arg7: memref<32x2xf32, #tpu.memory_space<vmem>>, %arg8: memref<32x32xf32, #tpu.memory_space<vmem>>, %arg9: memref<32x32xf32, #tpu.memory_space<vmem>>, %arg10: memref<3x3x16xf32, #tpu.memory_space<vmem>>, %arg11: memref<16x32xf32, #tpu.memory_space<vmem>>, %arg12: memref<1x64x32xf32, #tpu.memory_space<vmem>>) attributes {dimension_semantics = [#tpu.dimension_semantics<parallel>], iteration_bounds = array<i64: 2>, scalar_prefetch = 0 : i64, scratch_operands = 0 : i64, tpu.core_type = #tpu.core_type<tc>, window_params = [{transform_indices = @transform_0, window_bounds = array<i64: 1, 64, 32>}, {pipeline_mode = #tpu.pipeline_mode<synchronous>, transform_indices = @transform_1, window_bounds = array<i64: 64, 2>}, {pipeline_mode = #tpu.pipeline_mode<synchronous>, transform_indices = @transform_2, window_bounds = array<i64: 16, 32>}, {pipeline_mode = #tpu.pipeline_mode<synchronous>, transform_indices = @transform_3, window_bounds = array<i64: 3, 3, 32>}, {pipeline_mode = #tpu.pipeline_mode<synchronous>, transform_indices = @transform_4, window_bounds = array<i64: 32, 4>}, {pipeline_mode = #tpu.pipeline_mode<synchronous>, transform_indices = @transform_5, window_bounds = array<i64: 4, 32>}, {pipeline_mode = #tpu.pipeline_mode<synchronous>, transform_indices = @transform_6, window_bounds = array<i64: 32, 2>}, {pipeline_mode = #tpu.pipeline_mode<synchronous>, transform_indices = @transform_7, window_bounds = array<i64: 32, 32>}, {pipeline_mode = #tpu.pipeline_mode<synchronous>, transform_indices = @transform_8, window_bounds = array<i64: 32, 32>}, {pipeline_mode = #tpu.pipeline_mode<synchronous>, transform_indices = @transform_9, window_bounds = array<i64: 3, 3, 16>}, {pipeline_mode = #tpu.pipeline_mode<synchronous>, transform_indices = @transform_10, window_bounds = array<i64: 16, 32>}, {transform_indices = @transform_11, window_bounds = array<i64: 1, 64, 32>}]} {
    %c0 = arith.constant 0 : index
    %c0_0 = arith.constant 0 : index
    %0 = vector.load %arg3[%c0, %c0_0] : memref<16x32xf32, #tpu.memory_space<vmem>>, vector<16x32xf32>
    %c0_1 = arith.constant 0 : index
    %c0_2 = arith.constant 0 : index
    %1 = vector.load %arg2[%c0_1, %c0_2] : memref<64x2xf32, #tpu.memory_space<vmem>>, vector<64x1xf32>
    %c0_3 = arith.constant 0 : index
    %c1 = arith.constant 1 : index
    %2 = vector.load %arg2[%c0_3, %c1] : memref<64x2xf32, #tpu.memory_space<vmem>>, vector<64x1xf32>
    %c0_4 = arith.constant 0 : index
    %c0_5 = arith.constant 0 : index
    %c0_6 = arith.constant 0 : index
    %3 = vector.load %arg1[%c0_4, %c0_5, %c0_6] : memref<1x64x32xf32, #tpu.memory_space<vmem>>, vector<1x64x32xf32>
    %4 = vector.shape_cast %3 : vector<1x64x32xf32> to vector<64x32xf32>
    %5 = vector.extract_strided_slice %0 {offsets = [0, 0], sizes = [1, 32], strides = [1, 1]} : vector<16x32xf32> to vector<1x32xf32>
    %6 = vector.extract_strided_slice %0 {offsets = [1, 0], sizes = [1, 32], strides = [1, 1]} : vector<16x32xf32> to vector<1x32xf32>
    %cst = arith.constant dense<0.000000e+00> : vector<64xf32>
    %7 = vector.multi_reduction <add>, %4, %cst [1] : vector<64x32xf32> to vector<64xf32>
    %8 = vector.shape_cast %7 : vector<64xf32> to vector<64x1xf32>
    %cst_7 = arith.constant 3.200000e+01 : f32
    %9 = vector.broadcast %cst_7 : f32 to vector<64x1xf32>
    %10 = arith.divf %8, %9 : vector<64x1xf32>
    %11 = vector.broadcast %10 : vector<64x1xf32> to vector<64x32xf32>
    %12 = arith.subf %4, %11 : vector<64x32xf32>
    %13 = arith.mulf %12, %12 : vector<64x32xf32>
    %cst_8 = arith.constant dense<0.000000e+00> : vector<64xf32>
    %14 = vector.multi_reduction <add>, %13, %cst_8 [1] : vector<64x32xf32> to vector<64xf32>
    %15 = vector.shape_cast %14 : vector<64xf32> to vector<64x1xf32>
    %cst_9 = arith.constant 3.200000e+01 : f32
    %16 = vector.broadcast %cst_9 : f32 to vector<64x1xf32>
    %17 = arith.divf %15, %16 : vector<64x1xf32>
    %cst_10 = arith.constant 9.99999997E-7 : f32
    %18 = vector.broadcast %cst_10 : f32 to vector<64x1xf32>
    %19 = arith.addf %17, %18 : vector<64x1xf32>
    %20 = math.rsqrt %19 : vector<64x1xf32>
    %21 = vector.broadcast %20 : vector<64x1xf32> to vector<64x32xf32>
    %22 = arith.mulf %12, %21 : vector<64x32xf32>
    %23 = vector.broadcast %5 : vector<1x32xf32> to vector<64x32xf32>
    %24 = arith.mulf %22, %23 : vector<64x32xf32>
    %25 = vector.broadcast %6 : vector<1x32xf32> to vector<64x32xf32>
    %26 = arith.addf %24, %25 : vector<64x32xf32>
    %c0_11 = arith.constant 0 : index
    %c0_12 = arith.constant 0 : index
    %c0_13 = arith.constant 0 : index
    %27 = vector.load %arg4[%c0_11, %c0_12, %c0_13] : memref<3x3x32xf32, #tpu.memory_space<vmem>>, vector<3x3x32xf32>
    %28 = vector.extract_strided_slice %0 {offsets = [2, 0], sizes = [1, 32], strides = [1, 1]} : vector<16x32xf32> to vector<1x32xf32>
    %cst_14 = arith.constant 0.000000e+00 : f32
    %29 = vector.broadcast %cst_14 : f32 to vector<16x32xf32>
    %30 = tpu.concatenate %29, %26, %29 in 0 : vector<16x32xf32>, vector<64x32xf32>, vector<16x32xf32> -> vector<96x32xf32>
    %31 = vector.extract_strided_slice %30 {offsets = [7, 0], sizes = [64, 32], strides = [1, 1]} : vector<96x32xf32> to vector<64x32xf32>
    %32 = vector.extract_strided_slice %27 {offsets = [0, 0, 0], sizes = [1, 1, 32], strides = [1, 1, 1]} : vector<3x3x32xf32> to vector<1x1x32xf32>
    %33 = vector.shape_cast %32 : vector<1x1x32xf32> to vector<32xf32>
    %34 = vector.shape_cast %33 : vector<32xf32> to vector<1x32xf32>
    %35 = vector.broadcast %34 : vector<1x32xf32> to vector<64x32xf32>
    %36 = arith.mulf %31, %35 : vector<64x32xf32>
    %37 = vector.broadcast %1 : vector<64x1xf32> to vector<64x32xf32>
    %38 = arith.mulf %36, %37 : vector<64x32xf32>
    %39 = vector.extract_strided_slice %30 {offsets = [8, 0], sizes = [64, 32], strides = [1, 1]} : vector<96x32xf32> to vector<64x32xf32>
    %40 = vector.extract_strided_slice %27 {offsets = [0, 1, 0], sizes = [1, 1, 32], strides = [1, 1, 1]} : vector<3x3x32xf32> to vector<1x1x32xf32>
    %41 = vector.shape_cast %40 : vector<1x1x32xf32> to vector<32xf32>
    %42 = vector.shape_cast %41 : vector<32xf32> to vector<1x32xf32>
    %43 = vector.broadcast %42 : vector<1x32xf32> to vector<64x32xf32>
    %44 = arith.mulf %39, %43 : vector<64x32xf32>
    %45 = arith.addf %38, %44 : vector<64x32xf32>
    %46 = vector.extract_strided_slice %30 {offsets = [9, 0], sizes = [64, 32], strides = [1, 1]} : vector<96x32xf32> to vector<64x32xf32>
    %47 = vector.extract_strided_slice %27 {offsets = [0, 2, 0], sizes = [1, 1, 32], strides = [1, 1, 1]} : vector<3x3x32xf32> to vector<1x1x32xf32>
    %48 = vector.shape_cast %47 : vector<1x1x32xf32> to vector<32xf32>
    %49 = vector.shape_cast %48 : vector<32xf32> to vector<1x32xf32>
    %50 = vector.broadcast %49 : vector<1x32xf32> to vector<64x32xf32>
    %51 = arith.mulf %46, %50 : vector<64x32xf32>
    %52 = vector.broadcast %2 : vector<64x1xf32> to vector<64x32xf32>
    %53 = arith.mulf %51, %52 : vector<64x32xf32>
    %54 = arith.addf %45, %53 : vector<64x32xf32>
    %55 = vector.extract_strided_slice %30 {offsets = [15, 0], sizes = [64, 32], strides = [1, 1]} : vector<96x32xf32> to vector<64x32xf32>
    %56 = vector.extract_strided_slice %27 {offsets = [1, 0, 0], sizes = [1, 1, 32], strides = [1, 1, 1]} : vector<3x3x32xf32> to vector<1x1x32xf32>
    %57 = vector.shape_cast %56 : vector<1x1x32xf32> to vector<32xf32>
    %58 = vector.shape_cast %57 : vector<32xf32> to vector<1x32xf32>
    %59 = vector.broadcast %58 : vector<1x32xf32> to vector<64x32xf32>
    %60 = arith.mulf %55, %59 : vector<64x32xf32>
    %61 = vector.broadcast %1 : vector<64x1xf32> to vector<64x32xf32>
    %62 = arith.mulf %60, %61 : vector<64x32xf32>
    %63 = arith.addf %54, %62 : vector<64x32xf32>
    %64 = vector.extract_strided_slice %30 {offsets = [16, 0], sizes = [64, 32], strides = [1, 1]} : vector<96x32xf32> to vector<64x32xf32>
    %65 = vector.extract_strided_slice %27 {offsets = [1, 1, 0], sizes = [1, 1, 32], strides = [1, 1, 1]} : vector<3x3x32xf32> to vector<1x1x32xf32>
    %66 = vector.shape_cast %65 : vector<1x1x32xf32> to vector<32xf32>
    %67 = vector.shape_cast %66 : vector<32xf32> to vector<1x32xf32>
    %68 = vector.broadcast %67 : vector<1x32xf32> to vector<64x32xf32>
    %69 = arith.mulf %64, %68 : vector<64x32xf32>
    %70 = arith.addf %63, %69 : vector<64x32xf32>
    %71 = vector.extract_strided_slice %30 {offsets = [17, 0], sizes = [64, 32], strides = [1, 1]} : vector<96x32xf32> to vector<64x32xf32>
    %72 = vector.extract_strided_slice %27 {offsets = [1, 2, 0], sizes = [1, 1, 32], strides = [1, 1, 1]} : vector<3x3x32xf32> to vector<1x1x32xf32>
    %73 = vector.shape_cast %72 : vector<1x1x32xf32> to vector<32xf32>
    %74 = vector.shape_cast %73 : vector<32xf32> to vector<1x32xf32>
    %75 = vector.broadcast %74 : vector<1x32xf32> to vector<64x32xf32>
    %76 = arith.mulf %71, %75 : vector<64x32xf32>
    %77 = vector.broadcast %2 : vector<64x1xf32> to vector<64x32xf32>
    %78 = arith.mulf %76, %77 : vector<64x32xf32>
    %79 = arith.addf %70, %78 : vector<64x32xf32>
    %80 = vector.extract_strided_slice %30 {offsets = [23, 0], sizes = [64, 32], strides = [1, 1]} : vector<96x32xf32> to vector<64x32xf32>
    %81 = vector.extract_strided_slice %27 {offsets = [2, 0, 0], sizes = [1, 1, 32], strides = [1, 1, 1]} : vector<3x3x32xf32> to vector<1x1x32xf32>
    %82 = vector.shape_cast %81 : vector<1x1x32xf32> to vector<32xf32>
    %83 = vector.shape_cast %82 : vector<32xf32> to vector<1x32xf32>
    %84 = vector.broadcast %83 : vector<1x32xf32> to vector<64x32xf32>
    %85 = arith.mulf %80, %84 : vector<64x32xf32>
    %86 = vector.broadcast %1 : vector<64x1xf32> to vector<64x32xf32>
    %87 = arith.mulf %85, %86 : vector<64x32xf32>
    %88 = arith.addf %79, %87 : vector<64x32xf32>
    %89 = vector.extract_strided_slice %30 {offsets = [24, 0], sizes = [64, 32], strides = [1, 1]} : vector<96x32xf32> to vector<64x32xf32>
    %90 = vector.extract_strided_slice %27 {offsets = [2, 1, 0], sizes = [1, 1, 32], strides = [1, 1, 1]} : vector<3x3x32xf32> to vector<1x1x32xf32>
    %91 = vector.shape_cast %90 : vector<1x1x32xf32> to vector<32xf32>
    %92 = vector.shape_cast %91 : vector<32xf32> to vector<1x32xf32>
    %93 = vector.broadcast %92 : vector<1x32xf32> to vector<64x32xf32>
    %94 = arith.mulf %89, %93 : vector<64x32xf32>
    %95 = arith.addf %88, %94 : vector<64x32xf32>
    %96 = vector.extract_strided_slice %30 {offsets = [25, 0], sizes = [64, 32], strides = [1, 1]} : vector<96x32xf32> to vector<64x32xf32>
    %97 = vector.extract_strided_slice %27 {offsets = [2, 2, 0], sizes = [1, 1, 32], strides = [1, 1, 1]} : vector<3x3x32xf32> to vector<1x1x32xf32>
    %98 = vector.shape_cast %97 : vector<1x1x32xf32> to vector<32xf32>
    %99 = vector.shape_cast %98 : vector<32xf32> to vector<1x32xf32>
    %100 = vector.broadcast %99 : vector<1x32xf32> to vector<64x32xf32>
    %101 = arith.mulf %96, %100 : vector<64x32xf32>
    %102 = vector.broadcast %2 : vector<64x1xf32> to vector<64x32xf32>
    %103 = arith.mulf %101, %102 : vector<64x32xf32>
    %104 = arith.addf %95, %103 : vector<64x32xf32>
    %105 = vector.broadcast %28 : vector<1x32xf32> to vector<64x32xf32>
    %106 = arith.addf %104, %105 : vector<64x32xf32>
    %cst_15 = arith.constant 5.000000e-01 : f32
    %107 = vector.broadcast %cst_15 : f32 to vector<64x32xf32>
    %108 = arith.mulf %107, %106 : vector<64x32xf32>
    %cst_16 = arith.constant 0.707106769 : f32
    %109 = vector.broadcast %cst_16 : f32 to vector<64x32xf32>
    %110 = arith.mulf %106, %109 : vector<64x32xf32>
    %111 = math.erf %110 : vector<64x32xf32>
    %cst_17 = arith.constant 1.000000e+00 : f32
    %112 = vector.broadcast %cst_17 : f32 to vector<64x32xf32>
    %113 = arith.addf %112, %111 : vector<64x32xf32>
    %114 = arith.mulf %108, %113 : vector<64x32xf32>
    %cst_18 = arith.constant dense<0.000000e+00> : vector<32xf32>
    %115 = vector.multi_reduction <add>, %114, %cst_18 [0] : vector<64x32xf32> to vector<32xf32>
    %116 = vector.shape_cast %115 : vector<32xf32> to vector<1x32xf32>
    %cst_19 = arith.constant 6.400000e+01 : f32
    %117 = vector.broadcast %cst_19 : f32 to vector<1x32xf32>
    %118 = arith.divf %116, %117 : vector<1x32xf32>
    %c0_20 = arith.constant 0 : index
    %c0_21 = arith.constant 0 : index
    %119 = vector.load %arg5[%c0_20, %c0_21] : memref<32x4xf32, #tpu.memory_space<vmem>>, vector<32x4xf32>
    %cst_22 = arith.constant dense<0.000000e+00> : vector<1x4xf32>
    %120 = tpu.matmul %118, %119, %cst_22 {dimension_numbers = #tpu.dot_dimension_numbers<[1], [0], [0], [1], [0, 0, 1, 1], [], []>} : vector<1x32xf32>, vector<32x4xf32>, vector<1x4xf32> -> vector<1x4xf32>
    %121 = vector.extract_strided_slice %0 {offsets = [3, 0], sizes = [1, 4], strides = [1, 1]} : vector<16x32xf32> to vector<1x4xf32>
    %122 = arith.addf %120, %121 : vector<1x4xf32>
    %cst_23 = arith.constant 5.000000e-01 : f32
    %123 = vector.broadcast %cst_23 : f32 to vector<1x4xf32>
    %124 = arith.mulf %123, %122 : vector<1x4xf32>
    %cst_24 = arith.constant 0.707106769 : f32
    %125 = vector.broadcast %cst_24 : f32 to vector<1x4xf32>
    %126 = arith.mulf %122, %125 : vector<1x4xf32>
    %127 = math.erf %126 : vector<1x4xf32>
    %cst_25 = arith.constant 1.000000e+00 : f32
    %128 = vector.broadcast %cst_25 : f32 to vector<1x4xf32>
    %129 = arith.addf %128, %127 : vector<1x4xf32>
    %130 = arith.mulf %124, %129 : vector<1x4xf32>
    %c0_26 = arith.constant 0 : index
    %c0_27 = arith.constant 0 : index
    %131 = vector.load %arg6[%c0_26, %c0_27] : memref<4x32xf32, #tpu.memory_space<vmem>>, vector<4x32xf32>
    %cst_28 = arith.constant dense<0.000000e+00> : vector<1x32xf32>
    %132 = tpu.matmul %130, %131, %cst_28 {dimension_numbers = #tpu.dot_dimension_numbers<[1], [0], [0], [1], [0, 0, 1, 1], [], []>} : vector<1x4xf32>, vector<4x32xf32>, vector<1x32xf32> -> vector<1x32xf32>
    %133 = vector.extract_strided_slice %0 {offsets = [4, 0], sizes = [1, 32], strides = [1, 1]} : vector<16x32xf32> to vector<1x32xf32>
    %134 = arith.addf %132, %133 : vector<1x32xf32>
    %c0_29 = arith.constant 0 : index
    %c0_30 = arith.constant 0 : index
    %135 = vector.load %arg7[%c0_29, %c0_30] : memref<32x2xf32, #tpu.memory_space<vmem>>, vector<32x2xf32>
    %cst_31 = arith.constant dense<0.000000e+00> : vector<64x2xf32>
    %136 = tpu.matmul %26, %135, %cst_31 {dimension_numbers = #tpu.dot_dimension_numbers<[1], [0], [0], [1], [0, 0, 1, 1], [], []>} : vector<64x32xf32>, vector<32x2xf32>, vector<64x2xf32> -> vector<64x2xf32>
    %137 = vector.extract_strided_slice %0 {offsets = [5, 0], sizes = [1, 2], strides = [1, 1]} : vector<16x32xf32> to vector<1x2xf32>
    %138 = vector.broadcast %137 : vector<1x2xf32> to vector<64x2xf32>
    %139 = arith.addf %136, %138 : vector<64x2xf32>
    %cst_32 = arith.constant 5.000000e-01 : f32
    %140 = vector.broadcast %cst_32 : f32 to vector<64x2xf32>
    %141 = arith.mulf %140, %139 : vector<64x2xf32>
    %cst_33 = arith.constant 0.707106769 : f32
    %142 = vector.broadcast %cst_33 : f32 to vector<64x2xf32>
    %143 = arith.mulf %139, %142 : vector<64x2xf32>
    %144 = math.erf %143 : vector<64x2xf32>
    %cst_34 = arith.constant 1.000000e+00 : f32
    %145 = vector.broadcast %cst_34 : f32 to vector<64x2xf32>
    %146 = arith.addf %145, %144 : vector<64x2xf32>
    %147 = arith.mulf %141, %146 : vector<64x2xf32>
    %148 = vector.extract_strided_slice %0 {offsets = [6, 0], sizes = [1, 2], strides = [1, 1]} : vector<16x32xf32> to vector<1x2xf32>
    %149 = vector.broadcast %148 : vector<1x2xf32> to vector<64x2xf32>
    %150 = arith.mulf %147, %149 : vector<64x2xf32>
    %cst_35 = arith.constant dense<0.000000e+00> : vector<64xf32>
    %151 = vector.multi_reduction <add>, %150, %cst_35 [1] : vector<64x2xf32> to vector<64xf32>
    %152 = vector.shape_cast %151 : vector<64xf32> to vector<64x1xf32>
    %153 = vector.extract_strided_slice %0 {offsets = [7, 0], sizes = [1, 1], strides = [1, 1]} : vector<16x32xf32> to vector<1x1xf32>
    %154 = vector.broadcast %153 : vector<1x1xf32> to vector<64x1xf32>
    %155 = arith.addf %152, %154 : vector<64x1xf32>
    %156 = arith.negf %134 : vector<1x32xf32>
    %157 = math.exp %156 : vector<1x32xf32>
    %cst_36 = arith.constant 1.000000e+00 : f32
    %158 = vector.broadcast %cst_36 : f32 to vector<1x32xf32>
    %159 = arith.addf %158, %157 : vector<1x32xf32>
    %160 = arith.divf %158, %159 : vector<1x32xf32>
    %161 = vector.broadcast %160 : vector<1x32xf32> to vector<64x32xf32>
    %162 = arith.mulf %26, %161 : vector<64x32xf32>
    %163 = arith.negf %155 : vector<64x1xf32>
    %164 = math.exp %163 : vector<64x1xf32>
    %cst_37 = arith.constant 1.000000e+00 : f32
    %165 = vector.broadcast %cst_37 : f32 to vector<64x1xf32>
    %166 = arith.addf %165, %164 : vector<64x1xf32>
    %167 = arith.divf %165, %166 : vector<64x1xf32>
    %168 = vector.broadcast %167 : vector<64x1xf32> to vector<64x32xf32>
    %169 = arith.mulf %168, %114 : vector<64x32xf32>
    %170 = arith.addf %162, %169 : vector<64x32xf32>
    %c0_38 = arith.constant 0 : index
    %c0_39 = arith.constant 0 : index
    %171 = vector.load %arg8[%c0_38, %c0_39] : memref<32x32xf32, #tpu.memory_space<vmem>>, vector<32x32xf32>
    %cst_40 = arith.constant dense<0.000000e+00> : vector<64x32xf32>
    %172 = tpu.matmul %170, %171, %cst_40 {dimension_numbers = #tpu.dot_dimension_numbers<[1], [0], [0], [1], [0, 0, 1, 1], [], []>} : vector<64x32xf32>, vector<32x32xf32>, vector<64x32xf32> -> vector<64x32xf32>
    %173 = vector.extract_strided_slice %0 {offsets = [8, 0], sizes = [1, 32], strides = [1, 1]} : vector<16x32xf32> to vector<1x32xf32>
    %174 = vector.broadcast %173 : vector<1x32xf32> to vector<64x32xf32>
    %175 = arith.addf %172, %174 : vector<64x32xf32>
    %176 = arith.addf %175, %26 : vector<64x32xf32>
    %177 = vector.extract_strided_slice %0 {offsets = [9, 0], sizes = [1, 32], strides = [1, 1]} : vector<16x32xf32> to vector<1x32xf32>
    %178 = vector.extract_strided_slice %0 {offsets = [10, 0], sizes = [1, 32], strides = [1, 1]} : vector<16x32xf32> to vector<1x32xf32>
    %cst_41 = arith.constant dense<0.000000e+00> : vector<64xf32>
    %179 = vector.multi_reduction <add>, %176, %cst_41 [1] : vector<64x32xf32> to vector<64xf32>
    %180 = vector.shape_cast %179 : vector<64xf32> to vector<64x1xf32>
    %cst_42 = arith.constant 3.200000e+01 : f32
    %181 = vector.broadcast %cst_42 : f32 to vector<64x1xf32>
    %182 = arith.divf %180, %181 : vector<64x1xf32>
    %183 = vector.broadcast %182 : vector<64x1xf32> to vector<64x32xf32>
    %184 = arith.subf %176, %183 : vector<64x32xf32>
    %185 = arith.mulf %184, %184 : vector<64x32xf32>
    %cst_43 = arith.constant dense<0.000000e+00> : vector<64xf32>
    %186 = vector.multi_reduction <add>, %185, %cst_43 [1] : vector<64x32xf32> to vector<64xf32>
    %187 = vector.shape_cast %186 : vector<64xf32> to vector<64x1xf32>
    %cst_44 = arith.constant 3.200000e+01 : f32
    %188 = vector.broadcast %cst_44 : f32 to vector<64x1xf32>
    %189 = arith.divf %187, %188 : vector<64x1xf32>
    %cst_45 = arith.constant 9.99999997E-7 : f32
    %190 = vector.broadcast %cst_45 : f32 to vector<64x1xf32>
    %191 = arith.addf %189, %190 : vector<64x1xf32>
    %192 = math.rsqrt %191 : vector<64x1xf32>
    %193 = vector.broadcast %192 : vector<64x1xf32> to vector<64x32xf32>
    %194 = arith.mulf %184, %193 : vector<64x32xf32>
    %195 = vector.broadcast %177 : vector<1x32xf32> to vector<64x32xf32>
    %196 = arith.mulf %194, %195 : vector<64x32xf32>
    %197 = vector.broadcast %178 : vector<1x32xf32> to vector<64x32xf32>
    %198 = arith.addf %196, %197 : vector<64x32xf32>
    %c0_46 = arith.constant 0 : index
    %c0_47 = arith.constant 0 : index
    %199 = vector.load %arg9[%c0_46, %c0_47] : memref<32x32xf32, #tpu.memory_space<vmem>>, vector<32x32xf32>
    %cst_48 = arith.constant dense<0.000000e+00> : vector<64x32xf32>
    %200 = tpu.matmul %198, %199, %cst_48 {dimension_numbers = #tpu.dot_dimension_numbers<[1], [0], [0], [1], [0, 0, 1, 1], [], []>} : vector<64x32xf32>, vector<32x32xf32>, vector<64x32xf32> -> vector<64x32xf32>
    %201 = vector.extract_strided_slice %0 {offsets = [11, 0], sizes = [1, 32], strides = [1, 1]} : vector<16x32xf32> to vector<1x32xf32>
    %202 = vector.broadcast %201 : vector<1x32xf32> to vector<64x32xf32>
    %203 = arith.addf %200, %202 : vector<64x32xf32>
    %cst_49 = arith.constant 5.000000e-01 : f32
    %204 = vector.broadcast %cst_49 : f32 to vector<64x32xf32>
    %205 = arith.mulf %204, %203 : vector<64x32xf32>
    %cst_50 = arith.constant 0.707106769 : f32
    %206 = vector.broadcast %cst_50 : f32 to vector<64x32xf32>
    %207 = arith.mulf %203, %206 : vector<64x32xf32>
    %208 = math.erf %207 : vector<64x32xf32>
    %cst_51 = arith.constant 1.000000e+00 : f32
    %209 = vector.broadcast %cst_51 : f32 to vector<64x32xf32>
    %210 = arith.addf %209, %208 : vector<64x32xf32>
    %211 = arith.mulf %205, %210 : vector<64x32xf32>
    %212 = vector.extract_strided_slice %211 {offsets = [0, 0], sizes = [64, 16], strides = [1, 1]} : vector<64x32xf32> to vector<64x16xf32>
    %213 = vector.extract_strided_slice %211 {offsets = [0, 16], sizes = [64, 16], strides = [1, 1]} : vector<64x32xf32> to vector<64x16xf32>
    %214 = vector.extract_strided_slice %0 {offsets = [12, 0], sizes = [1, 16], strides = [1, 1]} : vector<16x32xf32> to vector<1x16xf32>
    %215 = vector.extract_strided_slice %0 {offsets = [13, 0], sizes = [1, 16], strides = [1, 1]} : vector<16x32xf32> to vector<1x16xf32>
    %cst_52 = arith.constant dense<0.000000e+00> : vector<64xf32>
    %216 = vector.multi_reduction <add>, %213, %cst_52 [1] : vector<64x16xf32> to vector<64xf32>
    %217 = vector.shape_cast %216 : vector<64xf32> to vector<64x1xf32>
    %cst_53 = arith.constant 1.600000e+01 : f32
    %218 = vector.broadcast %cst_53 : f32 to vector<64x1xf32>
    %219 = arith.divf %217, %218 : vector<64x1xf32>
    %220 = vector.broadcast %219 : vector<64x1xf32> to vector<64x16xf32>
    %221 = arith.subf %213, %220 : vector<64x16xf32>
    %222 = arith.mulf %221, %221 : vector<64x16xf32>
    %cst_54 = arith.constant dense<0.000000e+00> : vector<64xf32>
    %223 = vector.multi_reduction <add>, %222, %cst_54 [1] : vector<64x16xf32> to vector<64xf32>
    %224 = vector.shape_cast %223 : vector<64xf32> to vector<64x1xf32>
    %cst_55 = arith.constant 1.600000e+01 : f32
    %225 = vector.broadcast %cst_55 : f32 to vector<64x1xf32>
    %226 = arith.divf %224, %225 : vector<64x1xf32>
    %cst_56 = arith.constant 9.99999974E-6 : f32
    %227 = vector.broadcast %cst_56 : f32 to vector<64x1xf32>
    %228 = arith.addf %226, %227 : vector<64x1xf32>
    %229 = math.rsqrt %228 : vector<64x1xf32>
    %230 = vector.broadcast %229 : vector<64x1xf32> to vector<64x16xf32>
    %231 = arith.mulf %221, %230 : vector<64x16xf32>
    %232 = vector.broadcast %214 : vector<1x16xf32> to vector<64x16xf32>
    %233 = arith.mulf %231, %232 : vector<64x16xf32>
    %234 = vector.broadcast %215 : vector<1x16xf32> to vector<64x16xf32>
    %235 = arith.addf %233, %234 : vector<64x16xf32>
    %c0_57 = arith.constant 0 : index
    %c0_58 = arith.constant 0 : index
    %c0_59 = arith.constant 0 : index
    %236 = vector.load %arg10[%c0_57, %c0_58, %c0_59] : memref<3x3x16xf32, #tpu.memory_space<vmem>>, vector<3x3x16xf32>
    %237 = vector.extract_strided_slice %0 {offsets = [14, 0], sizes = [1, 16], strides = [1, 1]} : vector<16x32xf32> to vector<1x16xf32>
    %cst_60 = arith.constant 0.000000e+00 : f32
    %238 = vector.broadcast %cst_60 : f32 to vector<16x16xf32>
    %239 = tpu.concatenate %238, %235, %238 in 0 : vector<16x16xf32>, vector<64x16xf32>, vector<16x16xf32> -> vector<96x16xf32>
    %240 = vector.extract_strided_slice %239 {offsets = [7, 0], sizes = [64, 16], strides = [1, 1]} : vector<96x16xf32> to vector<64x16xf32>
    %241 = vector.extract_strided_slice %236 {offsets = [0, 0, 0], sizes = [1, 1, 16], strides = [1, 1, 1]} : vector<3x3x16xf32> to vector<1x1x16xf32>
    %242 = vector.shape_cast %241 : vector<1x1x16xf32> to vector<16xf32>
    %243 = vector.shape_cast %242 : vector<16xf32> to vector<1x16xf32>
    %244 = vector.broadcast %243 : vector<1x16xf32> to vector<64x16xf32>
    %245 = arith.mulf %240, %244 : vector<64x16xf32>
    %246 = vector.broadcast %1 : vector<64x1xf32> to vector<64x16xf32>
    %247 = arith.mulf %245, %246 : vector<64x16xf32>
    %248 = vector.extract_strided_slice %239 {offsets = [8, 0], sizes = [64, 16], strides = [1, 1]} : vector<96x16xf32> to vector<64x16xf32>
    %249 = vector.extract_strided_slice %236 {offsets = [0, 1, 0], sizes = [1, 1, 16], strides = [1, 1, 1]} : vector<3x3x16xf32> to vector<1x1x16xf32>
    %250 = vector.shape_cast %249 : vector<1x1x16xf32> to vector<16xf32>
    %251 = vector.shape_cast %250 : vector<16xf32> to vector<1x16xf32>
    %252 = vector.broadcast %251 : vector<1x16xf32> to vector<64x16xf32>
    %253 = arith.mulf %248, %252 : vector<64x16xf32>
    %254 = arith.addf %247, %253 : vector<64x16xf32>
    %255 = vector.extract_strided_slice %239 {offsets = [9, 0], sizes = [64, 16], strides = [1, 1]} : vector<96x16xf32> to vector<64x16xf32>
    %256 = vector.extract_strided_slice %236 {offsets = [0, 2, 0], sizes = [1, 1, 16], strides = [1, 1, 1]} : vector<3x3x16xf32> to vector<1x1x16xf32>
    %257 = vector.shape_cast %256 : vector<1x1x16xf32> to vector<16xf32>
    %258 = vector.shape_cast %257 : vector<16xf32> to vector<1x16xf32>
    %259 = vector.broadcast %258 : vector<1x16xf32> to vector<64x16xf32>
    %260 = arith.mulf %255, %259 : vector<64x16xf32>
    %261 = vector.broadcast %2 : vector<64x1xf32> to vector<64x16xf32>
    %262 = arith.mulf %260, %261 : vector<64x16xf32>
    %263 = arith.addf %254, %262 : vector<64x16xf32>
    %264 = vector.extract_strided_slice %239 {offsets = [15, 0], sizes = [64, 16], strides = [1, 1]} : vector<96x16xf32> to vector<64x16xf32>
    %265 = vector.extract_strided_slice %236 {offsets = [1, 0, 0], sizes = [1, 1, 16], strides = [1, 1, 1]} : vector<3x3x16xf32> to vector<1x1x16xf32>
    %266 = vector.shape_cast %265 : vector<1x1x16xf32> to vector<16xf32>
    %267 = vector.shape_cast %266 : vector<16xf32> to vector<1x16xf32>
    %268 = vector.broadcast %267 : vector<1x16xf32> to vector<64x16xf32>
    %269 = arith.mulf %264, %268 : vector<64x16xf32>
    %270 = vector.broadcast %1 : vector<64x1xf32> to vector<64x16xf32>
    %271 = arith.mulf %269, %270 : vector<64x16xf32>
    %272 = arith.addf %263, %271 : vector<64x16xf32>
    %273 = vector.extract_strided_slice %239 {offsets = [16, 0], sizes = [64, 16], strides = [1, 1]} : vector<96x16xf32> to vector<64x16xf32>
    %274 = vector.extract_strided_slice %236 {offsets = [1, 1, 0], sizes = [1, 1, 16], strides = [1, 1, 1]} : vector<3x3x16xf32> to vector<1x1x16xf32>
    %275 = vector.shape_cast %274 : vector<1x1x16xf32> to vector<16xf32>
    %276 = vector.shape_cast %275 : vector<16xf32> to vector<1x16xf32>
    %277 = vector.broadcast %276 : vector<1x16xf32> to vector<64x16xf32>
    %278 = arith.mulf %273, %277 : vector<64x16xf32>
    %279 = arith.addf %272, %278 : vector<64x16xf32>
    %280 = vector.extract_strided_slice %239 {offsets = [17, 0], sizes = [64, 16], strides = [1, 1]} : vector<96x16xf32> to vector<64x16xf32>
    %281 = vector.extract_strided_slice %236 {offsets = [1, 2, 0], sizes = [1, 1, 16], strides = [1, 1, 1]} : vector<3x3x16xf32> to vector<1x1x16xf32>
    %282 = vector.shape_cast %281 : vector<1x1x16xf32> to vector<16xf32>
    %283 = vector.shape_cast %282 : vector<16xf32> to vector<1x16xf32>
    %284 = vector.broadcast %283 : vector<1x16xf32> to vector<64x16xf32>
    %285 = arith.mulf %280, %284 : vector<64x16xf32>
    %286 = vector.broadcast %2 : vector<64x1xf32> to vector<64x16xf32>
    %287 = arith.mulf %285, %286 : vector<64x16xf32>
    %288 = arith.addf %279, %287 : vector<64x16xf32>
    %289 = vector.extract_strided_slice %239 {offsets = [23, 0], sizes = [64, 16], strides = [1, 1]} : vector<96x16xf32> to vector<64x16xf32>
    %290 = vector.extract_strided_slice %236 {offsets = [2, 0, 0], sizes = [1, 1, 16], strides = [1, 1, 1]} : vector<3x3x16xf32> to vector<1x1x16xf32>
    %291 = vector.shape_cast %290 : vector<1x1x16xf32> to vector<16xf32>
    %292 = vector.shape_cast %291 : vector<16xf32> to vector<1x16xf32>
    %293 = vector.broadcast %292 : vector<1x16xf32> to vector<64x16xf32>
    %294 = arith.mulf %289, %293 : vector<64x16xf32>
    %295 = vector.broadcast %1 : vector<64x1xf32> to vector<64x16xf32>
    %296 = arith.mulf %294, %295 : vector<64x16xf32>
    %297 = arith.addf %288, %296 : vector<64x16xf32>
    %298 = vector.extract_strided_slice %239 {offsets = [24, 0], sizes = [64, 16], strides = [1, 1]} : vector<96x16xf32> to vector<64x16xf32>
    %299 = vector.extract_strided_slice %236 {offsets = [2, 1, 0], sizes = [1, 1, 16], strides = [1, 1, 1]} : vector<3x3x16xf32> to vector<1x1x16xf32>
    %300 = vector.shape_cast %299 : vector<1x1x16xf32> to vector<16xf32>
    %301 = vector.shape_cast %300 : vector<16xf32> to vector<1x16xf32>
    %302 = vector.broadcast %301 : vector<1x16xf32> to vector<64x16xf32>
    %303 = arith.mulf %298, %302 : vector<64x16xf32>
    %304 = arith.addf %297, %303 : vector<64x16xf32>
    %305 = vector.extract_strided_slice %239 {offsets = [25, 0], sizes = [64, 16], strides = [1, 1]} : vector<96x16xf32> to vector<64x16xf32>
    %306 = vector.extract_strided_slice %236 {offsets = [2, 2, 0], sizes = [1, 1, 16], strides = [1, 1, 1]} : vector<3x3x16xf32> to vector<1x1x16xf32>
    %307 = vector.shape_cast %306 : vector<1x1x16xf32> to vector<16xf32>
    %308 = vector.shape_cast %307 : vector<16xf32> to vector<1x16xf32>
    %309 = vector.broadcast %308 : vector<1x16xf32> to vector<64x16xf32>
    %310 = arith.mulf %305, %309 : vector<64x16xf32>
    %311 = vector.broadcast %2 : vector<64x1xf32> to vector<64x16xf32>
    %312 = arith.mulf %310, %311 : vector<64x16xf32>
    %313 = arith.addf %304, %312 : vector<64x16xf32>
    %314 = vector.broadcast %237 : vector<1x16xf32> to vector<64x16xf32>
    %315 = arith.addf %313, %314 : vector<64x16xf32>
    %316 = arith.mulf %212, %315 : vector<64x16xf32>
    %c0_61 = arith.constant 0 : index
    %c0_62 = arith.constant 0 : index
    %317 = vector.load %arg11[%c0_61, %c0_62] : memref<16x32xf32, #tpu.memory_space<vmem>>, vector<16x32xf32>
    %cst_63 = arith.constant dense<0.000000e+00> : vector<64x32xf32>
    %318 = tpu.matmul %316, %317, %cst_63 {dimension_numbers = #tpu.dot_dimension_numbers<[1], [0], [0], [1], [0, 0, 1, 1], [], []>} : vector<64x16xf32>, vector<16x32xf32>, vector<64x32xf32> -> vector<64x32xf32>
    %319 = vector.extract_strided_slice %0 {offsets = [15, 0], sizes = [1, 32], strides = [1, 1]} : vector<16x32xf32> to vector<1x32xf32>
    %320 = vector.broadcast %319 : vector<1x32xf32> to vector<64x32xf32>
    %321 = arith.addf %318, %320 : vector<64x32xf32>
    %322 = arith.addf %321, %198 : vector<64x32xf32>
    %c0_64 = arith.constant 0 : index
    %c0_65 = arith.constant 0 : index
    %c0_66 = arith.constant 0 : index
    %323 = vector.load %arg12[%c0_64, %c0_65, %c0_66] : memref<1x64x32xf32, #tpu.memory_space<vmem>>, vector<1x64x32xf32>
    %324 = vector.shape_cast %323 : vector<1x64x32xf32> to vector<64x32xf32>
    %325 = vector.shape_cast %322 : vector<64x32xf32> to vector<1x64x32xf32>
    tpu.vector_store %arg12[%c0_64, %c0_65, %c0_66], %325 {strides = array<i32>} : memref<1x64x32xf32, #tpu.memory_space<vmem>>, vector<1x64x32xf32>,
    return
  }
  func.func @transform_0(%arg0: i32) -> (i32, i32, i32) {
    %c0_i32 = arith.constant 0 : i32
    %c0_i32_0 = arith.constant 0 : i32
    %c0_i32_1 = arith.constant 0 : i32
    return %arg0, %c0_i32, %c0_i32_0 : i32, i32, i32
  }
  func.func @transform_1(%arg0: i32) -> (i32, i32) {
    %c0_i32 = arith.constant 0 : i32
    %c0_i32_0 = arith.constant 0 : i32
    %c0_i32_1 = arith.constant 0 : i32
    return %c0_i32, %c0_i32_0 : i32, i32
  }
  func.func @transform_2(%arg0: i32) -> (i32, i32) {
    %c0_i32 = arith.constant 0 : i32
    %c0_i32_0 = arith.constant 0 : i32
    %c0_i32_1 = arith.constant 0 : i32
    return %c0_i32, %c0_i32_0 : i32, i32
  }
  func.func @transform_3(%arg0: i32) -> (i32, i32, i32) {
    %c0_i32 = arith.constant 0 : i32
    %c0_i32_0 = arith.constant 0 : i32
    %c0_i32_1 = arith.constant 0 : i32
    %c0_i32_2 = arith.constant 0 : i32
    return %c0_i32, %c0_i32_0, %c0_i32_1 : i32, i32, i32
  }
  func.func @transform_4(%arg0: i32) -> (i32, i32) {
    %c0_i32 = arith.constant 0 : i32
    %c0_i32_0 = arith.constant 0 : i32
    %c0_i32_1 = arith.constant 0 : i32
    return %c0_i32, %c0_i32_0 : i32, i32
  }
  func.func @transform_5(%arg0: i32) -> (i32, i32) {
    %c0_i32 = arith.constant 0 : i32
    %c0_i32_0 = arith.constant 0 : i32
    %c0_i32_1 = arith.constant 0 : i32
    return %c0_i32, %c0_i32_0 : i32, i32
  }
  func.func @transform_6(%arg0: i32) -> (i32, i32) {
    %c0_i32 = arith.constant 0 : i32
    %c0_i32_0 = arith.constant 0 : i32
    %c0_i32_1 = arith.constant 0 : i32
    return %c0_i32, %c0_i32_0 : i32, i32
  }
  func.func @transform_7(%arg0: i32) -> (i32, i32) {
    %c0_i32 = arith.constant 0 : i32
    %c0_i32_0 = arith.constant 0 : i32
    %c0_i32_1 = arith.constant 0 : i32
    return %c0_i32, %c0_i32_0 : i32, i32
  }
  func.func @transform_8(%arg0: i32) -> (i32, i32) {
    %c0_i32 = arith.constant 0 : i32
    %c0_i32_0 = arith.constant 0 : i32
    %c0_i32_1 = arith.constant 0 : i32
    return %c0_i32, %c0_i32_0 : i32, i32
  }
  func.func @transform_9(%arg0: i32) -> (i32, i32, i32) {
    %c0_i32 = arith.constant 0 : i32
    %c0_i32_0 = arith.constant 0 : i32
    %c0_i32_1 = arith.constant 0 : i32
    %c0_i32_2 = arith.constant 0 : i32
    return %c0_i32, %c0_i32_0, %c0_i32_1 : i32, i32, i32
  }
  func.func @transform_10(%arg0: i32) -> (i32, i32) {
    %c0_i32 = arith.constant 0 : i32
    %c0_i32_0 = arith.constant 0 : i32
    %c0_i32_1 = arith.constant 0 : i32
    return %c0_i32, %c0_i32_0 : i32, i32
  }
  func.func @transform_11(%arg0: i32) -> (i32, i32, i32) {
    %c0_i32 = arith.constant 0 : i32
    %c0_i32_0 = arith.constant 0 : i32
    %c0_i32_1 = arith.constant 0 : i32
    return %arg0, %c0_i32, %c0_i32_0 : i32, i32, i32
  }
}

</mosaic_0001>

<llo_original>
// kernel: vss_block_forward.1
$region0: #{vss_block_forward.1}
  #allocation0 [shape = 'u32[]', space=smem, size = 0x4, offset = 0x4, fixed_abs, tag = 'smem constant byte address 0x4 - core index']
  #allocation1 [shape = 'u32[72,128]{1,0:T(1,128)}', space=vmem, size = 0x9000, scoped, tag = 'internal scratch']
  %s0 = inlined_call_operand.vmem [shape: f32[2,64,32], index: 0, kind: input, shape index: {}]
  %s1 = inlined_call_operand.vmem [shape: f32[64,2], index: 1, kind: input, shape index: {}]
  %s2 = inlined_call_operand.vmem [shape: f32[16,32], index: 2, kind: input, shape index: {}]
  %s3 = inlined_call_operand.vmem [shape: f32[3,3,32], index: 3, kind: input, shape index: {}]
  %s4 = inlined_call_operand.vmem [shape: f32[32,4], index: 4, kind: input, shape index: {}]
  %s5 = inlined_call_operand.vmem [shape: f32[4,32], index: 5, kind: input, shape index: {}]
  %s6 = inlined_call_operand.vmem [shape: f32[32,2], index: 6, kind: input, shape index: {}]
  %s7 = inlined_call_operand.vmem [shape: f32[32,32], index: 7, kind: input, shape index: {}]
  %s8 = inlined_call_operand.vmem [shape: f32[32,32], index: 8, kind: input, shape index: {}]
  %s9 = inlined_call_operand.vmem [shape: f32[3,3,16], index: 9, kind: input, shape index: {}]
  %s10 = inlined_call_operand.vmem [shape: f32[16,32], index: 10, kind: input, shape index: {}]
  %s11 = inlined_call_operand.hbm [shape: f32[2,64,32], index: 11, kind: output, shape index: {}]
  %s12 = sld [smem:[#allocation0]]
  $region77: #{vss_block_forward.1} parent=0
    _
  %s14 = ssub.s32 1, %s12
  %s15 = scalar_select 0, %s14, %s12
  $region1: #{vss_block_forward.1} parent=0
    #allocation2 [shape = 'u8[65536]{0}', space=vmem, size = 0x10000, scoped, tag = 'output window, operand 0']
    #allocation3 [shape = 's32[2]{0}', space=sflag, size = 0x8, scoped, tag = 'scoped memory for vss_block_forward.1']
    %16 = vsyncpa [#allocation3], 0
    %s17 = scalar_lea.sflag [#allocation3], 1
    %18 = vsyncpa %s17, 0
    loop: start=0, step=1, limit=4
    $region2: #{vss_block_forward.1} parent=1 // loop_pre_header
      _
    $region3: #{vss_block_forward.1} parent=1 // loop_header
      %s20 = sphi 0, %s24
      %p21 = scmp.ge.s32.totalorder %s20, 4
      %s30 = sphi 0, %s32
      %s33 = sphi 0, %s30
      %s34 = sphi 0, %s33
      %s50 = sphi 0, %s34
      %s54 = sphi 0, %s54
      %s56 = sphi 0, %s54
      %s57 = sphi 0, %s56
      %s71 = sphi 0, %s57
      %s75 = sphi 0, %s75
      %s77 = sphi 0, %s75
      %s78 = sphi 0, %s77
      %s92 = sphi 0, %s78
      %s96 = sphi 0, %s96
      %s98 = sphi 0, %s96
      %s99 = sphi 0, %s98
      %s113 = sphi 0, %s99
      %s117 = sphi 0, %s117
      %s119 = sphi 0, %s117
      %s120 = sphi 0, %s119
      %s134 = sphi 0, %s120
      %s138 = sphi 0, %s138
      %s140 = sphi 0, %s138
      %s141 = sphi 0, %s140
      %s155 = sphi 0, %s141
      %s159 = sphi 0, %s159
      %s161 = sphi 0, %s159
      %s162 = sphi 0, %s161
      %s176 = sphi 0, %s162
      %s180 = sphi 0, %s180
      %s182 = sphi 0, %s180
      %s183 = sphi 0, %s182
      %s197 = sphi 0, %s183
      %s201 = sphi 0, %s201
      %s203 = sphi 0, %s201
      %s204 = sphi 0, %s203
      %s218 = sphi 0, %s204
      %s222 = sphi 0, %s222
      %s224 = sphi 0, %s222
      %s225 = sphi 0, %s224
      %s239 = sphi 0, %s225
      %s243 = sphi 0, %s243
      %s245 = sphi 0, %s243
      %s246 = sphi 0, %s245
      %s260 = sphi 0, %s246
      %s266 = sphi 0, %s268
      %s269 = sphi 0, %s266
      %s270 = sphi 0, %s269
      %s286 = sphi 0, %s270
    $region4: #{vss_block_forward.1} parent=1 // loop_header_branch
      %23 = sbr.rel (%p21) target = $region8
    $region5: #{vss_block_forward.1} parent=1 // loop_body
      %s25 = ssub.s32 %s20, 1
      %s26 = ssub.s32 %s20, 2
      %s27 = sadd.s32 %s20, 1
      %s28 = ssub.s32 %s20, %s27
      %p29 = scmp.eq.s32.totalorder %s28, 0
      %s31 = sadd.s32 %s30, 1
      %s32 = scalar_select %p29, %s30, %s31
      %p35 = pneg %p29
      %p36 = scmp.eq.s32.totalorder %s20, 1
      %p37 = por %p35, %p36
      %p38 = scmp.ne.s32.totalorder %s30, %s33
      %p39 = scmp.eq.s32.totalorder %s20, 0
      %p40 = por %p38, %p39
      %p41 = scmp.ne.s32.totalorder %s30, %s33
      %p42 = scmp.eq.s32.totalorder %s25, 1
      %p43 = por %p41, %p42
      %p44 = scmp.ne.s32.totalorder %s33, %s34
      %p45 = scmp.eq.s32.totalorder %s25, 0
      %p46 = por %p44, %p45
      %p47 = scmp.ne.s32.totalorder %s33, %s34
      %p48 = scmp.eq.s32.totalorder %s26, 1
      %p49 = por %p47, %p48
      %p51 = scmp.ne.s32.totalorder %s34, %s50
      %p52 = scmp.eq.s32.totalorder %s26, 0
      %p53 = por %p51, %p52
      %s55 = sadd.s32 %s54, 1
      %p58 = scmp.eq.s32.totalorder %s20, 1
      %p59 = scmp.ne.s32.totalorder %s54, %s56
      %p60 = scmp.eq.s32.totalorder %s20, 0
      %p61 = por %p59, %p60
      %p62 = scmp.ne.s32.totalorder %s54, %s56
      %p63 = scmp.eq.s32.totalorder %s25, 1
      %p64 = por %p62, %p63
      %p65 = scmp.ne.s32.totalorder %s56, %s57
      %p66 = scmp.eq.s32.totalorder %s25, 0
      %p67 = por %p65, %p66
      %p68 = scmp.ne.s32.totalorder %s56, %s57
      %p69 = scmp.eq.s32.totalorder %s26, 1
      %p70 = por %p68, %p69
      %p72 = scmp.ne.s32.totalorder %s57, %s71
      %p73 = scmp.eq.s32.totalorder %s26, 0
      %p74 = por %p72, %p73
      %s76 = sadd.s32 %s75, 1
      %p79 = scmp.eq.s32.totalorder %s20, 1
      %p80 = scmp.ne.s32.totalorder %s75, %s77
      %p81 = scmp.eq.s32.totalorder %s20, 0
      %p82 = por %p80, %p81
      %p83 = scmp.ne.s32.totalorder %s75, %s77
      %p84 = scmp.eq.s32.totalorder %s25, 1
      %p85 = por %p83, %p84
      %p86 = scmp.ne.s32.totalorder %s77, %s78
      %p87 = scmp.eq.s32.totalorder %s25, 0
      %p88 = por %p86, %p87
      %p89 = scmp.ne.s32.totalorder %s77, %s78
      %p90 = scmp.eq.s32.totalorder %s26, 1
      %p91 = por %p89, %p90
      %p93 = scmp.ne.s32.totalorder %s78, %s92
      %p94 = scmp.eq.s32.totalorder %s26, 0
      %p95 = por %p93, %p94
      %s97 = sadd.s32 %s96, 1
      %p100 = scmp.eq.s32.totalorder %s20, 1
      %p101 = scmp.ne.s32.totalorder %s96, %s98
      %p102 = scmp.eq.s32.totalorder %s20, 0
      %p103 = por %p101, %p102
      %p104 = scmp.ne.s32.totalorder %s96, %s98
      %p105 = scmp.eq.s32.totalorder %s25, 1
      %p106 = por %p104, %p105
      %p107 = scmp.ne.s32.totalorder %s98, %s99
      %p108 = scmp.eq.s32.totalorder %s25, 0
      %p109 = por %p107, %p108
      %p110 = scmp.ne.s32.totalorder %s98, %s99
      %p111 = scmp.eq.s32.totalorder %s26, 1
      %p112 = por %p110, %p111
      %p114 = scmp.ne.s32.totalorder %s99, %s113
      %p115 = scmp.eq.s32.totalorder %s26, 0
      %p116 = por %p114, %p115
      %s118 = sadd.s32 %s117, 1
      %p121 = scmp.eq.s32.totalorder %s20, 1
      %p122 = scmp.ne.s32.totalorder %s117, %s119
      %p123 = scmp.eq.s32.totalorder %s20, 0
      %p124 = por %p122, %p123
      %p125 = scmp.ne.s32.totalorder %s117, %s119
      %p126 = scmp.eq.s32.totalorder %s25, 1
      %p127 = por %p125, %p126
      %p128 = scmp.ne.s32.totalorder %s119, %s120
      %p129 = scmp.eq.s32.totalorder %s25, 0
      %p130 = por %p128, %p129
      %p131 = scmp.ne.s32.totalorder %s119, %s120
      %p132 = scmp.eq.s32.totalorder %s26, 1
      %p133 = por %p131, %p132
      %p135 = scmp.ne.s32.totalorder %s120, %s134
      %p136 = scmp.eq.s32.totalorder %s26, 0
      %p137 = por %p135, %p136
      %s139 = sadd.s32 %s138, 1
      %p142 = scmp.eq.s32.totalorder %s20, 1
      %p143 = scmp.ne.s32.totalorder %s138, %s140
      %p144 = scmp.eq.s32.totalorder %s20, 0
      %p145 = por %p143, %p144
      %p146 = scmp.ne.s32.totalorder %s138, %s140
      %p147 = scmp.eq.s32.totalorder %s25, 1
      %p148 = por %p146, %p147
      %p149 = scmp.ne.s32.totalorder %s140, %s141
      %p150 = scmp.eq.s32.totalorder %s25, 0
      %p151 = por %p149, %p150
      %p152 = scmp.ne.s32.totalorder %s140, %s141
      %p153 = scmp.eq.s32.totalorder %s26, 1
      %p154 = por %p152, %p153
      %p156 = scmp.ne.s32.totalorder %s141, %s155
      %p157 = scmp.eq.s32.totalorder %s26, 0
      %p158 = por %p156, %p157
      %s160 = sadd.s32 %s159, 1
      %p163 = scmp.eq.s32.totalorder %s20, 1
      %p164 = scmp.ne.s32.totalorder %s159, %s161
      %p165 = scmp.eq.s32.totalorder %s20, 0
      %p166 = por %p164, %p165
      %p167 = scmp.ne.s32.totalorder %s159, %s161
      %p168 = scmp.eq.s32.totalorder %s25, 1
      %p169 = por %p167, %p168
      %p170 = scmp.ne.s32.totalorder %s161, %s162
      %p171 = scmp.eq.s32.totalorder %s25, 0
      %p172 = por %p170, %p171
      %p173 = scmp.ne.s32.totalorder %s161, %s162
      %p174 = scmp.eq.s32.totalorder %s26, 1
      %p175 = por %p173, %p174
      %p177 = scmp.ne.s32.totalorder %s162, %s176
      %p178 = scmp.eq.s32.totalorder %s26, 0
      %p179 = por %p177, %p178
      %s181 = sadd.s32 %s180, 1
      %p184 = scmp.eq.s32.totalorder %s20, 1
      %p185 = scmp.ne.s32.totalorder %s180, %s182
      %p186 = scmp.eq.s32.totalorder %s20, 0
      %p187 = por %p185, %p186
      %p188 = scmp.ne.s32.totalorder %s180, %s182
      %p189 = scmp.eq.s32.totalorder %s25, 1
      %p190 = por %p188, %p189
      %p191 = scmp.ne.s32.totalorder %s182, %s183
      %p192 = scmp.eq.s32.totalorder %s25, 0
      %p193 = por %p191, %p192
      %p194 = scmp.ne.s32.totalorder %s182, %s183
      %p195 = scmp.eq.s32.totalorder %s26, 1
      %p196 = por %p194, %p195
      %p198 = scmp.ne.s32.totalorder %s183, %s197
      %p199 = scmp.eq.s32.totalorder %s26, 0
      %p200 = por %p198, %p199
      %s202 = sadd.s32 %s201, 1
      %p205 = scmp.eq.s32.totalorder %s20, 1
      %p206 = scmp.ne.s32.totalorder %s201, %s203
      %p207 = scmp.eq.s32.totalorder %s20, 0
      %p208 = por %p206, %p207
      %p209 = scmp.ne.s32.totalorder %s201, %s203
      %p210 = scmp.eq.s32.totalorder %s25, 1
      %p211 = por %p209, %p210
      %p212 = scmp.ne.s32.totalorder %s203, %s204
      %p213 = scmp.eq.s32.totalorder %s25, 0
      %p214 = por %p212, %p213
      %p215 = scmp.ne.s32.totalorder %s203, %s204
      %p216 = scmp.eq.s32.totalorder %s26, 1
      %p217 = por %p215, %p216
      %p219 = scmp.ne.s32.totalorder %s204, %s218
      %p220 = scmp.eq.s32.totalorder %s26, 0
      %p221 = por %p219, %p220
      %s223 = sadd.s32 %s222, 1
      %p226 = scmp.eq.s32.totalorder %s20, 1
      %p227 = scmp.ne.s32.totalorder %s222, %s224
      %p228 = scmp.eq.s32.totalorder %s20, 0
      %p229 = por %p227, %p228
      %p230 = scmp.ne.s32.totalorder %s222, %s224
      %p231 = scmp.eq.s32.totalorder %s25, 1
      %p232 = por %p230, %p231
      %p233 = scmp.ne.s32.totalorder %s224, %s225
      %p234 = scmp.eq.s32.totalorder %s25, 0
      %p235 = por %p233, %p234
      %p236 = scmp.ne.s32.totalorder %s224, %s225
      %p237 = scmp.eq.s32.totalorder %s26, 1
      %p238 = por %p236, %p237
      %p240 = scmp.ne.s32.totalorder %s225, %s239
      %p241 = scmp.eq.s32.totalorder %s26, 0
      %p242 = por %p240, %p241
      %s244 = sadd.s32 %s243, 1
      %p247 = scmp.eq.s32.totalorder %s20, 1
      %p248 = scmp.ne.s32.totalorder %s243, %s245
      %p249 = scmp.eq.s32.totalorder %s20, 0
      %p250 = por %p248, %p249
      %p251 = scmp.ne.s32.totalorder %s243, %s245
      %p252 = scmp.eq.s32.totalorder %s25, 1
      %p253 = por %p251, %p252
      %p254 = scmp.ne.s32.totalorder %s245, %s246
      %p255 = scmp.eq.s32.totalorder %s25, 0
      %p256 = por %p254, %p255
      %p257 = scmp.ne.s32.totalorder %s245, %s246
      %p258 = scmp.eq.s32.totalorder %s26, 1
      %p259 = por %p257, %p258
      %p261 = scmp.ne.s32.totalorder %s246, %s260
      %p262 = scmp.eq.s32.totalorder %s26, 0
      %p263 = por %p261, %p262
      %s264 = ssub.s32 %s20, %s27
      %p265 = scmp.eq.s32.totalorder %s264, 0
      %s267 = sadd.s32 %s266, 1
      %s268 = scalar_select %p265, %s266, %s267
      %p271 = pneg %p265
      %p272 = scmp.eq.s32.totalorder %s20, 1
      %p273 = por %p271, %p272
      %p274 = scmp.ne.s32.totalorder %s266, %s269
      %p275 = scmp.eq.s32.totalorder %s20, 0
      %p276 = por %p274, %p275
      %p277 = scmp.ne.s32.totalorder %s266, %s269
      %p278 = scmp.eq.s32.totalorder %s25, 1
      %p279 = por %p277, %p278
      %p280 = scmp.ne.s32.totalorder %s269, %s270
      %p281 = scmp.eq.s32.totalorder %s25, 0
      %p282 = por %p280, %p281
      %p283 = scmp.ne.s32.totalorder %s269, %s270
      %p284 = scmp.eq.s32.totalorder %s26, 1
      %p285 = por %p283, %p284
      %p287 = scmp.ne.s32.totalorder %s270, %s286
      %p288 = scmp.eq.s32.totalorder %s26, 0
      %p289 = por %p287, %p288
      %p290 = scmp.le.s32.totalorder 1, %s20
      %p291 = scmp.lt.s32.totalorder %s20, 3
      %p292 = pnand %p290, %p291
      %p293 = pneg %p292
      // Predicated region
      $region9: #{vss_block_forward.1} parent=5 // pred_check
        _
      $region10: #{vss_block_forward.1} parent=5 // pred_check_branch
        %295 = sbr.rel (%p292) target = $region12
      $region11: #{vss_block_forward.1} parent=5 // pred_region
        %s296 = ssub.s32 %s20, 1
        // Predicated region
        $region13: #{vss_block_forward.1} parent=11 // pred_check
          %p297 = pneg %p67
        $region14: #{vss_block_forward.1} parent=11 // pred_check_branch
          %299 = sbr.rel (%p297) target = $region16
        $region15: #{vss_block_forward.1} parent=11 // pred_region
          _
        $region16: #{vss_block_forward.1} parent=11 // pred_fallthru
          _
        // Predicated region
        $region17: #{vss_block_forward.1} parent=11 // pred_check
          %p300 = pneg %p88
        $region18: #{vss_block_forward.1} parent=11 // pred_check_branch
          %302 = sbr.rel (%p300) target = $region20
        $region19: #{vss_block_forward.1} parent=11 // pred_region
          _
        $region20: #{vss_block_forward.1} parent=11 // pred_fallthru
          _
        // Predicated region
        $region21: #{vss_block_forward.1} parent=11 // pred_check
          %p303 = pneg %p109
        $region22: #{vss_block_forward.1} parent=11 // pred_check_branch
          %305 = sbr.rel (%p303) target = $region24
        $region23: #{vss_block_forward.1} parent=11 // pred_region
          _
        $region24: #{vss_block_forward.1} parent=11 // pred_fallthru
          _
        // Predicated region
        $region25: #{vss_block_forward.1} parent=11 // pred_check
          %p306 = pneg %p130
        $region26: #{vss_block_forward.1} parent=11 // pred_check_branch
          %308 = sbr.rel (%p306) target = $region28
        $region27: #{vss_block_forward.1} parent=11 // pred_region
          _
        $region28: #{vss_block_forward.1} parent=11 // pred_fallthru
          _
        // Predicated region
        $region29: #{vss_block_forward.1} parent=11 // pred_check
          %p309 = pneg %p151
        $region30: #{vss_block_forward.1} parent=11 // pred_check_branch
          %311 = sbr.rel (%p309) target = $region32
        $region31: #{vss_block_forward.1} parent=11 // pred_region
          _
        $region32: #{vss_block_forward.1} parent=11 // pred_fallthru
          _
        // Predicated region
        $region33: #{vss_block_forward.1} parent=11 // pred_check
          %p312 = pneg %p172
        $region34: #{vss_block_forward.1} parent=11 // pred_check_branch
          %314 = sbr.rel (%p312) target = $region36
        $region35: #{vss_block_forward.1} parent=11 // pred_region
          _
        $region36: #{vss_block_forward.1} parent=11 // pred_fallthru
          _
        // Predicated region
        $region37: #{vss_block_forward.1} parent=11 // pred_check
          %p315 = pneg %p193
        $region38: #{vss_block_forward.1} parent=11 // pred_check_branch
          %317 = sbr.rel (%p315) target = $region40
        $region39: #{vss_block_forward.1} parent=11 // pred_region
          _
        $region40: #{vss_block_forward.1} parent=11 // pred_fallthru
          _
        // Predicated region
        $region41: #{vss_block_forward.1} parent=11 // pred_check
          %p318 = pneg %p214
        $region42: #{vss_block_forward.1} parent=11 // pred_check_branch
          %320 = sbr.rel (%p318) target = $region44
        $region43: #{vss_block_forward.1} parent=11 // pred_region
          _
        $region44: #{vss_block_forward.1} parent=11 // pred_fallthru
          _
        // Predicated region
        $region45: #{vss_block_forward.1} parent=11 // pred_check
          %p321 = pneg %p235
        $region46: #{vss_block_forward.1} parent=11 // pred_check_branch
          %323 = sbr.rel (%p321) target = $region48
        $region47: #{vss_block_forward.1} parent=11 // pred_region
          _
        $region48: #{vss_block_forward.1} parent=11 // pred_fallthru
          _
        // Predicated region
        $region49: #{vss_block_forward.1} parent=11 // pred_check
          %p324 = pneg %p256
        $region50: #{vss_block_forward.1} parent=11 // pred_check_branch
          %326 = sbr.rel (%p324) target = $region52
        $region51: #{vss_block_forward.1} parent=11 // pred_region
          _
        $region52: #{vss_block_forward.1} parent=11 // pred_fallthru
          _
      $region12: #{vss_block_forward.1} parent=5 // pred_fallthru
        _
      %p327 = scmp.lt.s32.totalorder %s20, 2
      // Predicated region
      $region53: #{vss_block_forward.1} parent=5 // pred_check
        %p328 = pneg %p327
      $region54: #{vss_block_forward.1} parent=5 // pred_check_branch
        %330 = sbr.rel (%p328) target = $region56
      $region55: #{vss_block_forward.1} parent=5 // pred_region
        // Predicated region
        $region57: #{vss_block_forward.1} parent=55 // pred_check
          %p331 = pneg %p40
        $region58: #{vss_block_forward.1} parent=55 // pred_check_branch
          %333 = sbr.rel (%p331) target = $region60
        $region59: #{vss_block_forward.1} parent=55 // pred_region
          %p334 = scmp.lt.s32.totalorder %s20, 1
          %s335 = scalar_select %p334, %s20, 1
          %s336 = smul.addr %s335, 8
          %s337 = smul.addr %s336, 8
          %s338 = scalar_lea.vmem %s0, %s337
        $region60: #{vss_block_forward.1} parent=55 // pred_fallthru
          _
      $region56: #{vss_block_forward.1} parent=5 // pred_fallthru
        _
      %p339 = scmp.le.s32.totalorder 1, %s20
      %p340 = scmp.lt.s32.totalorder %s20, 3
      %p341 = pnand %p339, %p340
      %p342 = pneg %p341
      // Predicated region
      $region61: #{vss_block_forward.1} parent=5 // pred_check
        _
      $region62: #{vss_block_forward.1} parent=5 // pred_check_branch
        %344 = sbr.rel (%p341) target = $region64
      $region63: #{vss_block_forward.1} parent=5 // pred_region
        %s345 = ssub.s32 %s20, 1
        %p346 = scmp.lt.s32.totalorder %s25, 1
        %s347 = scalar_select %p346, %s25, 1
        %s348 = smul.addr %s347, 8
        %s349 = smul.addr %s348, 8
        %s350 = scalar_lea.vmem %s0, %s349
        %p351 = pneg %p46
        %p352 = pneg %p43
        %p353 = pneg %p67
        %p354 = pneg %p64
        %p355 = pneg %p88
        %p356 = pneg %p85
        %p357 = pneg %p109
        %p358 = pneg %p106
        %p359 = pneg %p130
        %p360 = pneg %p127
        %p361 = pneg %p151
        %p362 = pneg %p148
        %p363 = pneg %p172
        %p364 = pneg %p169
        %p365 = pneg %p193
        %p366 = pneg %p190
        %p367 = pneg %p214
        %p368 = pneg %p211
        %p369 = pneg %p235
        %p370 = pneg %p232
        %p371 = pneg %p256
        %p372 = pneg %p253
        %p373 = pneg %p282
        %p374 = pneg %p279
        %s375 = sand.u32 %s269, 1
        %s376 = scalar_lea.sflag [#allocation3], %s375
        %s377 = sand.u32 %s269, 1
        %s378 = smul.addr %s377, 64
        %s379 = scalar_lea.vmem [#allocation2], %s378
        %p380 = scmp.lt.s32.totalorder %s25, 1
        %s381 = scalar_select %p380, %s25, 1
        %s382 = smul.addr %s381, 8
        %s383 = smul.addr %s382, 8
        %s384 = scalar_lea.vmem %s0, %s383
        %v385 = vld [vmem:[%s2] sm:$0xff]
        %v386 = vld [vmem:[%s2 + $0x8] sm:$0xff]
        %v387 = vld [vmem:[%s1] sm:$0xff]
        %v388 = vld [vmem:[%s1 + $0x8] sm:$0xff]
        %v389 = vld [vmem:[%s1 + $0x10] sm:$0xff]
        %v390 = vld [vmem:[%s1 + $0x18] sm:$0xff]
        %v391 = vld [vmem:[%s1 + $0x20] sm:$0xff]
        %v392 = vld [vmem:[%s1 + $0x28] sm:$0xff]
        %v393 = vld [vmem:[%s1 + $0x30] sm:$0xff]
        %v394 = vld [vmem:[%s1 + $0x38] sm:$0xff]
        %v395 = vld [vmem:[%s384] sm:$0xff]
        %v396 = vld [vmem:[%s384 + $0x8] sm:$0xff]
        %v397 = vld [vmem:[%s384 + $0x10] sm:$0xff]
        %v398 = vld [vmem:[%s384 + $0x18] sm:$0xff]
        %v399 = vld [vmem:[%s384 + $0x20] sm:$0xff]
        %v400 = vld [vmem:[%s384 + $0x28] sm:$0xff]
        %v401 = vld [vmem:[%s384 + $0x30] sm:$0xff]
        %v402 = vld [vmem:[%s384 + $0x38] sm:$0xff]
        %vm403 = vcmask 261120
        %v404 = vsel %vm403, %v395, 0.0
        %405 = vadd.xlane.f32.xlu0 %v404
        %v406 = vpop.xlane.xlu0 %405
        %v407 = vsel %vm403, %v396, 0.0
        %408 = vadd.xlane.f32.xlu0 %v407
        %v409 = vpop.xlane.xlu0 %408
        %v410 = vsel %vm403, %v397, 0.0
        %411 = vadd.xlane.f32.xlu0 %v410
        %v412 = vpop.xlane.xlu0 %411
        %v413 = vsel %vm403, %v398, 0.0
        %414 = vadd.xlane.f32.xlu0 %v413
        %v415 = vpop.xlane.xlu0 %414
        %v416 = vsel %vm403, %v399, 0.0
        %417 = vadd.xlane.f32.xlu0 %v416
        %v418 = vpop.xlane.xlu0 %417
        %v419 = vsel %vm403, %v400, 0.0
        %420 = vadd.xlane.f32.xlu0 %v419
        %v421 = vpop.xlane.xlu0 %420
        %v422 = vsel %vm403, %v401, 0.0
        %423 = vadd.xlane.f32.xlu0 %v422
        %v424 = vpop.xlane.xlu0 %423
        %v425 = vsel %vm403, %v402, 0.0
        %426 = vadd.xlane.f32.xlu0 %v425
        %v427 = vpop.xlane.xlu0 %426
        %v428 = vrcp.pop 32.0
        %v429 = vmul.f32 32.0, %v428
        %v430 = vsub.f32 1.0, %v429
        %v431 = vmul.f32 %v428, %v430
        %v432 = vadd.f32 %v428, %v431
        %vm433 = vweird.f32 %v428
        %v434 = vsel %vm433, %v428, %v432
        %v435 = vmul.f32 %v406, %v434
        %v436 = vmul.f32 %v409, %v434
        %v437 = vmul.f32 %v412, %v434
        %v438 = vmul.f32 %v415, %v434
        %v439 = vmul.f32 %v418, %v434
        %v440 = vmul.f32 %v421, %v434
        %v441 = vmul.f32 %v424, %v434
        %v442 = vmul.f32 %v427, %v434
        %v443 = vsub.f32 %v395, %v435
        %v444 = vsub.f32 %v396, %v436
        %v445 = vsub.f32 %v397, %v437
        %v446 = vsub.f32 %v398, %v438
        %v447 = vsub.f32 %v399, %v439
        %v448 = vsub.f32 %v400, %v440
        %v449 = vsub.f32 %v401, %v441
        %v450 = vsub.f32 %v402, %v442
        %v451 = vmul.f32 %v443, %v443
        %v452 = vmul.f32 %v444, %v444
        %v453 = vmul.f32 %v445, %v445
        %v454 = vmul.f32 %v446, %v446
        %v455 = vmul.f32 %v447, %v447
        %v456 = vmul.f32 %v448, %v448
        %v457 = vmul.f32 %v449, %v449
        %v458 = vmul.f32 %v450, %v450
        %v459 = vsel %vm403, %v451, 0.0
        %460 = vadd.xlane.f32.xlu0 %v459
        %v461 = vpop.xlane.xlu0 %460
        %v462 = vsel %vm403, %v452, 0.0
        %463 = vadd.xlane.f32.xlu0 %v462
        %v464 = vpop.xlane.xlu0 %463
        %v465 = vsel %vm403, %v453, 0.0
        %466 = vadd.xlane.f32.xlu0 %v465
        %v467 = vpop.xlane.xlu0 %466
        %v468 = vsel %vm403, %v454, 0.0
        %469 = vadd.xlane.f32.xlu0 %v468
        %v470 = vpop.xlane.xlu0 %469
        %v471 = vsel %vm403, %v455, 0.0
        %472 = vadd.xlane.f32.xlu0 %v471
        %v473 = vpop.xlane.xlu0 %472
        %v474 = vsel %vm403, %v456, 0.0
        %475 = vadd.xlane.f32.xlu0 %v474
        %v476 = vpop.xlane.xlu0 %475
        %v477 = vsel %vm403, %v457, 0.0
        %478 = vadd.xlane.f32.xlu0 %v477
        %v479 = vpop.xlane.xlu0 %478
        %v480 = vsel %vm403, %v458, 0.0
        %481 = vadd.xlane.f32.xlu0 %v480
        %v482 = vpop.xlane.xlu0 %481
        %v483 = vmul.f32 %v461, %v434
        %v484 = vmul.f32 %v464, %v434
        %v485 = vmul.f32 %v467, %v434
        %v486 = vmul.f32 %v470, %v434
        %v487 = vmul.f32 %v473, %v434
        %v488 = vmul.f32 %v476, %v434
        %v489 = vmul.f32 %v479, %v434
        %v490 = vmul.f32 %v482, %v434
        %v491 = vadd.f32 %v483, 1e-06
        %v492 = vadd.f32 %v484, 1e-06
        %v493 = vadd.f32 %v485, 1e-06
        %v494 = vadd.f32 %v486, 1e-06
        %v495 = vadd.f32 %v487, 1e-06
        %v496 = vadd.f32 %v488, 1e-06
        %v497 = vadd.f32 %v489, 1e-06
        %v498 = vadd.f32 %v490, 1e-06
        %v499 = vrsqrt.pop %v491
        %v500 = vmul.f32 %v499, %v491
        %v501 = vmul.f32 %v500, %v499
        %v502 = vmul.f32 0.5, %v501
        %v503 = vsub.f32 1.5, %v502
        %v504 = vmul.f32 %v499, %v503
        %vm505 = vweird.f32 %v491
        %vm506 = vweird.f32 %v499
        %vm507 = vmor %vm505, %vm506
        %v508 = vsel %vm507, %v499, %v504
        %v509 = vrsqrt.pop %v492
        %v510 = vmul.f32 %v509, %v492
        %v511 = vmul.f32 %v510, %v509
        %v512 = vmul.f32 0.5, %v511
        %v513 = vsub.f32 1.5, %v512
        %v514 = vmul.f32 %v509, %v513
        %vm515 = vweird.f32 %v492
        %vm516 = vweird.f32 %v509
        %vm517 = vmor %vm515, %vm516
        %v518 = vsel %vm517, %v509, %v514
        %v519 = vrsqrt.pop %v493
        %v520 = vmul.f32 %v519, %v493
        %v521 = vmul.f32 %v520, %v519
        %v522 = vmul.f32 0.5, %v521
        %v523 = vsub.f32 1.5, %v522
        %v524 = vmul.f32 %v519, %v523
        %vm525 = vweird.f32 %v493
        %vm526 = vweird.f32 %v519
        %vm527 = vmor %vm525, %vm526
        %v528 = vsel %vm527, %v519, %v524
        %v529 = vrsqrt.pop %v494
        %v530 = vmul.f32 %v529, %v494
        %v531 = vmul.f32 %v530, %v529
        %v532 = vmul.f32 0.5, %v531
        %v533 = vsub.f32 1.5, %v532
        %v534 = vmul.f32 %v529, %v533
        %vm535 = vweird.f32 %v494
        %vm536 = vweird.f32 %v529
        %vm537 = vmor %vm535, %vm536
        %v538 = vsel %vm537, %v529, %v534
        %v539 = vrsqrt.pop %v495
        %v540 = vmul.f32 %v539, %v495
        %v541 = vmul.f32 %v540, %v539
        %v542 = vmul.f32 0.5, %v541
        %v543 = vsub.f32 1.5, %v542
        %v544 = vmul.f32 %v539, %v543
        %vm545 = vweird.f32 %v495
        %vm546 = vweird.f32 %v539
        %vm547 = vmor %vm545, %vm546
        %v548 = vsel %vm547, %v539, %v544
        %v549 = vrsqrt.pop %v496
        %v550 = vmul.f32 %v549, %v496
        %v551 = vmul.f32 %v550, %v549
        %v552 = vmul.f32 0.5, %v551
        %v553 = vsub.f32 1.5, %v552
        %v554 = vmul.f32 %v549, %v553
        %vm555 = vweird.f32 %v496
        %vm556 = vweird.f32 %v549
        %vm557 = vmor %vm555, %vm556
        %v558 = vsel %vm557, %v549, %v554
        %v559 = vrsqrt.pop %v497
        %v560 = vmul.f32 %v559, %v497
        %v561 = vmul.f32 %v560, %v559
        %v562 = vmul.f32 0.5, %v561
        %v563 = vsub.f32 1.5, %v562
        %v564 = vmul.f32 %v559, %v563
        %vm565 = vweird.f32 %v497
        %vm566 = vweird.f32 %v559
        %vm567 = vmor %vm565, %vm566
        %v568 = vsel %vm567, %v559, %v564
        %v569 = vrsqrt.pop %v498
        %v570 = vmul.f32 %v569, %v498
        %v571 = vmul.f32 %v570, %v569
        %v572 = vmul.f32 0.5, %v571
        %v573 = vsub.f32 1.5, %v572
        %v574 = vmul.f32 %v569, %v573
        %vm575 = vweird.f32 %v498
        %vm576 = vweird.f32 %v569
        %vm577 = vmor %vm575, %vm576
        %v578 = vsel %vm577, %v569, %v574
        %v579 = vmul.f32 %v443, %v508
        %v580 = vmul.f32 %v444, %v518
        %v581 = vmul.f32 %v445, %v528
        %v582 = vmul.f32 %v446, %v538
        %v583 = vmul.f32 %v447, %v548
        %v584 = vmul.f32 %v448, %v558
        %v585 = vmul.f32 %v449, %v568
        %v586 = vmul.f32 %v450, %v578
        %v587 = vperm.slane %v385, 0
        %v588 = vmul.f32 %v579, %v587
        %v589 = vmul.f32 %v580, %v587
        %v590 = vmul.f32 %v581, %v587
        %v591 = vmul.f32 %v582, %v587
        %v592 = vmul.f32 %v583, %v587
        %v593 = vmul.f32 %v584, %v587
        %v594 = vmul.f32 %v585, %v587
        %v595 = vmul.f32 %v586, %v587
        %v596 = vperm.slane %v385, 1
        %v597 = vadd.f32 %v588, %v596
        %v598 = vadd.f32 %v589, %v596
        %v599 = vadd.f32 %v590, %v596
        %v600 = vadd.f32 %v591, %v596
        %v601 = vadd.f32 %v592, %v596
        %v602 = vadd.f32 %v593, %v596
        %v603 = vadd.f32 %v594, %v596
        %v604 = vadd.f32 %v595, %v596
        %v605 = vld [vmem:[%s3] sm:$0x7]
        %v606 = vld [vmem:[%s3 + $0x4] sm:$0x7]
        %v607 = vld [vmem:[%s3 + $0x8] sm:$0x7]
        %v608 = vperm.slane %v605, 0
        %v609 = vmul.f32 %v608, 0.0
        %v610 = vmul.f32 %v597, %v608
        %v611 = vmul.f32 %v598, %v608
        %v612 = vmul.f32 %v599, %v608
        %v613 = vmul.f32 %v600, %v608
        %v614 = vmul.f32 %v601, %v608
        %v615 = vmul.f32 %v602, %v608
        %v616 = vmul.f32 %v603, %v608
        %618 = vset.pattern.permute.xlu0 0
        %619 = vperm.xlu0 %618, %v387
        %v620 = vpop.permute.xlu0 %619
        %622 = vset.pattern.permute.xlu0 0
        %623 = vperm.xlu0 %622, %v388
        %v624 = vpop.permute.xlu0 %623
        %626 = vset.pattern.permute.xlu0 0
        %627 = vperm.xlu0 %626, %v389
        %v628 = vpop.permute.xlu0 %627
        %630 = vset.pattern.permute.xlu0 0
        %631 = vperm.xlu0 %630, %v390
        %v632 = vpop.permute.xlu0 %631
        %634 = vset.pattern.permute.xlu0 0
        %635 = vperm.xlu0 %634, %v391
        %v636 = vpop.permute.xlu0 %635
        %638 = vset.pattern.permute.xlu0 0
        %639 = vperm.xlu0 %638, %v392
        %v640 = vpop.permute.xlu0 %639
        %642 = vset.pattern.permute.xlu0 0
        %643 = vperm.xlu0 %642, %v393
        %v644 = vpop.permute.xlu0 %643
        %646 = vset.pattern.permute.xlu0 0
        %647 = vperm.xlu0 %646, %v394
        %v648 = vpop.permute.xlu0 %647
        %vm649 = vcmask 1046528
        %v650 = vrot.slane %v620, 1
        %v651 = vrot.slane %v624, 1
        %v652 = vsel %vm649, %v650, %v651
        %v653 = vrot.slane %v628, 1
        %v654 = vsel %vm649, %v651, %v653
        %v655 = vrot.slane %v632, 1
        %v656 = vsel %vm649, %v653, %v655
        %v657 = vrot.slane %v636, 1
        %v658 = vsel %vm649, %v655, %v657
        %v659 = vrot.slane %v640, 1
        %v660 = vsel %vm649, %v657, %v659
        %v661 = vrot.slane %v644, 1
        %v662 = vsel %vm649, %v659, %v661
        %v663 = vrot.slane %v648, 1
        %v664 = vsel %vm649, %v661, %v663
        %v674 = vmul.f32 %v609, %v650
        %v675 = vmul.f32 %v609, %v652
        %v676 = vmul.f32 %v610, %v654
        %v677 = vmul.f32 %v611, %v656
        %v678 = vmul.f32 %v612, %v658
        %v679 = vmul.f32 %v613, %v660
        %v680 = vmul.f32 %v614, %v662
        %v681 = vmul.f32 %v615, %v664
        %v682 = vmul.f32 %v616, %v663
        %v683 = vperm.slane %v605, 1
        %v684 = vmul.f32 %v683, 0.0
        %v685 = vmul.f32 %v597, %v683
        %v686 = vmul.f32 %v598, %v683
        %v687 = vmul.f32 %v599, %v683
        %v688 = vmul.f32 %v600, %v683
        %v689 = vmul.f32 %v601, %v683
        %v690 = vmul.f32 %v602, %v683
        %v691 = vmul.f32 %v603, %v683
        %v700 = vrot.slane %v684, 1
        %v701 = vrot.slane %v685, 1
        %v702 = vsel %vm649, %v700, %v701
        %v703 = vrot.slane %v686, 1
        %v704 = vsel %vm649, %v701, %v703
        %v705 = vrot.slane %v687, 1
        %v706 = vsel %vm649, %v703, %v705
        %v707 = vrot.slane %v688, 1
        %v708 = vsel %vm649, %v705, %v707
        %v709 = vrot.slane %v689, 1
        %v710 = vsel %vm649, %v707, %v709
        %v711 = vrot.slane %v690, 1
        %v712 = vsel %vm649, %v709, %v711
        %v713 = vrot.slane %v691, 1
        %v714 = vsel %vm649, %v711, %v713
        %v724 = vadd.f32 %v674, %v700
        %v725 = vadd.f32 %v675, %v702
        %v726 = vadd.f32 %v676, %v704
        %v727 = vadd.f32 %v677, %v706
        %v728 = vadd.f32 %v678, %v708
        %v729 = vadd.f32 %v679, %v710
        %v730 = vadd.f32 %v680, %v712
        %v731 = vadd.f32 %v681, %v714
        %v732 = vadd.f32 %v682, %v713
        %v733 = vperm.slane %v605, 2
        %v734 = vmul.f32 %v733, 0.0
        %v735 = vmul.f32 %v597, %v733
        %v736 = vmul.f32 %v598, %v733
        %v737 = vmul.f32 %v599, %v733
        %v738 = vmul.f32 %v600, %v733
        %v739 = vmul.f32 %v601, %v733
        %v740 = vmul.f32 %v602, %v733
        %v741 = vmul.f32 %v603, %v733
        %v742 = vmul.f32 %v604, %v733
        %743 = vset.pattern.permute.xlu0 1
        %744 = vperm.xlu0 %743, %v387
        %v745 = vpop.permute.xlu0 %744
        %746 = vset.pattern.permute.xlu0 1
        %747 = vperm.xlu0 %746, %v388
        %v748 = vpop.permute.xlu0 %747
        %749 = vset.pattern.permute.xlu0 1
        %750 = vperm.xlu0 %749, %v389
        %v751 = vpop.permute.xlu0 %750
        %752 = vset.pattern.permute.xlu0 1
        %753 = vperm.xlu0 %752, %v390
        %v754 = vpop.permute.xlu0 %753
        %755 = vset.pattern.permute.xlu0 1
        %756 = vperm.xlu0 %755, %v391
        %v757 = vpop.permute.xlu0 %756
        %758 = vset.pattern.permute.xlu0 1
        %759 = vperm.xlu0 %758, %v392
        %v760 = vpop.permute.xlu0 %759
        %761 = vset.pattern.permute.xlu0 1
        %762 = vperm.xlu0 %761, %v393
        %v763 = vpop.permute.xlu0 %762
        %764 = vset.pattern.permute.xlu0 1
        %765 = vperm.xlu0 %764, %v394
        %v766 = vpop.permute.xlu0 %765
        %vm767 = vcmask 1040384
        %v768 = vrot.slane %v745, 7
        %v769 = vrot.slane %v748, 7
        %v770 = vsel %vm767, %v768, %v769
        %v771 = vrot.slane %v751, 7
        %v772 = vsel %vm767, %v769, %v771
        %v773 = vrot.slane %v754, 7
        %v774 = vsel %vm767, %v771, %v773
        %v775 = vrot.slane %v757, 7
        %v776 = vsel %vm767, %v773, %v775
        %v777 = vrot.slane %v760, 7
        %v778 = vsel %vm767, %v775, %v777
        %v779 = vrot.slane %v763, 7
        %v780 = vsel %vm767, %v777, %v779
        %v781 = vrot.slane %v766, 7
        %v782 = vsel %vm767, %v779, %v781
        %v792 = vmul.f32 %v734, %v768
        %v793 = vmul.f32 %v735, %v770
        %v794 = vmul.f32 %v736, %v772
        %v795 = vmul.f32 %v737, %v774
        %v796 = vmul.f32 %v738, %v776
        %v797 = vmul.f32 %v739, %v778
        %v798 = vmul.f32 %v740, %v780
        %v799 = vmul.f32 %v741, %v782
        %v800 = vmul.f32 %v742, %v781
        %vm810 = vcmask 1045504
        %v811 = vrot.slane %v792, 2
        %v812 = vrot.slane %v793, 2
        %v813 = vsel %vm810, %v811, %v812
        %v814 = vrot.slane %v794, 2
        %v815 = vsel %vm810, %v812, %v814
        %v816 = vrot.slane %v795, 2
        %v817 = vsel %vm810, %v814, %v816
        %v818 = vrot.slane %v796, 2
        %v819 = vsel %vm810, %v816, %v818
        %v820 = vrot.slane %v797, 2
        %v821 = vsel %vm810, %v818, %v820
        %v822 = vrot.slane %v798, 2
        %v823 = vsel %vm810, %v820, %v822
        %v824 = vrot.slane %v799, 2
        %v825 = vsel %vm810, %v822, %v824
        %v826 = vrot.slane %v800, 2
        %v827 = vsel %vm810, %v824, %v826
        %v837 = vadd.f32 %v724, %v811
        %v838 = vadd.f32 %v725, %v813
        %v839 = vadd.f32 %v726, %v815
        %v840 = vadd.f32 %v727, %v817
        %v841 = vadd.f32 %v728, %v819
        %v842 = vadd.f32 %v729, %v821
        %v843 = vadd.f32 %v730, %v823
        %v844 = vadd.f32 %v731, %v825
        %v845 = vadd.f32 %v732, %v827
        %v846 = vperm.slane %v606, 0
        %v847 = vmul.f32 %v846, 0.0
        %v848 = vmul.f32 %v597, %v846
        %v849 = vmul.f32 %v598, %v846
        %v850 = vmul.f32 %v599, %v846
        %v851 = vmul.f32 %v600, %v846
        %v852 = vmul.f32 %v601, %v846
        %v853 = vmul.f32 %v602, %v846
        %v854 = vmul.f32 %v603, %v846
        %v855 = vmul.f32 %v604, %v846
        %v856 = vmul.f32 %v847, %v650
        %v857 = vmul.f32 %v848, %v652
        %v858 = vmul.f32 %v849, %v654
        %v859 = vmul.f32 %v850, %v656
        %v860 = vmul.f32 %v851, %v658
        %v861 = vmul.f32 %v852, %v660
        %v862 = vmul.f32 %v853, %v662
        %v863 = vmul.f32 %v854, %v664
        %v864 = vmul.f32 %v855, %v663
        %v865 = vadd.f32 %v837, %v856
        %v866 = vadd.f32 %v838, %v857
        %v867 = vadd.f32 %v839, %v858
        %v868 = vadd.f32 %v840, %v859
        %v869 = vadd.f32 %v841, %v860
        %v870 = vadd.f32 %v842, %v861
        %v871 = vadd.f32 %v843, %v862
        %v872 = vadd.f32 %v844, %v863
        %v873 = vadd.f32 %v845, %v864
        %v874 = vperm.slane %v606, 1
        %v875 = vmul.f32 %v597, %v874
        %v876 = vmul.f32 %v598, %v874
        %v877 = vmul.f32 %v599, %v874
        %v878 = vmul.f32 %v600, %v874
        %v879 = vmul.f32 %v601, %v874
        %v880 = vmul.f32 %v602, %v874
        %v881 = vmul.f32 %v603, %v874
        %v882 = vmul.f32 %v604, %v874
        %v891 = vrot.slane %v875, 1
        %v892 = vrot.slane %v876, 1
        %v893 = vsel %vm649, %v891, %v892
        %v894 = vrot.slane %v877, 1
        %v895 = vsel %vm649, %v892, %v894
        %v896 = vrot.slane %v878, 1
        %v897 = vsel %vm649, %v894, %v896
        %v898 = vrot.slane %v879, 1
        %v899 = vsel %vm649, %v896, %v898
        %v900 = vrot.slane %v880, 1
        %v901 = vsel %vm649, %v898, %v900
        %v902 = vrot.slane %v881, 1
        %v903 = vsel %vm649, %v900, %v902
        %v904 = vrot.slane %v882, 1
        %v905 = vsel %vm649, %v902, %v904
        %v915 = vadd.f32 %v865, %v891
        %v916 = vadd.f32 %v866, %v893
        %v917 = vadd.f32 %v867, %v895
        %v918 = vadd.f32 %v868, %v897
        %v919 = vadd.f32 %v869, %v899
        %v920 = vadd.f32 %v870, %v901
        %v921 = vadd.f32 %v871, %v903
        %v922 = vadd.f32 %v872, %v905
        %v923 = vadd.f32 %v873, %v904
        %v924 = vperm.slane %v606, 2
        %v925 = vmul.f32 %v597, %v924
        %v926 = vmul.f32 %v598, %v924
        %v927 = vmul.f32 %v599, %v924
        %v928 = vmul.f32 %v600, %v924
        %v929 = vmul.f32 %v601, %v924
        %v930 = vmul.f32 %v602, %v924
        %v931 = vmul.f32 %v603, %v924
        %v932 = vmul.f32 %v604, %v924
        %v933 = vmul.f32 %v924, 0.0
        %v934 = vmul.f32 %v925, %v768
        %v935 = vmul.f32 %v926, %v770
        %v936 = vmul.f32 %v927, %v772
        %v937 = vmul.f32 %v928, %v774
        %v938 = vmul.f32 %v929, %v776
        %v939 = vmul.f32 %v930, %v778
        %v940 = vmul.f32 %v931, %v780
        %v941 = vmul.f32 %v932, %v782
        %v942 = vmul.f32 %v933, %v781
        %v952 = vrot.slane %v934, 2
        %v953 = vrot.slane %v935, 2
        %v954 = vsel %vm810, %v952, %v953
        %v955 = vrot.slane %v936, 2
        %v956 = vsel %vm810, %v953, %v955
        %v957 = vrot.slane %v937, 2
        %v958 = vsel %vm810, %v955, %v957
        %v959 = vrot.slane %v938, 2
        %v960 = vsel %vm810, %v957, %v959
        %v961 = vrot.slane %v939, 2
        %v962 = vsel %vm810, %v959, %v961
        %v963 = vrot.slane %v940, 2
        %v964 = vsel %vm810, %v961, %v963
        %v965 = vrot.slane %v941, 2
        %v966 = vsel %vm810, %v963, %v965
        %v967 = vrot.slane %v942, 2
        %v968 = vsel %vm810, %v965, %v967
        %v978 = vadd.f32 %v915, %v952
        %v979 = vadd.f32 %v916, %v954
        %v980 = vadd.f32 %v917, %v956
        %v981 = vadd.f32 %v918, %v958
        %v982 = vadd.f32 %v919, %v960
        %v983 = vadd.f32 %v920, %v962
        %v984 = vadd.f32 %v921, %v964
        %v985 = vadd.f32 %v922, %v966
        %v986 = vadd.f32 %v923, %v968
        %v987 = vperm.slane %v607, 0
        %v988 = vmul.f32 %v597, %v987
        %v989 = vmul.f32 %v598, %v987
        %v990 = vmul.f32 %v599, %v987
        %v991 = vmul.f32 %v600, %v987
        %v992 = vmul.f32 %v601, %v987
        %v993 = vmul.f32 %v602, %v987
        %v994 = vmul.f32 %v603, %v987
        %v995 = vmul.f32 %v604, %v987
        %v996 = vmul.f32 %v987, 0.0
        %v997 = vmul.f32 %v988, %v650
        %v998 = vmul.f32 %v989, %v652
        %v999 = vmul.f32 %v990, %v654
        %v1000 = vmul.f32 %v991, %v656
        %v1001 = vmul.f32 %v992, %v658
        %v1002 = vmul.f32 %v993, %v660
        %v1003 = vmul.f32 %v994, %v662
        %v1004 = vmul.f32 %v995, %v664
        %v1005 = vmul.f32 %v996, %v663
        %v1006 = vadd.f32 %v978, %v997
        %v1007 = vadd.f32 %v979, %v998
        %v1008 = vadd.f32 %v980, %v999
        %v1009 = vadd.f32 %v981, %v1000
        %v1010 = vadd.f32 %v982, %v1001
        %v1011 = vadd.f32 %v983, %v1002
        %v1012 = vadd.f32 %v984, %v1003
        %v1013 = vadd.f32 %v985, %v1004
        %v1014 = vadd.f32 %v986, %v1005
        %v1015 = vperm.slane %v607, 1
        %v1016 = vmul.f32 %v598, %v1015
        %v1017 = vmul.f32 %v599, %v1015
        %v1018 = vmul.f32 %v600, %v1015
        %v1019 = vmul.f32 %v601, %v1015
        %v1020 = vmul.f32 %v602, %v1015
        %v1021 = vmul.f32 %v603, %v1015
        %v1022 = vmul.f32 %v604, %v1015
        %v1023 = vmul.f32 %v1015, 0.0
        %v1032 = vrot.slane %v1016, 1
        %v1033 = vrot.slane %v1017, 1
        %v1034 = vsel %vm649, %v1032, %v1033
        %v1035 = vrot.slane %v1018, 1
        %v1036 = vsel %vm649, %v1033, %v1035
        %v1037 = vrot.slane %v1019, 1
        %v1038 = vsel %vm649, %v1035, %v1037
        %v1039 = vrot.slane %v1020, 1
        %v1040 = vsel %vm649, %v1037, %v1039
        %v1041 = vrot.slane %v1021, 1
        %v1042 = vsel %vm649, %v1039, %v1041
        %v1043 = vrot.slane %v1022, 1
        %v1044 = vsel %vm649, %v1041, %v1043
        %v1045 = vrot.slane %v1023, 1
        %v1046 = vsel %vm649, %v1043, %v1045
        %v1056 = vadd.f32 %v1006, %v1032
        %v1057 = vadd.f32 %v1007, %v1034
        %v1058 = vadd.f32 %v1008, %v1036
        %v1059 = vadd.f32 %v1009, %v1038
        %v1060 = vadd.f32 %v1010, %v1040
        %v1061 = vadd.f32 %v1011, %v1042
        %v1062 = vadd.f32 %v1012, %v1044
        %v1063 = vadd.f32 %v1013, %v1046
        %v1064 = vadd.f32 %v1014, %v1045
        %v1065 = vperm.slane %v607, 2
        %v1066 = vmul.f32 %v598, %v1065
        %v1067 = vmul.f32 %v599, %v1065
        %v1068 = vmul.f32 %v600, %v1065
        %v1069 = vmul.f32 %v601, %v1065
        %v1070 = vmul.f32 %v602, %v1065
        %v1071 = vmul.f32 %v603, %v1065
        %v1072 = vmul.f32 %v604, %v1065
        %v1073 = vmul.f32 %v1065, 0.0
        %v1074 = vmul.f32 %v1066, %v768
        %v1075 = vmul.f32 %v1067, %v770
        %v1076 = vmul.f32 %v1068, %v772
        %v1077 = vmul.f32 %v1069, %v774
        %v1078 = vmul.f32 %v1070, %v776
        %v1079 = vmul.f32 %v1071, %v778
        %v1080 = vmul.f32 %v1072, %v780
        %v1081 = vmul.f32 %v1073, %v782
        %v1082 = vmul.f32 %v1073, %v781
        %v1092 = vrot.slane %v1074, 2
        %v1093 = vrot.slane %v1075, 2
        %v1094 = vsel %vm810, %v1092, %v1093
        %v1095 = vrot.slane %v1076, 2
        %v1096 = vsel %vm810, %v1093, %v1095
        %v1097 = vrot.slane %v1077, 2
        %v1098 = vsel %vm810, %v1095, %v1097
        %v1099 = vrot.slane %v1078, 2
        %v1100 = vsel %vm810, %v1097, %v1099
        %v1101 = vrot.slane %v1079, 2
        %v1102 = vsel %vm810, %v1099, %v1101
        %v1103 = vrot.slane %v1080, 2
        %v1104 = vsel %vm810, %v1101, %v1103
        %v1105 = vrot.slane %v1081, 2
        %v1106 = vsel %vm810, %v1103, %v1105
        %v1107 = vrot.slane %v1082, 2
        %v1108 = vsel %vm810, %v1105, %v1107
        %v1118 = vadd.f32 %v1056, %v1092
        %v1119 = vadd.f32 %v1057, %v1094
        %v1120 = vadd.f32 %v1058, %v1096
        %v1121 = vadd.f32 %v1059, %v1098
        %v1122 = vadd.f32 %v1060, %v1100
        %v1123 = vadd.f32 %v1061, %v1102
        %v1124 = vadd.f32 %v1062, %v1104
        %v1125 = vadd.f32 %v1063, %v1106
        %v1126 = vadd.f32 %v1064, %v1108
        %v1127 = vperm.slane %v385, 2
        %v1128 = vadd.f32 %v1118, %v1127
        %v1129 = vadd.f32 %v1119, %v1127
        %v1130 = vadd.f32 %v1120, %v1127
        %v1131 = vadd.f32 %v1121, %v1127
        %v1132 = vadd.f32 %v1122, %v1127
        %v1133 = vadd.f32 %v1123, %v1127
        %v1134 = vadd.f32 %v1124, %v1127
        %v1135 = vadd.f32 %v1125, %v1127
        %v1136 = vadd.f32 %v1126, %v1127
        %v1137 = vmul.f32 %v1128, 0.5
        %v1138 = vmul.f32 %v1129, 0.5
        %v1139 = vmul.f32 %v1130, 0.5
        %v1140 = vmul.f32 %v1131, 0.5
        %v1141 = vmul.f32 %v1132, 0.5
        %v1142 = vmul.f32 %v1133, 0.5
        %v1143 = vmul.f32 %v1134, 0.5
        %v1144 = vmul.f32 %v1135, 0.5
        %v1145 = vmul.f32 %v1136, 0.5
        %v1146 = vmul.f32 %v1128, 0.70710677
        %v1147 = vmul.f32 %v1129, 0.70710677
        %v1148 = vmul.f32 %v1130, 0.70710677
        %v1149 = vmul.f32 %v1131, 0.70710677
        %v1150 = vmul.f32 %v1132, 0.70710677
        %v1151 = vmul.f32 %v1133, 0.70710677
        %v1152 = vmul.f32 %v1134, 0.70710677
        %v1153 = vmul.f32 %v1135, 0.70710677
        %v1154 = vmul.f32 %v1136, 0.70710677
        %v1155 = vmul.f32 %v1146, %v1146
        %v1156 = vmin.f32 16.0, %v1155
        %v1157 = vmul.f32 %v1156, 2.1237322e-06
        %v1158 = vadd.f32 %v1157, 0.00028619796
        %v1159 = vmul.f32 %v1156, %v1158
        %v1160 = vadd.f32 %v1159, 0.0036580483
        %v1161 = vmul.f32 %v1156, %v1160
        %v1162 = vadd.f32 %v1161, 0.05243302
        %v1163 = vmul.f32 %v1156, %v1162
        %v1164 = vadd.f32 %v1163, 0.18741608
        %v1165 = vmul.f32 %v1156, %v1164
        %v1166 = vadd.f32 %v1165, 1.1283791
        %v1167 = vmul.f32 %v1146, %v1166
        %v1168 = vmul.f32 %v1156, 3.8918573e-05
        %v1169 = vadd.f32 %v1168, 0.001143296
        %v1170 = vmul.f32 %v1156, %v1169
        %v1171 = vadd.f32 %v1170, 0.014752088
        %v1172 = vmul.f32 %v1156, %v1171
        %v1173 = vadd.f32 %v1172, 0.112945676
        %v1174 = vmul.f32 %v1156, %v1173
        %v1175 = vadd.f32 %v1174, 0.4994258
        %v1176 = vmul.f32 %v1156, %v1175
        %v1177 = vadd.f32 %v1176, 1.0
        %v1178 = vrcp.pop %v1177
        %v1179 = vmul.f32 %v1177, %v1178
        %v1180 = vsub.f32 1.0, %v1179
        %v1181 = vmul.f32 %v1178, %v1180
        %v1182 = vadd.f32 %v1178, %v1181
        %vm1183 = vweird.f32 %v1177
        %vm1184 = vweird.f32 %v1178
        %vm1185 = vmor %vm1183, %vm1184
        %v1186 = vsel %vm1185, %v1178, %v1182
        %v1187 = vand.u32 2147483647, %v1177
        %vm1188 = vcmp.eq.f32.partialorder %v1187, 8.507059e+37
        %v1189 = vand.u32 %v1177, 2147483648
        %v1190 = vor.u32 1.1754944e-38, %v1189
        %v1191 = vsel %vm1188, %v1190, %v1186
        %v1192 = vmul.f32 %v1167, %v1191
        %v1193 = vmin.f32 %v1192, 1.0
        %v1194 = vmax.f32 %v1193, -1.0
        %v1195 = vmul.f32 %v1147, %v1147
        %v1196 = vmin.f32 16.0, %v1195
        %v1197 = vmul.f32 %v1196, 2.1237322e-06
        %v1198 = vadd.f32 %v1197, 0.00028619796
        %v1199 = vmul.f32 %v1196, %v1198
        %v1200 = vadd.f32 %v1199, 0.0036580483
        %v1201 = vmul.f32 %v1196, %v1200
        %v1202 = vadd.f32 %v1201, 0.05243302
        %v1203 = vmul.f32 %v1196, %v1202
        %v1204 = vadd.f32 %v1203, 0.18741608
        %v1205 = vmul.f32 %v1196, %v1204
        %v1206 = vadd.f32 %v1205, 1.1283791
        %v1207 = vmul.f32 %v1147, %v1206
        %v1208 = vmul.f32 %v1196, 3.8918573e-05
        %v1209 = vadd.f32 %v1208, 0.001143296
        %v1210 = vmul.f32 %v1196, %v1209
        %v1211 = vadd.f32 %v1210, 0.014752088
        %v1212 = vmul.f32 %v1196, %v1211
        %v1213 = vadd.f32 %v1212, 0.112945676
        %v1214 = vmul.f32 %v1196, %v1213
        %v1215 = vadd.f32 %v1214, 0.4994258
        %v1216 = vmul.f32 %v1196, %v1215
        %v1217 = vadd.f32 %v1216, 1.0
        %v1218 = vrcp.pop %v1217
        %v1219 = vmul.f32 %v1217, %v1218
        %v1220 = vsub.f32 1.0, %v1219
        %v1221 = vmul.f32 %v1218, %v1220
        %v1222 = vadd.f32 %v1218, %v1221
        %vm1223 = vweird.f32 %v1217
        %vm1224 = vweird.f32 %v1218
        %vm1225 = vmor %vm1223, %vm1224
        %v1226 = vsel %vm1225, %v1218, %v1222
        %v1227 = vand.u32 2147483647, %v1217
        %vm1228 = vcmp.eq.f32.partialorder %v1227, 8.507059e+37
        %v1229 = vand.u32 %v1217, 2147483648
        %v1230 = vor.u32 1.1754944e-38, %v1229
        %v1231 = vsel %vm1228, %v1230, %v1226
        %v1232 = vmul.f32 %v1207, %v1231
        %v1233 = vmin.f32 %v1232, 1.0
        %v1234 = vmax.f32 %v1233, -1.0
        %v1235 = vmul.f32 %v1148, %v1148
        %v1236 = vmin.f32 16.0, %v1235
        %v1237 = vmul.f32 %v1236, 2.1237322e-06
        %v1238 = vadd.f32 %v1237, 0.00028619796
        %v1239 = vmul.f32 %v1236, %v1238
        %v1240 = vadd.f32 %v1239, 0.0036580483
        %v1241 = vmul.f32 %v1236, %v1240
        %v1242 = vadd.f32 %v1241, 0.05243302
        %v1243 = vmul.f32 %v1236, %v1242
        %v1244 = vadd.f32 %v1243, 0.18741608
        %v1245 = vmul.f32 %v1236, %v1244
        %v1246 = vadd.f32 %v1245, 1.1283791
        %v1247 = vmul.f32 %v1148, %v1246
        %v1248 = vmul.f32 %v1236, 3.8918573e-05
        %v1249 = vadd.f32 %v1248, 0.001143296
        %v1250 = vmul.f32 %v1236, %v1249
        %v1251 = vadd.f32 %v1250, 0.014752088
        %v1252 = vmul.f32 %v1236, %v1251
        %v1253 = vadd.f32 %v1252, 0.112945676
        %v1254 = vmul.f32 %v1236, %v1253
        %v1255 = vadd.f32 %v1254, 0.4994258
        %v1256 = vmul.f32 %v1236, %v1255
        %v1257 = vadd.f32 %v1256, 1.0
        %v1258 = vrcp.pop %v1257
        %v1259 = vmul.f32 %v1257, %v1258
        %v1260 = vsub.f32 1.0, %v1259
        %v1261 = vmul.f32 %v1258, %v1260
        %v1262 = vadd.f32 %v1258, %v1261
        %vm1263 = vweird.f32 %v1257
        %vm1264 = vweird.f32 %v1258
        %vm1265 = vmor %vm1263, %vm1264
        %v1266 = vsel %vm1265, %v1258, %v1262
        %v1267 = vand.u32 2147483647, %v1257
        %vm1268 = vcmp.eq.f32.partialorder %v1267, 8.507059e+37
        %v1269 = vand.u32 %v1257, 2147483648
        %v1270 = vor.u32 1.1754944e-38, %v1269
        %v1271 = vsel %vm1268, %v1270, %v1266
        %v1272 = vmul.f32 %v1247, %v1271
        %v1273 = vmin.f32 %v1272, 1.0
        %v1274 = vmax.f32 %v1273, -1.0
        %v1275 = vmul.f32 %v1149, %v1149
        %v1276 = vmin.f32 16.0, %v1275
        %v1277 = vmul.f32 %v1276, 2.1237322e-06
        %v1278 = vadd.f32 %v1277, 0.00028619796
        %v1279 = vmul.f32 %v1276, %v1278
        %v1280 = vadd.f32 %v1279, 0.0036580483
        %v1281 = vmul.f32 %v1276, %v1280
        %v1282 = vadd.f32 %v1281, 0.05243302
        %v1283 = vmul.f32 %v1276, %v1282
        %v1284 = vadd.f32 %v1283, 0.18741608
        %v1285 = vmul.f32 %v1276, %v1284
        %v1286 = vadd.f32 %v1285, 1.1283791
        %v1287 = vmul.f32 %v1149, %v1286
        %v1288 = vmul.f32 %v1276, 3.8918573e-05
        %v1289 = vadd.f32 %v1288, 0.001143296
        %v1290 = vmul.f32 %v1276, %v1289
        %v1291 = vadd.f32 %v1290, 0.014752088
        %v1292 = vmul.f32 %v1276, %v1291
        %v1293 = vadd.f32 %v1292, 0.112945676
        %v1294 = vmul.f32 %v1276, %v1293
        %v1295 = vadd.f32 %v1294, 0.4994258
        %v1296 = vmul.f32 %v1276, %v1295
        %v1297 = vadd.f32 %v1296, 1.0
        %v1298 = vrcp.pop %v1297
        %v1299 = vmul.f32 %v1297, %v1298
        %v1300 = vsub.f32 1.0, %v1299
        %v1301 = vmul.f32 %v1298, %v1300
        %v1302 = vadd.f32 %v1298, %v1301
        %vm1303 = vweird.f32 %v1297
        %vm1304 = vweird.f32 %v1298
        %vm1305 = vmor %vm1303, %vm1304
        %v1306 = vsel %vm1305, %v1298, %v1302
        %v1307 = vand.u32 2147483647, %v1297
        %vm1308 = vcmp.eq.f32.partialorder %v1307, 8.507059e+37
        %v1309 = vand.u32 %v1297, 2147483648
        %v1310 = vor.u32 1.1754944e-38, %v1309
        %v1311 = vsel %vm1308, %v1310, %v1306
        %v1312 = vmul.f32 %v1287, %v1311
        %v1313 = vmin.f32 %v1312, 1.0
        %v1314 = vmax.f32 %v1313, -1.0
        %v1315 = vmul.f32 %v1150, %v1150
        %v1316 = vmin.f32 16.0, %v1315
        %v1317 = vmul.f32 %v1316, 2.1237322e-06
        %v1318 = vadd.f32 %v1317, 0.00028619796
        %v1319 = vmul.f32 %v1316, %v1318
        %v1320 = vadd.f32 %v1319, 0.0036580483
        %v1321 = vmul.f32 %v1316, %v1320
        %v1322 = vadd.f32 %v1321, 0.05243302
        %v1323 = vmul.f32 %v1316, %v1322
        %v1324 = vadd.f32 %v1323, 0.18741608
        %v1325 = vmul.f32 %v1316, %v1324
        %v1326 = vadd.f32 %v1325, 1.1283791
        %v1327 = vmul.f32 %v1150, %v1326
        %v1328 = vmul.f32 %v1316, 3.8918573e-05
        %v1329 = vadd.f32 %v1328, 0.001143296
        %v1330 = vmul.f32 %v1316, %v1329
        %v1331 = vadd.f32 %v1330, 0.014752088
        %v1332 = vmul.f32 %v1316, %v1331
        %v1333 = vadd.f32 %v1332, 0.112945676
        %v1334 = vmul.f32 %v1316, %v1333
        %v1335 = vadd.f32 %v1334, 0.4994258
        %v1336 = vmul.f32 %v1316, %v1335
        %v1337 = vadd.f32 %v1336, 1.0
        %v1338 = vrcp.pop %v1337
        %v1339 = vmul.f32 %v1337, %v1338
        %v1340 = vsub.f32 1.0, %v1339
        %v1341 = vmul.f32 %v1338, %v1340
        %v1342 = vadd.f32 %v1338, %v1341
        %vm1343 = vweird.f32 %v1337
        %vm1344 = vweird.f32 %v1338
        %vm1345 = vmor %vm1343, %vm1344
        %v1346 = vsel %vm1345, %v1338, %v1342
        %v1347 = vand.u32 2147483647, %v1337
        %vm1348 = vcmp.eq.f32.partialorder %v1347, 8.507059e+37
        %v1349 = vand.u32 %v1337, 2147483648
        %v1350 = vor.u32 1.1754944e-38, %v1349
        %v1351 = vsel %vm1348, %v1350, %v1346
        %v1352 = vmul.f32 %v1327, %v1351
        %v1353 = vmin.f32 %v1352, 1.0
        %v1354 = vmax.f32 %v1353, -1.0
        %v1355 = vmul.f32 %v1151, %v1151
        %v1356 = vmin.f32 16.0, %v1355
        %v1357 = vmul.f32 %v1356, 2.1237322e-06
        %v1358 = vadd.f32 %v1357, 0.00028619796
        %v1359 = vmul.f32 %v1356, %v1358
        %v1360 = vadd.f32 %v1359, 0.0036580483
        %v1361 = vmul.f32 %v1356, %v1360
        %v1362 = vadd.f32 %v1361, 0.05243302
        %v1363 = vmul.f32 %v1356, %v1362
        %v1364 = vadd.f32 %v1363, 0.18741608
        %v1365 = vmul.f32 %v1356, %v1364
        %v1366 = vadd.f32 %v1365, 1.1283791
        %v1367 = vmul.f32 %v1151, %v1366
        %v1368 = vmul.f32 %v1356, 3.8918573e-05
        %v1369 = vadd.f32 %v1368, 0.001143296
        %v1370 = vmul.f32 %v1356, %v1369
        %v1371 = vadd.f32 %v1370, 0.014752088
        %v1372 = vmul.f32 %v1356, %v1371
        %v1373 = vadd.f32 %v1372, 0.112945676
        %v1374 = vmul.f32 %v1356, %v1373
        %v1375 = vadd.f32 %v1374, 0.4994258
        %v1376 = vmul.f32 %v1356, %v1375
        %v1377 = vadd.f32 %v1376, 1.0
        %v1378 = vrcp.pop %v1377
        %v1379 = vmul.f32 %v1377, %v1378
        %v1380 = vsub.f32 1.0, %v1379
        %v1381 = vmul.f32 %v1378, %v1380
        %v1382 = vadd.f32 %v1378, %v1381
        %vm1383 = vweird.f32 %v1377
        %vm1384 = vweird.f32 %v1378
        %vm1385 = vmor %vm1383, %vm1384
        %v1386 = vsel %vm1385, %v1378, %v1382
        %v1387 = vand.u32 2147483647, %v1377
        %vm1388 = vcmp.eq.f32.partialorder %v1387, 8.507059e+37
        %v1389 = vand.u32 %v1377, 2147483648
        %v1390 = vor.u32 1.1754944e-38, %v1389
        %v1391 = vsel %vm1388, %v1390, %v1386
        %v1392 = vmul.f32 %v1367, %v1391
        %v1393 = vmin.f32 %v1392, 1.0
        %v1394 = vmax.f32 %v1393, -1.0
        %v1395 = vmul.f32 %v1152, %v1152
        %v1396 = vmin.f32 16.0, %v1395
        %v1397 = vmul.f32 %v1396, 2.1237322e-06
        %v1398 = vadd.f32 %v1397, 0.00028619796
        %v1399 = vmul.f32 %v1396, %v1398
        %v1400 = vadd.f32 %v1399, 0.0036580483
        %v1401 = vmul.f32 %v1396, %v1400
        %v1402 = vadd.f32 %v1401, 0.05243302
        %v1403 = vmul.f32 %v1396, %v1402
        %v1404 = vadd.f32 %v1403, 0.18741608
        %v1405 = vmul.f32 %v1396, %v1404
        %v1406 = vadd.f32 %v1405, 1.1283791
        %v1407 = vmul.f32 %v1152, %v1406
        %v1408 = vmul.f32 %v1396, 3.8918573e-05
        %v1409 = vadd.f32 %v1408, 0.001143296
        %v1410 = vmul.f32 %v1396, %v1409
        %v1411 = vadd.f32 %v1410, 0.014752088
        %v1412 = vmul.f32 %v1396, %v1411
        %v1413 = vadd.f32 %v1412, 0.112945676
        %v1414 = vmul.f32 %v1396, %v1413
        %v1415 = vadd.f32 %v1414, 0.4994258
        %v1416 = vmul.f32 %v1396, %v1415
        %v1417 = vadd.f32 %v1416, 1.0
        %v1418 = vrcp.pop %v1417
        %v1419 = vmul.f32 %v1417, %v1418
        %v1420 = vsub.f32 1.0, %v1419
        %v1421 = vmul.f32 %v1418, %v1420
        %v1422 = vadd.f32 %v1418, %v1421
        %vm1423 = vweird.f32 %v1417
        %vm1424 = vweird.f32 %v1418
        %vm1425 = vmor %vm1423, %vm1424
        %v1426 = vsel %vm1425, %v1418, %v1422
        %v1427 = vand.u32 2147483647, %v1417
        %vm1428 = vcmp.eq.f32.partialorder %v1427, 8.507059e+37
        %v1429 = vand.u32 %v1417, 2147483648
        %v1430 = vor.u32 1.1754944e-38, %v1429
        %v1431 = vsel %vm1428, %v1430, %v1426
        %v1432 = vmul.f32 %v1407, %v1431
        %v1433 = vmin.f32 %v1432, 1.0
        %v1434 = vmax.f32 %v1433, -1.0
        %v1435 = vmul.f32 %v1153, %v1153
        %v1436 = vmin.f32 16.0, %v1435
        %v1437 = vmul.f32 %v1436, 2.1237322e-06
        %v1438 = vadd.f32 %v1437, 0.00028619796
        %v1439 = vmul.f32 %v1436, %v1438
        %v1440 = vadd.f32 %v1439, 0.0036580483
        %v1441 = vmul.f32 %v1436, %v1440
        %v1442 = vadd.f32 %v1441, 0.05243302
        %v1443 = vmul.f32 %v1436, %v1442
        %v1444 = vadd.f32 %v1443, 0.18741608
        %v1445 = vmul.f32 %v1436, %v1444
        %v1446 = vadd.f32 %v1445, 1.1283791
        %v1447 = vmul.f32 %v1153, %v1446
        %v1448 = vmul.f32 %v1436, 3.8918573e-05
        %v1449 = vadd.f32 %v1448, 0.001143296
        %v1450 = vmul.f32 %v1436, %v1449
        %v1451 = vadd.f32 %v1450, 0.014752088
        %v1452 = vmul.f32 %v1436, %v1451
        %v1453 = vadd.f32 %v1452, 0.112945676
        %v1454 = vmul.f32 %v1436, %v1453
        %v1455 = vadd.f32 %v1454, 0.4994258
        %v1456 = vmul.f32 %v1436, %v1455
        %v1457 = vadd.f32 %v1456, 1.0
        %v1458 = vrcp.pop %v1457
        %v1459 = vmul.f32 %v1457, %v1458
        %v1460 = vsub.f32 1.0, %v1459
        %v1461 = vmul.f32 %v1458, %v1460
        %v1462 = vadd.f32 %v1458, %v1461
        %vm1463 = vweird.f32 %v1457
        %vm1464 = vweird.f32 %v1458
        %vm1465 = vmor %vm1463, %vm1464
        %v1466 = vsel %vm1465, %v1458, %v1462
        %v1467 = vand.u32 2147483647, %v1457
        %vm1468 = vcmp.eq.f32.partialorder %v1467, 8.507059e+37
        %v1469 = vand.u32 %v1457, 2147483648
        %v1470 = vor.u32 1.1754944e-38, %v1469
        %v1471 = vsel %vm1468, %v1470, %v1466
        %v1472 = vmul.f32 %v1447, %v1471
        %v1473 = vmin.f32 %v1472, 1.0
        %v1474 = vmax.f32 %v1473, -1.0
        %v1475 = vmul.f32 %v1154, %v1154
        %v1476 = vmin.f32 16.0, %v1475
        %v1477 = vmul.f32 %v1476, 2.1237322e-06
        %v1478 = vadd.f32 %v1477, 0.00028619796
        %v1479 = vmul.f32 %v1476, %v1478
        %v1480 = vadd.f32 %v1479, 0.0036580483
        %v1481 = vmul.f32 %v1476, %v1480
        %v1482 = vadd.f32 %v1481, 0.05243302
        %v1483 = vmul.f32 %v1476, %v1482
        %v1484 = vadd.f32 %v1483, 0.18741608
        %v1485 = vmul.f32 %v1476, %v1484
        %v1486 = vadd.f32 %v1485, 1.1283791
        %v1487 = vmul.f32 %v1154, %v1486
        %v1488 = vmul.f32 %v1476, 3.8918573e-05
        %v1489 = vadd.f32 %v1488, 0.001143296
        %v1490 = vmul.f32 %v1476, %v1489
        %v1491 = vadd.f32 %v1490, 0.014752088
        %v1492 = vmul.f32 %v1476, %v1491
        %v1493 = vadd.f32 %v1492, 0.112945676
        %v1494 = vmul.f32 %v1476, %v1493
        %v1495 = vadd.f32 %v1494, 0.4994258
        %v1496 = vmul.f32 %v1476, %v1495
        %v1497 = vadd.f32 %v1496, 1.0
        %v1498 = vrcp.pop %v1497
        %v1499 = vmul.f32 %v1497, %v1498
        %v1500 = vsub.f32 1.0, %v1499
        %v1501 = vmul.f32 %v1498, %v1500
        %v1502 = vadd.f32 %v1498, %v1501
        %vm1503 = vweird.f32 %v1497
        %vm1504 = vweird.f32 %v1498
        %vm1505 = vmor %vm1503, %vm1504
        %v1506 = vsel %vm1505, %v1498, %v1502
        %v1507 = vand.u32 2147483647, %v1497
        %vm1508 = vcmp.eq.f32.partialorder %v1507, 8.507059e+37
        %v1509 = vand.u32 %v1497, 2147483648
        %v1510 = vor.u32 1.1754944e-38, %v1509
        %v1511 = vsel %vm1508, %v1510, %v1506
        %v1512 = vmul.f32 %v1487, %v1511
        %v1513 = vmin.f32 %v1512, 1.0
        %v1514 = vmax.f32 %v1513, -1.0
        %v1515 = vadd.f32 %v1194, 1.0
        %v1516 = vadd.f32 %v1234, 1.0
        %v1517 = vadd.f32 %v1274, 1.0
        %v1518 = vadd.f32 %v1314, 1.0
        %v1519 = vadd.f32 %v1354, 1.0
        %v1520 = vadd.f32 %v1394, 1.0
        %v1521 = vadd.f32 %v1434, 1.0
        %v1522 = vadd.f32 %v1474, 1.0
        %v1523 = vadd.f32 %v1514, 1.0
        %v1524 = vmul.f32 %v1137, %v1515
        %v1525 = vmul.f32 %v1138, %v1516
        %v1526 = vmul.f32 %v1139, %v1517
        %v1527 = vmul.f32 %v1140, %v1518
        %v1528 = vmul.f32 %v1141, %v1519
        %v1529 = vmul.f32 %v1142, %v1520
        %v1530 = vmul.f32 %v1143, %v1521
        %v1531 = vmul.f32 %v1144, %v1522
        %v1532 = vmul.f32 %v1145, %v1523
        %v1542 = vrot.slane %v1524, 7
        %v1543 = vrot.slane %v1525, 7
        %v1544 = vsel %vm767, %v1542, %v1543
        %v1545 = vrot.slane %v1526, 7
        %v1546 = vsel %vm767, %v1543, %v1545
        %v1547 = vrot.slane %v1527, 7
        %v1548 = vsel %vm767, %v1545, %v1547
        %v1549 = vrot.slane %v1528, 7
        %v1550 = vsel %vm767, %v1547, %v1549
        %v1551 = vrot.slane %v1529, 7
        %v1552 = vsel %vm767, %v1549, %v1551
        %v1553 = vrot.slane %v1530, 7
        %v1554 = vsel %vm767, %v1551, %v1553
        %v1555 = vrot.slane %v1531, 7
        %v1556 = vsel %vm767, %v1553, %v1555
        %v1557 = vrot.slane %v1532, 7
        %v1558 = vsel %vm767, %v1555, %v1557
        %v1567 = vsel %vm403, %v1544, 0.0
        %v1568 = vsel %vm403, %v1546, 0.0
        %v1569 = vadd.f32 %v1567, %v1568
        %v1570 = vsel %vm403, %v1548, 0.0
        %v1571 = vadd.f32 %v1569, %v1570
        %v1572 = vsel %vm403, %v1550, 0.0
        %v1573 = vadd.f32 %v1571, %v1572
        %v1574 = vsel %vm403, %v1552, 0.0
        %v1575 = vadd.f32 %v1573, %v1574
        %v1576 = vsel %vm403, %v1554, 0.0
        %v1577 = vadd.f32 %v1575, %v1576
        %v1578 = vsel %vm403, %v1556, 0.0
        %v1579 = vadd.f32 %v1577, %v1578
        %v1580 = vsel %vm403, %v1558, 0.0
        %v1581 = vadd.f32 %v1579, %v1580
        %v1582 = vrot.slane %v1581, 4
        %v1583 = vadd.f32 %v1581, %v1582
        %v1584 = vrot.slane %v1583, 2
        %v1585 = vadd.f32 %v1583, %v1584
        %v1586 = vrot.slane %v1585, 1
        %v1587 = vadd.f32 %v1585, %v1586
        %v1588 = vrcp.pop 64.0
        %v1589 = vmul.f32 64.0, %v1588
        %v1590 = vsub.f32 1.0, %v1589
        %v1591 = vmul.f32 %v1588, %v1590
        %v1592 = vadd.f32 %v1588, %v1591
        %vm1593 = vweird.f32 %v1588
        %v1594 = vsel %vm1593, %v1588, %v1592
        %v1595 = vmul.f32 %v1587, %v1594
        %v1596 = vld [vmem:[%s4] sm:$0xff]
        %v1597 = vld [vmem:[%s4 + $0x8] sm:$0xff]
        %v1598 = vld [vmem:[%s4 + $0x10] sm:$0xff]
        %v1599 = vld [vmem:[%s4 + $0x18] sm:$0xff]
        %v1601 = vrot.slane %v385, 3
        %v1604 = vsel %vm403, %v1595, 0
        %1606 = vmatpush.msra.mxu0 0.0
        %1607 = vmatpush.msra.mxu0 0.0
        %1608 = vmatpush.msra.mxu0 0.0
        %1609 = vmatpush.msra.mxu0 0.0
        %1610 = vmatpush.msra.mxu0 0.0
        %1611 = vmatpush.msra.mxu0 0.0
        %1612 = vmatpush.msra.mxu0 0.0
        %1613 = vmatpush.msra.mxu0 0.0
        %1614 = vmatpush.msra.mxu0 0.0
        %1615 = vmatpush.msra.mxu0 0.0
        %1616 = vmatpush.msra.mxu0 0.0
        %1617 = vmatpush.msra.mxu0 0.0
        %1618 = vmatpush.msra.mxu0 %v1599
        %1619 = vmatpush.msra.mxu0 %v1598
        %1620 = vmatpush.msra.mxu0 %v1597
        %1621 = vmatpush.msra.mxu0 %v1596
        %1622 = vmatmul.f32.gmra.mxu0 %v1604
        %v1623 = vpop.f32.mrf.mxu0
        %v1624 = vadd.f32 %v1601, %v1623
        %1625 = vdwg.mxu0
        %v1626 = vmul.f32 %v1624, 0.5
        %v1627 = vmul.f32 %v1624, 0.70710677
        %v1628 = vmul.f32 %v1627, %v1627
        %v1629 = vmin.f32 16.0, %v1628
        %v1630 = vmul.f32 %v1629, 2.1237322e-06
        %v1631 = vadd.f32 %v1630, 0.00028619796
        %v1632 = vmul.f32 %v1629, %v1631
        %v1633 = vadd.f32 %v1632, 0.0036580483
        %v1634 = vmul.f32 %v1629, %v1633
        %v1635 = vadd.f32 %v1634, 0.05243302
        %v1636 = vmul.f32 %v1629, %v1635
        %v1637 = vadd.f32 %v1636, 0.18741608
        %v1638 = vmul.f32 %v1629, %v1637
        %v1639 = vadd.f32 %v1638, 1.1283791
        %v1640 = vmul.f32 %v1627, %v1639
        %v1641 = vmul.f32 %v1629, 3.8918573e-05
        %v1642 = vadd.f32 %v1641, 0.001143296
        %v1643 = vmul.f32 %v1629, %v1642
        %v1644 = vadd.f32 %v1643, 0.014752088
        %v1645 = vmul.f32 %v1629, %v1644
        %v1646 = vadd.f32 %v1645, 0.112945676
        %v1647 = vmul.f32 %v1629, %v1646
        %v1648 = vadd.f32 %v1647, 0.4994258
        %v1649 = vmul.f32 %v1629, %v1648
        %v1650 = vadd.f32 %v1649, 1.0
        %v1651 = vrcp.pop %v1650
        %v1652 = vmul.f32 %v1650, %v1651
        %v1653 = vsub.f32 1.0, %v1652
        %v1654 = vmul.f32 %v1651, %v1653
        %v1655 = vadd.f32 %v1651, %v1654
        %vm1656 = vweird.f32 %v1650
        %vm1657 = vweird.f32 %v1651
        %vm1658 = vmor %vm1656, %vm1657
        %v1659 = vsel %vm1658, %v1651, %v1655
        %v1660 = vand.u32 2147483647, %v1650
        %vm1661 = vcmp.eq.f32.partialorder %v1660, 8.507059e+37
        %v1662 = vand.u32 %v1650, 2147483648
        %v1663 = vor.u32 1.1754944e-38, %v1662
        %v1664 = vsel %vm1661, %v1663, %v1659
        %v1665 = vmul.f32 %v1640, %v1664
        %v1666 = vmin.f32 %v1665, 1.0
        %v1667 = vmax.f32 %v1666, -1.0
        %v1668 = vadd.f32 %v1667, 1.0
        %v1669 = vmul.f32 %v1626, %v1668
        %v1670 = vld [vmem:[%s5] sm:$0xf]
        %v1671 = vrot.slane %v385, 4
        %vm1673 = vcmask 31744
        %v1675 = vsel %vm1673, %v1669, 0
        %vm1677 = vcmask 1043456
        %v1679 = vsel %vm1677, %v1670, 0
        %1681 = vmatpush.msra.mxu0 0.0
        %1682 = vmatpush.msra.mxu0 0.0
        %1683 = vmatpush.msra.mxu0 0.0
        %1684 = vmatpush.msra.mxu0 0.0
        %1685 = vmatpush.msra.mxu0 0.0
        %1686 = vmatpush.msra.mxu0 0.0
        %1687 = vmatpush.msra.mxu0 0.0
        %1688 = vmatpush.msra.mxu0 0.0
        %1689 = vmatpush.msra.mxu0 0.0
        %1690 = vmatpush.msra.mxu0 0.0
        %1691 = vmatpush.msra.mxu0 0.0
        %1692 = vmatpush.msra.mxu0 0.0
        %1693 = vmatpush.msra.mxu0 0.0
        %1694 = vmatpush.msra.mxu0 0.0
        %1695 = vmatpush.msra.mxu0 0.0
        %1696 = vmatpush.msra.mxu0 %v1679
        %1697 = vmatmul.f32.gmra.mxu0 %v1675
        %v1698 = vpop.f32.mrf.mxu0
        %v1699 = vadd.f32 %v1671, %v1698
        %1700 = vdwg.mxu0
        %v1701 = vld [vmem:[%s6] sm:$0xff]
        %v1702 = vld [vmem:[%s6 + $0x8] sm:$0xff]
        %v1703 = vld [vmem:[%s6 + $0x10] sm:$0xff]
        %v1704 = vld [vmem:[%s6 + $0x18] sm:$0xff]
        %v1705 = vperm.slane %v385, 5
        %v1707 = vsel %vm403, %v597, 0
        %v1710 = vsel %vm403, %v598, 0
        %v1713 = vsel %vm403, %v599, 0
        %v1716 = vsel %vm403, %v600, 0
        %v1719 = vsel %vm403, %v601, 0
        %v1722 = vsel %vm403, %v602, 0
        %v1725 = vsel %vm403, %v603, 0
        %v1728 = vsel %vm403, %v604, 0
        %1730 = vmatpush.msra.mxu0 0.0
        %1731 = vmatpush.msra.mxu0 0.0
        %1732 = vmatpush.msra.mxu0 0.0
        %1733 = vmatpush.msra.mxu0 0.0
        %1734 = vmatpush.msra.mxu0 0.0
        %1735 = vmatpush.msra.mxu0 0.0
        %1736 = vmatpush.msra.mxu0 0.0
        %1737 = vmatpush.msra.mxu0 0.0
        %1738 = vmatpush.msra.mxu0 0.0
        %1739 = vmatpush.msra.mxu0 0.0
        %1740 = vmatpush.msra.mxu0 0.0
        %1741 = vmatpush.msra.mxu0 0.0
        %1742 = vmatpush.msra.mxu0 %v1704
        %1743 = vmatpush.msra.mxu0 %v1703
        %1744 = vmatpush.msra.mxu0 %v1702
        %1745 = vmatpush.msra.mxu0 %v1701
        %1746 = vmatmul.f32.gmra.mxu0 %v1707
        %v1747 = vpop.f32.mrf.mxu0
        %v1748 = vadd.f32 %v1705, %v1747
        %1749 = vmatmul.f32.gmra.mxu0 %v1710
        %v1750 = vpop.f32.mrf.mxu0
        %v1751 = vadd.f32 %v1705, %v1750
        %1752 = vmatmul.f32.gmra.mxu0 %v1713
        %v1753 = vpop.f32.mrf.mxu0
        %v1754 = vadd.f32 %v1705, %v1753
        %1755 = vmatmul.f32.gmra.mxu0 %v1716
        %v1756 = vpop.f32.mrf.mxu0
        %v1757 = vadd.f32 %v1705, %v1756
        %1758 = vmatmul.f32.gmra.mxu0 %v1719
        %v1759 = vpop.f32.mrf.mxu0
        %v1760 = vadd.f32 %v1705, %v1759
        %1761 = vmatmul.f32.gmra.mxu0 %v1722
        %v1762 = vpop.f32.mrf.mxu0
        %v1763 = vadd.f32 %v1705, %v1762
        %1764 = vmatmul.f32.gmra.mxu0 %v1725
        %v1765 = vpop.f32.mrf.mxu0
        %v1766 = vadd.f32 %v1705, %v1765
        %1767 = vmatmul.f32.gmra.mxu0 %v1728
        %v1768 = vpop.f32.mrf.mxu0
        %v1769 = vadd.f32 %v1705, %v1768
        %1770 = vdwg.mxu0
        %v1771 = vmul.f32 %v1748, 0.5
        %v1772 = vmul.f32 %v1751, 0.5
        %v1773 = vmul.f32 %v1754, 0.5
        %v1774 = vmul.f32 %v1757, 0.5
        %v1775 = vmul.f32 %v1760, 0.5
        %v1776 = vmul.f32 %v1763, 0.5
        %v1777 = vmul.f32 %v1766, 0.5
        %v1778 = vmul.f32 %v1769, 0.5
        %v1779 = vmul.f32 %v1748, 0.70710677
        %v1780 = vmul.f32 %v1751, 0.70710677
        %v1781 = vmul.f32 %v1754, 0.70710677
        %v1782 = vmul.f32 %v1757, 0.70710677
        %v1783 = vmul.f32 %v1760, 0.70710677
        %v1784 = vmul.f32 %v1763, 0.70710677
        %v1785 = vmul.f32 %v1766, 0.70710677
        %v1786 = vmul.f32 %v1769, 0.70710677
        %v1787 = vmul.f32 %v1779, %v1779
        %v1788 = vmin.f32 16.0, %v1787
        %v1789 = vmul.f32 %v1788, 2.1237322e-06
        %v1790 = vadd.f32 %v1789, 0.00028619796
        %v1791 = vmul.f32 %v1788, %v1790
        %v1792 = vadd.f32 %v1791, 0.0036580483
        %v1793 = vmul.f32 %v1788, %v1792
        %v1794 = vadd.f32 %v1793, 0.05243302
        %v1795 = vmul.f32 %v1788, %v1794
        %v1796 = vadd.f32 %v1795, 0.18741608
        %v1797 = vmul.f32 %v1788, %v1796
        %v1798 = vadd.f32 %v1797, 1.1283791
        %v1799 = vmul.f32 %v1779, %v1798
        %v1800 = vmul.f32 %v1788, 3.8918573e-05
        %v1801 = vadd.f32 %v1800, 0.001143296
        %v1802 = vmul.f32 %v1788, %v1801
        %v1803 = vadd.f32 %v1802, 0.014752088
        %v1804 = vmul.f32 %v1788, %v1803
        %v1805 = vadd.f32 %v1804, 0.112945676
        %v1806 = vmul.f32 %v1788, %v1805
        %v1807 = vadd.f32 %v1806, 0.4994258
        %v1808 = vmul.f32 %v1788, %v1807
        %v1809 = vadd.f32 %v1808, 1.0
        %v1810 = vrcp.pop %v1809
        %v1811 = vmul.f32 %v1809, %v1810
        %v1812 = vsub.f32 1.0, %v1811
        %v1813 = vmul.f32 %v1810, %v1812
        %v1814 = vadd.f32 %v1810, %v1813
        %vm1815 = vweird.f32 %v1809
        %vm1816 = vweird.f32 %v1810
        %vm1817 = vmor %vm1815, %vm1816
        %v1818 = vsel %vm1817, %v1810, %v1814
        %v1819 = vand.u32 2147483647, %v1809
        %vm1820 = vcmp.eq.f32.partialorder %v1819, 8.507059e+37
        %v1821 = vand.u32 %v1809, 2147483648
        %v1822 = vor.u32 1.1754944e-38, %v1821
        %v1823 = vsel %vm1820, %v1822, %v1818
        %v1824 = vmul.f32 %v1799, %v1823
        %v1825 = vmin.f32 %v1824, 1.0
        %v1826 = vmax.f32 %v1825, -1.0
        %v1827 = vmul.f32 %v1780, %v1780
        %v1828 = vmin.f32 16.0, %v1827
        %v1829 = vmul.f32 %v1828, 2.1237322e-06
        %v1830 = vadd.f32 %v1829, 0.00028619796
        %v1831 = vmul.f32 %v1828, %v1830
        %v1832 = vadd.f32 %v1831, 0.0036580483
        %v1833 = vmul.f32 %v1828, %v1832
        %v1834 = vadd.f32 %v1833, 0.05243302
        %v1835 = vmul.f32 %v1828, %v1834
        %v1836 = vadd.f32 %v1835, 0.18741608
        %v1837 = vmul.f32 %v1828, %v1836
        %v1838 = vadd.f32 %v1837, 1.1283791
        %v1839 = vmul.f32 %v1780, %v1838
        %v1840 = vmul.f32 %v1828, 3.8918573e-05
        %v1841 = vadd.f32 %v1840, 0.001143296
        %v1842 = vmul.f32 %v1828, %v1841
        %v1843 = vadd.f32 %v1842, 0.014752088
        %v1844 = vmul.f32 %v1828, %v1843
        %v1845 = vadd.f32 %v1844, 0.112945676
        %v1846 = vmul.f32 %v1828, %v1845
        %v1847 = vadd.f32 %v1846, 0.4994258
        %v1848 = vmul.f32 %v1828, %v1847
        %v1849 = vadd.f32 %v1848, 1.0
        %v1850 = vrcp.pop %v1849
        %v1851 = vmul.f32 %v1849, %v1850
        %v1852 = vsub.f32 1.0, %v1851
        %v1853 = vmul.f32 %v1850, %v1852
        %v1854 = vadd.f32 %v1850, %v1853
        %vm1855 = vweird.f32 %v1849
        %vm1856 = vweird.f32 %v1850
        %vm1857 = vmor %vm1855, %vm1856
        %v1858 = vsel %vm1857, %v1850, %v1854
        %v1859 = vand.u32 2147483647, %v1849
        %vm1860 = vcmp.eq.f32.partialorder %v1859, 8.507059e+37
        %v1861 = vand.u32 %v1849, 2147483648
        %v1862 = vor.u32 1.1754944e-38, %v1861
        %v1863 = vsel %vm1860, %v1862, %v1858
        %v1864 = vmul.f32 %v1839, %v1863
        %v1865 = vmin.f32 %v1864, 1.0
        %v1866 = vmax.f32 %v1865, -1.0
        %v1867 = vmul.f32 %v1781, %v1781
        %v1868 = vmin.f32 16.0, %v1867
        %v1869 = vmul.f32 %v1868, 2.1237322e-06
        %v1870 = vadd.f32 %v1869, 0.00028619796
        %v1871 = vmul.f32 %v1868, %v1870
        %v1872 = vadd.f32 %v1871, 0.0036580483
        %v1873 = vmul.f32 %v1868, %v1872
        %v1874 = vadd.f32 %v1873, 0.05243302
        %v1875 = vmul.f32 %v1868, %v1874
        %v1876 = vadd.f32 %v1875, 0.18741608
        %v1877 = vmul.f32 %v1868, %v1876
        %v1878 = vadd.f32 %v1877, 1.1283791
        %v1879 = vmul.f32 %v1781, %v1878
        %v1880 = vmul.f32 %v1868, 3.8918573e-05
        %v1881 = vadd.f32 %v1880, 0.001143296
        %v1882 = vmul.f32 %v1868, %v1881
        %v1883 = vadd.f32 %v1882, 0.014752088
        %v1884 = vmul.f32 %v1868, %v1883
        %v1885 = vadd.f32 %v1884, 0.112945676
        %v1886 = vmul.f32 %v1868, %v1885
        %v1887 = vadd.f32 %v1886, 0.4994258
        %v1888 = vmul.f32 %v1868, %v1887
        %v1889 = vadd.f32 %v1888, 1.0
        %v1890 = vrcp.pop %v1889
        %v1891 = vmul.f32 %v1889, %v1890
        %v1892 = vsub.f32 1.0, %v1891
        %v1893 = vmul.f32 %v1890, %v1892
        %v1894 = vadd.f32 %v1890, %v1893
        %vm1895 = vweird.f32 %v1889
        %vm1896 = vweird.f32 %v1890
        %vm1897 = vmor %vm1895, %vm1896
        %v1898 = vsel %vm1897, %v1890, %v1894
        %v1899 = vand.u32 2147483647, %v1889
        %vm1900 = vcmp.eq.f32.partialorder %v1899, 8.507059e+37
        %v1901 = vand.u32 %v1889, 2147483648
        %v1902 = vor.u32 1.1754944e-38, %v1901
        %v1903 = vsel %vm1900, %v1902, %v1898
        %v1904 = vmul.f32 %v1879, %v1903
        %v1905 = vmin.f32 %v1904, 1.0
        %v1906 = vmax.f32 %v1905, -1.0
        %v1907 = vmul.f32 %v1782, %v1782
        %v1908 = vmin.f32 16.0, %v1907
        %v1909 = vmul.f32 %v1908, 2.1237322e-06
        %v1910 = vadd.f32 %v1909, 0.00028619796
        %v1911 = vmul.f32 %v1908, %v1910
        %v1912 = vadd.f32 %v1911, 0.0036580483
        %v1913 = vmul.f32 %v1908, %v1912
        %v1914 = vadd.f32 %v1913, 0.05243302
        %v1915 = vmul.f32 %v1908, %v1914
        %v1916 = vadd.f32 %v1915, 0.18741608
        %v1917 = vmul.f32 %v1908, %v1916
        %v1918 = vadd.f32 %v1917, 1.1283791
        %v1919 = vmul.f32 %v1782, %v1918
        %v1920 = vmul.f32 %v1908, 3.8918573e-05
        %v1921 = vadd.f32 %v1920, 0.001143296
        %v1922 = vmul.f32 %v1908, %v1921
        %v1923 = vadd.f32 %v1922, 0.014752088
        %v1924 = vmul.f32 %v1908, %v1923
        %v1925 = vadd.f32 %v1924, 0.112945676
        %v1926 = vmul.f32 %v1908, %v1925
        %v1927 = vadd.f32 %v1926, 0.4994258
        %v1928 = vmul.f32 %v1908, %v1927
        %v1929 = vadd.f32 %v1928, 1.0
        %v1930 = vrcp.pop %v1929
        %v1931 = vmul.f32 %v1929, %v1930
        %v1932 = vsub.f32 1.0, %v1931
        %v1933 = vmul.f32 %v1930, %v1932
        %v1934 = vadd.f32 %v1930, %v1933
        %vm1935 = vweird.f32 %v1929
        %vm1936 = vweird.f32 %v1930
        %vm1937 = vmor %vm1935, %vm1936
        %v1938 = vsel %vm1937, %v1930, %v1934
        %v1939 = vand.u32 2147483647, %v1929
        %vm1940 = vcmp.eq.f32.partialorder %v1939, 8.507059e+37
        %v1941 = vand.u32 %v1929, 2147483648
        %v1942 = vor.u32 1.1754944e-38, %v1941
        %v1943 = vsel %vm1940, %v1942, %v1938
        %v1944 = vmul.f32 %v1919, %v1943
        %v1945 = vmin.f32 %v1944, 1.0
        %v1946 = vmax.f32 %v1945, -1.0
        %v1947 = vmul.f32 %v1783, %v1783
        %v1948 = vmin.f32 16.0, %v1947
        %v1949 = vmul.f32 %v1948, 2.1237322e-06
        %v1950 = vadd.f32 %v1949, 0.00028619796
        %v1951 = vmul.f32 %v1948, %v1950
        %v1952 = vadd.f32 %v1951, 0.0036580483
        %v1953 = vmul.f32 %v1948, %v1952
        %v1954 = vadd.f32 %v1953, 0.05243302
        %v1955 = vmul.f32 %v1948, %v1954
        %v1956 = vadd.f32 %v1955, 0.18741608
        %v1957 = vmul.f32 %v1948, %v1956
        %v1958 = vadd.f32 %v1957, 1.1283791
        %v1959 = vmul.f32 %v1783, %v1958
        %v1960 = vmul.f32 %v1948, 3.8918573e-05
        %v1961 = vadd.f32 %v1960, 0.001143296
        %v1962 = vmul.f32 %v1948, %v1961
        %v1963 = vadd.f32 %v1962, 0.014752088
        %v1964 = vmul.f32 %v1948, %v1963
        %v1965 = vadd.f32 %v1964, 0.112945676
        %v1966 = vmul.f32 %v1948, %v1965
        %v1967 = vadd.f32 %v1966, 0.4994258
        %v1968 = vmul.f32 %v1948, %v1967
        %v1969 = vadd.f32 %v1968, 1.0
        %v1970 = vrcp.pop %v1969
        %v1971 = vmul.f32 %v1969, %v1970
        %v1972 = vsub.f32 1.0, %v1971
        %v1973 = vmul.f32 %v1970, %v1972
        %v1974 = vadd.f32 %v1970, %v1973
        %vm1975 = vweird.f32 %v1969
        %vm1976 = vweird.f32 %v1970
        %vm1977 = vmor %vm1975, %vm1976
        %v1978 = vsel %vm1977, %v1970, %v1974
        %v1979 = vand.u32 2147483647, %v1969
        %vm1980 = vcmp.eq.f32.partialorder %v1979, 8.507059e+37
        %v1981 = vand.u32 %v1969, 2147483648
        %v1982 = vor.u32 1.1754944e-38, %v1981
        %v1983 = vsel %vm1980, %v1982, %v1978
        %v1984 = vmul.f32 %v1959, %v1983
        %v1985 = vmin.f32 %v1984, 1.0
        %v1986 = vmax.f32 %v1985, -1.0
        %v1987 = vmul.f32 %v1784, %v1784
        %v1988 = vmin.f32 16.0, %v1987
        %v1989 = vmul.f32 %v1988, 2.1237322e-06
        %v1990 = vadd.f32 %v1989, 0.00028619796
        %v1991 = vmul.f32 %v1988, %v1990
        %v1992 = vadd.f32 %v1991, 0.0036580483
        %v1993 = vmul.f32 %v1988, %v1992
        %v1994 = vadd.f32 %v1993, 0.05243302
        %v1995 = vmul.f32 %v1988, %v1994
        %v1996 = vadd.f32 %v1995, 0.18741608
        %v1997 = vmul.f32 %v1988, %v1996
        %v1998 = vadd.f32 %v1997, 1.1283791
        %v1999 = vmul.f32 %v1784, %v1998
        %v2000 = vmul.f32 %v1988, 3.8918573e-05
        %v2001 = vadd.f32 %v2000, 0.001143296
        %v2002 = vmul.f32 %v1988, %v2001
        %v2003 = vadd.f32 %v2002, 0.014752088
        %v2004 = vmul.f32 %v1988, %v2003
        %v2005 = vadd.f32 %v2004, 0.112945676
        %v2006 = vmul.f32 %v1988, %v2005
        %v2007 = vadd.f32 %v2006, 0.4994258
        %v2008 = vmul.f32 %v1988, %v2007
        %v2009 = vadd.f32 %v2008, 1.0
        %v2010 = vrcp.pop %v2009
        %v2011 = vmul.f32 %v2009, %v2010
        %v2012 = vsub.f32 1.0, %v2011
        %v2013 = vmul.f32 %v2010, %v2012
        %v2014 = vadd.f32 %v2010, %v2013
        %vm2015 = vweird.f32 %v2009
        %vm2016 = vweird.f32 %v2010
        %vm2017 = vmor %vm2015, %vm2016
        %v2018 = vsel %vm2017, %v2010, %v2014
        %v2019 = vand.u32 2147483647, %v2009
        %vm2020 = vcmp.eq.f32.partialorder %v2019, 8.507059e+37
        %v2021 = vand.u32 %v2009, 2147483648
        %v2022 = vor.u32 1.1754944e-38, %v2021
        %v2023 = vsel %vm2020, %v2022, %v2018
        %v2024 = vmul.f32 %v1999, %v2023
        %v2025 = vmin.f32 %v2024, 1.0
        %v2026 = vmax.f32 %v2025, -1.0
        %v2027 = vmul.f32 %v1785, %v1785
        %v2028 = vmin.f32 16.0, %v2027
        %v2029 = vmul.f32 %v2028, 2.1237322e-06
        %v2030 = vadd.f32 %v2029, 0.00028619796
        %v2031 = vmul.f32 %v2028, %v2030
        %v2032 = vadd.f32 %v2031, 0.0036580483
        %v2033 = vmul.f32 %v2028, %v2032
        %v2034 = vadd.f32 %v2033, 0.05243302
        %v2035 = vmul.f32 %v2028, %v2034
        %v2036 = vadd.f32 %v2035, 0.18741608
        %v2037 = vmul.f32 %v2028, %v2036
        %v2038 = vadd.f32 %v2037, 1.1283791
        %v2039 = vmul.f32 %v1785, %v2038
        %v2040 = vmul.f32 %v2028, 3.8918573e-05
        %v2041 = vadd.f32 %v2040, 0.001143296
        %v2042 = vmul.f32 %v2028, %v2041
        %v2043 = vadd.f32 %v2042, 0.014752088
        %v2044 = vmul.f32 %v2028, %v2043
        %v2045 = vadd.f32 %v2044, 0.112945676
        %v2046 = vmul.f32 %v2028, %v2045
        %v2047 = vadd.f32 %v2046, 0.4994258
        %v2048 = vmul.f32 %v2028, %v2047
        %v2049 = vadd.f32 %v2048, 1.0
        %v2050 = vrcp.pop %v2049
        %v2051 = vmul.f32 %v2049, %v2050
        %v2052 = vsub.f32 1.0, %v2051
        %v2053 = vmul.f32 %v2050, %v2052
        %v2054 = vadd.f32 %v2050, %v2053
        %vm2055 = vweird.f32 %v2049
        %vm2056 = vweird.f32 %v2050
        %vm2057 = vmor %vm2055, %vm2056
        %v2058 = vsel %vm2057, %v2050, %v2054
        %v2059 = vand.u32 2147483647, %v2049
        %vm2060 = vcmp.eq.f32.partialorder %v2059, 8.507059e+37
        %v2061 = vand.u32 %v2049, 2147483648
        %v2062 = vor.u32 1.1754944e-38, %v2061
        %v2063 = vsel %vm2060, %v2062, %v2058
        %v2064 = vmul.f32 %v2039, %v2063
        %v2065 = vmin.f32 %v2064, 1.0
        %v2066 = vmax.f32 %v2065, -1.0
        %v2067 = vmul.f32 %v1786, %v1786
        %v2068 = vmin.f32 16.0, %v2067
        %v2069 = vmul.f32 %v2068, 2.1237322e-06
        %v2070 = vadd.f32 %v2069, 0.00028619796
        %v2071 = vmul.f32 %v2068, %v2070
        %v2072 = vadd.f32 %v2071, 0.0036580483
        %v2073 = vmul.f32 %v2068, %v2072
        %v2074 = vadd.f32 %v2073, 0.05243302
        %v2075 = vmul.f32 %v2068, %v2074
        %v2076 = vadd.f32 %v2075, 0.18741608
        %v2077 = vmul.f32 %v2068, %v2076
        %v2078 = vadd.f32 %v2077, 1.1283791
        %v2079 = vmul.f32 %v1786, %v2078
        %v2080 = vmul.f32 %v2068, 3.8918573e-05
        %v2081 = vadd.f32 %v2080, 0.001143296
        %v2082 = vmul.f32 %v2068, %v2081
        %v2083 = vadd.f32 %v2082, 0.014752088
        %v2084 = vmul.f32 %v2068, %v2083
        %v2085 = vadd.f32 %v2084, 0.112945676
        %v2086 = vmul.f32 %v2068, %v2085
        %v2087 = vadd.f32 %v2086, 0.4994258
        %v2088 = vmul.f32 %v2068, %v2087
        %v2089 = vadd.f32 %v2088, 1.0
        %v2090 = vrcp.pop %v2089
        %v2091 = vmul.f32 %v2089, %v2090
        %v2092 = vsub.f32 1.0, %v2091
        %v2093 = vmul.f32 %v2090, %v2092
        %v2094 = vadd.f32 %v2090, %v2093
        %vm2095 = vweird.f32 %v2089
        %vm2096 = vweird.f32 %v2090
        %vm2097 = vmor %vm2095, %vm2096
        %v2098 = vsel %vm2097, %v2090, %v2094
        %v2099 = vand.u32 2147483647, %v2089
        %vm2100 = vcmp.eq.f32.partialorder %v2099, 8.507059e+37
        %v2101 = vand.u32 %v2089, 2147483648
        %v2102 = vor.u32 1.1754944e-38, %v2101
        %v2103 = vsel %vm2100, %v2102, %v2098
        %v2104 = vmul.f32 %v2079, %v2103
        %v2105 = vmin.f32 %v2104, 1.0
        %v2106 = vmax.f32 %v2105, -1.0
        %v2107 = vadd.f32 %v1826, 1.0
        %v2108 = vadd.f32 %v1866, 1.0
        %v2109 = vadd.f32 %v1906, 1.0
        %v2110 = vadd.f32 %v1946, 1.0
        %v2111 = vadd.f32 %v1986, 1.0
        %v2112 = vadd.f32 %v2026, 1.0
        %v2113 = vadd.f32 %v2066, 1.0
        %v2114 = vadd.f32 %v2106, 1.0
        %v2115 = vmul.f32 %v1771, %v2107
        %v2116 = vmul.f32 %v1772, %v2108
        %v2117 = vmul.f32 %v1773, %v2109
        %v2118 = vmul.f32 %v1774, %v2110
        %v2119 = vmul.f32 %v1775, %v2111
        %v2120 = vmul.f32 %v1776, %v2112
        %v2121 = vmul.f32 %v1777, %v2113
        %v2122 = vmul.f32 %v1778, %v2114
        %v2123 = vperm.slane %v385, 6
        %v2124 = vmul.f32 %v2115, %v2123
        %v2125 = vmul.f32 %v2116, %v2123
        %v2126 = vmul.f32 %v2117, %v2123
        %v2127 = vmul.f32 %v2118, %v2123
        %v2128 = vmul.f32 %v2119, %v2123
        %v2129 = vmul.f32 %v2120, %v2123
        %v2130 = vmul.f32 %v2121, %v2123
        %v2131 = vmul.f32 %v2122, %v2123
        %vm2132 = vcmask 15360
        %v2133 = vsel %vm2132, %v2124, 0.0
        %2134 = vadd.xlane.f32.xlu0 %v2133
        %v2135 = vpop.xlane.xlu0 %2134
        %v2136 = vsel %vm2132, %v2125, 0.0
        %2137 = vadd.xlane.f32.xlu0 %v2136
        %v2138 = vpop.xlane.xlu0 %2137
        %v2139 = vsel %vm2132, %v2126, 0.0
        %2140 = vadd.xlane.f32.xlu0 %v2139
        %v2141 = vpop.xlane.xlu0 %2140
        %v2142 = vsel %vm2132, %v2127, 0.0
        %2143 = vadd.xlane.f32.xlu0 %v2142
        %v2144 = vpop.xlane.xlu0 %2143
        %v2145 = vsel %vm2132, %v2128, 0.0
        %2146 = vadd.xlane.f32.xlu0 %v2145
        %v2147 = vpop.xlane.xlu0 %2146
        %v2148 = vsel %vm2132, %v2129, 0.0
        %2149 = vadd.xlane.f32.xlu0 %v2148
        %v2150 = vpop.xlane.xlu0 %2149
        %v2151 = vsel %vm2132, %v2130, 0.0
        %2152 = vadd.xlane.f32.xlu0 %v2151
        %v2153 = vpop.xlane.xlu0 %2152
        %v2154 = vsel %vm2132, %v2131, 0.0
        %2155 = vadd.xlane.f32.xlu0 %v2154
        %v2156 = vpop.xlane.xlu0 %2155
        %v2157 = vperm.slane %v385, 7
        %v2158 = vadd.f32 %v2135, %v2157
        %v2159 = vadd.f32 %v2138, %v2157
        %v2160 = vadd.f32 %v2141, %v2157
        %v2161 = vadd.f32 %v2144, %v2157
        %v2162 = vadd.f32 %v2147, %v2157
        %v2163 = vadd.f32 %v2150, %v2157
        %v2164 = vadd.f32 %v2153, %v2157
        %v2165 = vadd.f32 %v2156, %v2157
        %v2166 = vxor.u32 %v1699, 2147483648
        %v2167 = vmul.f32 %v2166, 1.442695
        %v2168 = vpow.pop %v2167
        %v2169 = vadd.f32 %v2168, 1.0
        %v2170 = vrcp.pop %v2169
        %v2171 = vmul.f32 %v2169, %v2170
        %v2172 = vsub.f32 1.0, %v2171
        %v2173 = vmul.f32 %v2170, %v2172
        %v2174 = vadd.f32 %v2170, %v2173
        %vm2175 = vweird.f32 %v2169
        %vm2176 = vweird.f32 %v2170
        %vm2177 = vmor %vm2175, %vm2176
        %v2178 = vsel %vm2177, %v2170, %v2174
        %v2179 = vand.u32 2147483647, %v2169
        %vm2180 = vcmp.eq.f32.partialorder %v2179, 8.507059e+37
        %v2181 = vand.u32 %v2169, 2147483648
        %v2182 = vor.u32 1.1754944e-38, %v2181
        %v2183 = vsel %vm2180, %v2182, %v2178
        %v2184 = vmul.f32 1.0, %v2183
        %v2185 = vperm.slane %v2184, 0
        %v2186 = vmul.f32 %v597, %v2185
        %v2187 = vmul.f32 %v598, %v2185
        %v2188 = vmul.f32 %v599, %v2185
        %v2189 = vmul.f32 %v600, %v2185
        %v2190 = vmul.f32 %v601, %v2185
        %v2191 = vmul.f32 %v602, %v2185
        %v2192 = vmul.f32 %v603, %v2185
        %v2193 = vmul.f32 %v604, %v2185
        %v2194 = vxor.u32 %v2158, 2147483648
        %v2195 = vxor.u32 %v2159, 2147483648
        %v2196 = vxor.u32 %v2160, 2147483648
        %v2197 = vxor.u32 %v2161, 2147483648
        %v2198 = vxor.u32 %v2162, 2147483648
        %v2199 = vxor.u32 %v2163, 2147483648
        %v2200 = vxor.u32 %v2164, 2147483648
        %v2201 = vxor.u32 %v2165, 2147483648
        %v2202 = vmul.f32 %v2194, 1.442695
        %v2203 = vpow.pop %v2202
        %v2204 = vmul.f32 %v2195, 1.442695
        %v2205 = vpow.pop %v2204
        %v2206 = vmul.f32 %v2196, 1.442695
        %v2207 = vpow.pop %v2206
        %v2208 = vmul.f32 %v2197, 1.442695
        %v2209 = vpow.pop %v2208
        %v2210 = vmul.f32 %v2198, 1.442695
        %v2211 = vpow.pop %v2210
        %v2212 = vmul.f32 %v2199, 1.442695
        %v2213 = vpow.pop %v2212
        %v2214 = vmul.f32 %v2200, 1.442695
        %v2215 = vpow.pop %v2214
        %v2216 = vmul.f32 %v2201, 1.442695
        %v2217 = vpow.pop %v2216
        %v2218 = vadd.f32 %v2203, 1.0
        %v2219 = vadd.f32 %v2205, 1.0
        %v2220 = vadd.f32 %v2207, 1.0
        %v2221 = vadd.f32 %v2209, 1.0
        %v2222 = vadd.f32 %v2211, 1.0
        %v2223 = vadd.f32 %v2213, 1.0
        %v2224 = vadd.f32 %v2215, 1.0
        %v2225 = vadd.f32 %v2217, 1.0
        %v2226 = vrcp.pop %v2218
        %v2227 = vmul.f32 %v2218, %v2226
        %v2228 = vsub.f32 1.0, %v2227
        %v2229 = vmul.f32 %v2226, %v2228
        %v2230 = vadd.f32 %v2226, %v2229
        %vm2231 = vweird.f32 %v2218
        %vm2232 = vweird.f32 %v2226
        %vm2233 = vmor %vm2231, %vm2232
        %v2234 = vsel %vm2233, %v2226, %v2230
        %v2235 = vand.u32 2147483647, %v2218
        %vm2236 = vcmp.eq.f32.partialorder %v2235, 8.507059e+37
        %v2237 = vand.u32 %v2218, 2147483648
        %v2238 = vor.u32 1.1754944e-38, %v2237
        %v2239 = vsel %vm2236, %v2238, %v2234
        %v2240 = vmul.f32 1.0, %v2239
        %v2241 = vrcp.pop %v2219
        %v2242 = vmul.f32 %v2219, %v2241
        %v2243 = vsub.f32 1.0, %v2242
        %v2244 = vmul.f32 %v2241, %v2243
        %v2245 = vadd.f32 %v2241, %v2244
        %vm2246 = vweird.f32 %v2219
        %vm2247 = vweird.f32 %v2241
        %vm2248 = vmor %vm2246, %vm2247
        %v2249 = vsel %vm2248, %v2241, %v2245
        %v2250 = vand.u32 2147483647, %v2219
        %vm2251 = vcmp.eq.f32.partialorder %v2250, 8.507059e+37
        %v2252 = vand.u32 %v2219, 2147483648
        %v2253 = vor.u32 1.1754944e-38, %v2252
        %v2254 = vsel %vm2251, %v2253, %v2249
        %v2255 = vmul.f32 1.0, %v2254
        %v2256 = vrcp.pop %v2220
        %v2257 = vmul.f32 %v2220, %v2256
        %v2258 = vsub.f32 1.0, %v2257
        %v2259 = vmul.f32 %v2256, %v2258
        %v2260 = vadd.f32 %v2256, %v2259
        %vm2261 = vweird.f32 %v2220
        %vm2262 = vweird.f32 %v2256
        %vm2263 = vmor %vm2261, %vm2262
        %v2264 = vsel %vm2263, %v2256, %v2260
        %v2265 = vand.u32 2147483647, %v2220
        %vm2266 = vcmp.eq.f32.partialorder %v2265, 8.507059e+37
        %v2267 = vand.u32 %v2220, 2147483648
        %v2268 = vor.u32 1.1754944e-38, %v2267
        %v2269 = vsel %vm2266, %v2268, %v2264
        %v2270 = vmul.f32 1.0, %v2269
        %v2271 = vrcp.pop %v2221
        %v2272 = vmul.f32 %v2221, %v2271
        %v2273 = vsub.f32 1.0, %v2272
        %v2274 = vmul.f32 %v2271, %v2273
        %v2275 = vadd.f32 %v2271, %v2274
        %vm2276 = vweird.f32 %v2221
        %vm2277 = vweird.f32 %v2271
        %vm2278 = vmor %vm2276, %vm2277
        %v2279 = vsel %vm2278, %v2271, %v2275
        %v2280 = vand.u32 2147483647, %v2221
        %vm2281 = vcmp.eq.f32.partialorder %v2280, 8.507059e+37
        %v2282 = vand.u32 %v2221, 2147483648
        %v2283 = vor.u32 1.1754944e-38, %v2282
        %v2284 = vsel %vm2281, %v2283, %v2279
        %v2285 = vmul.f32 1.0, %v2284
        %v2286 = vrcp.pop %v2222
        %v2287 = vmul.f32 %v2222, %v2286
        %v2288 = vsub.f32 1.0, %v2287
        %v2289 = vmul.f32 %v2286, %v2288
        %v2290 = vadd.f32 %v2286, %v2289
        %vm2291 = vweird.f32 %v2222
        %vm2292 = vweird.f32 %v2286
        %vm2293 = vmor %vm2291, %vm2292
        %v2294 = vsel %vm2293, %v2286, %v2290
        %v2295 = vand.u32 2147483647, %v2222
        %vm2296 = vcmp.eq.f32.partialorder %v2295, 8.507059e+37
        %v2297 = vand.u32 %v2222, 2147483648
        %v2298 = vor.u32 1.1754944e-38, %v2297
        %v2299 = vsel %vm2296, %v2298, %v2294
        %v2300 = vmul.f32 1.0, %v2299
        %v2301 = vrcp.pop %v2223
        %v2302 = vmul.f32 %v2223, %v2301
        %v2303 = vsub.f32 1.0, %v2302
        %v2304 = vmul.f32 %v2301, %v2303
        %v2305 = vadd.f32 %v2301, %v2304
        %vm2306 = vweird.f32 %v2223
        %vm2307 = vweird.f32 %v2301
        %vm2308 = vmor %vm2306, %vm2307
        %v2309 = vsel %vm2308, %v2301, %v2305
        %v2310 = vand.u32 2147483647, %v2223
        %vm2311 = vcmp.eq.f32.partialorder %v2310, 8.507059e+37
        %v2312 = vand.u32 %v2223, 2147483648
        %v2313 = vor.u32 1.1754944e-38, %v2312
        %v2314 = vsel %vm2311, %v2313, %v2309
        %v2315 = vmul.f32 1.0, %v2314
        %v2316 = vrcp.pop %v2224
        %v2317 = vmul.f32 %v2224, %v2316
        %v2318 = vsub.f32 1.0, %v2317
        %v2319 = vmul.f32 %v2316, %v2318
        %v2320 = vadd.f32 %v2316, %v2319
        %vm2321 = vweird.f32 %v2224
        %vm2322 = vweird.f32 %v2316
        %vm2323 = vmor %vm2321, %vm2322
        %v2324 = vsel %vm2323, %v2316, %v2320
        %v2325 = vand.u32 2147483647, %v2224
        %vm2326 = vcmp.eq.f32.partialorder %v2325, 8.507059e+37
        %v2327 = vand.u32 %v2224, 2147483648
        %v2328 = vor.u32 1.1754944e-38, %v2327
        %v2329 = vsel %vm2326, %v2328, %v2324
        %v2330 = vmul.f32 1.0, %v2329
        %v2331 = vrcp.pop %v2225
        %v2332 = vmul.f32 %v2225, %v2331
        %v2333 = vsub.f32 1.0, %v2332
        %v2334 = vmul.f32 %v2331, %v2333
        %v2335 = vadd.f32 %v2331, %v2334
        %vm2336 = vweird.f32 %v2225
        %vm2337 = vweird.f32 %v2331
        %vm2338 = vmor %vm2336, %vm2337
        %v2339 = vsel %vm2338, %v2331, %v2335
        %v2340 = vand.u32 2147483647, %v2225
        %vm2341 = vcmp.eq.f32.partialorder %v2340, 8.507059e+37
        %v2342 = vand.u32 %v2225, 2147483648
        %v2343 = vor.u32 1.1754944e-38, %v2342
        %v2344 = vsel %vm2341, %v2343, %v2339
        %v2345 = vmul.f32 1.0, %v2344
        %2347 = vset.pattern.permute.xlu0 0
        %2348 = vperm.xlu0 %2347, %v2240
        %v2349 = vpop.permute.xlu0 %2348
        %2352 = vset.pattern.permute.xlu0 0
        %2353 = vperm.xlu0 %2352, %v2255
        %v2354 = vpop.permute.xlu0 %2353
        %2357 = vset.pattern.permute.xlu0 0
        %2358 = vperm.xlu0 %2357, %v2270
        %v2359 = vpop.permute.xlu0 %2358
        %2362 = vset.pattern.permute.xlu0 0
        %2363 = vperm.xlu0 %2362, %v2285
        %v2364 = vpop.permute.xlu0 %2363
        %2367 = vset.pattern.permute.xlu0 0
        %2368 = vperm.xlu0 %2367, %v2300
        %v2369 = vpop.permute.xlu0 %2368
        %2372 = vset.pattern.permute.xlu0 0
        %2373 = vperm.xlu0 %2372, %v2315
        %v2374 = vpop.permute.xlu0 %2373
        %2377 = vset.pattern.permute.xlu0 0
        %2378 = vperm.xlu0 %2377, %v2330
        %v2379 = vpop.permute.xlu0 %2378
        %2382 = vset.pattern.permute.xlu0 0
        %2383 = vperm.xlu0 %2382, %v2345
        %v2384 = vpop.permute.xlu0 %2383
        %v2386 = vmul.f32 %v2349, %v1544
        %v2387 = vmul.f32 %v2354, %v1546
        %v2388 = vmul.f32 %v2359, %v1548
        %v2389 = vmul.f32 %v2364, %v1550
        %v2390 = vmul.f32 %v2369, %v1552
        %v2391 = vmul.f32 %v2374, %v1554
        %v2392 = vmul.f32 %v2379, %v1556
        %v2393 = vmul.f32 %v2384, %v1558
        %v2394 = vadd.f32 %v2186, %v2386
        %v2395 = vadd.f32 %v2187, %v2387
        %v2396 = vadd.f32 %v2188, %v2388
        %v2397 = vadd.f32 %v2189, %v2389
        %v2398 = vadd.f32 %v2190, %v2390
        %v2399 = vadd.f32 %v2191, %v2391
        %v2400 = vadd.f32 %v2192, %v2392
        %v2401 = vadd.f32 %v2193, %v2393
        %v2402 = vld [vmem:[%s7] sm:$0xff]
        %v2403 = vld [vmem:[%s7 + $0x8] sm:$0xff]
        %v2404 = vld [vmem:[%s7 + $0x10] sm:$0xff]
        %v2405 = vld [vmem:[%s7 + $0x18] sm:$0xff]
        %v2406 = vperm.slane %v386, 0
        %v2408 = vsel %vm403, %v2394, 0
        %v2411 = vsel %vm403, %v2395, 0
        %v2414 = vsel %vm403, %v2396, 0
        %v2417 = vsel %vm403, %v2397, 0
        %v2420 = vsel %vm403, %v2398, 0
        %v2423 = vsel %vm403, %v2399, 0
        %v2426 = vsel %vm403, %v2400, 0
        %v2429 = vsel %vm403, %v2401, 0
        %2431 = vmatpush.msra.mxu0 0.0
        %2432 = vmatpush.msra.mxu0 0.0
        %2433 = vmatpush.msra.mxu0 0.0
        %2434 = vmatpush.msra.mxu0 0.0
        %2435 = vmatpush.msra.mxu0 0.0
        %2436 = vmatpush.msra.mxu0 0.0
        %2437 = vmatpush.msra.mxu0 0.0
        %2438 = vmatpush.msra.mxu0 0.0
        %2439 = vmatpush.msra.mxu0 0.0
        %2440 = vmatpush.msra.mxu0 0.0
        %2441 = vmatpush.msra.mxu0 0.0
        %2442 = vmatpush.msra.mxu0 0.0
        %2443 = vmatpush.msra.mxu0 %v2405
        %2444 = vmatpush.msra.mxu0 %v2404
        %2445 = vmatpush.msra.mxu0 %v2403
        %2446 = vmatpush.msra.mxu0 %v2402
        %2447 = vmatmul.f32.gmra.mxu0 %v2408
        %v2448 = vpop.f32.mrf.mxu0
        %v2449 = vadd.f32 %v2406, %v2448
        %2450 = vmatmul.f32.gmra.mxu0 %v2411
        %v2451 = vpop.f32.mrf.mxu0
        %v2452 = vadd.f32 %v2406, %v2451
        %2453 = vmatmul.f32.gmra.mxu0 %v2414
        %v2454 = vpop.f32.mrf.mxu0
        %v2455 = vadd.f32 %v2406, %v2454
        %2456 = vmatmul.f32.gmra.mxu0 %v2417
        %v2457 = vpop.f32.mrf.mxu0
        %v2458 = vadd.f32 %v2406, %v2457
        %2459 = vmatmul.f32.gmra.mxu0 %v2420
        %v2460 = vpop.f32.mrf.mxu0
        %v2461 = vadd.f32 %v2406, %v2460
        %2462 = vmatmul.f32.gmra.mxu0 %v2423
        %v2463 = vpop.f32.mrf.mxu0
        %v2464 = vadd.f32 %v2406, %v2463
        %2465 = vmatmul.f32.gmra.mxu0 %v2426
        %v2466 = vpop.f32.mrf.mxu0
        %v2467 = vadd.f32 %v2406, %v2466
        %2468 = vmatmul.f32.gmra.mxu0 %v2429
        %v2469 = vpop.f32.mrf.mxu0
        %v2470 = vadd.f32 %v2406, %v2469
        %2471 = vdwg.mxu0
        %v2472 = vadd.f32 %v2449, %v597
        %v2473 = vadd.f32 %v2452, %v598
        %v2474 = vadd.f32 %v2455, %v599
        %v2475 = vadd.f32 %v2458, %v600
        %v2476 = vadd.f32 %v2461, %v601
        %v2477 = vadd.f32 %v2464, %v602
        %v2478 = vadd.f32 %v2467, %v603
        %v2479 = vadd.f32 %v2470, %v604
        %v2480 = vsel %vm403, %v2472, 0.0
        %2481 = vadd.xlane.f32.xlu0 %v2480
        %v2482 = vpop.xlane.xlu0 %2481
        %v2483 = vsel %vm403, %v2473, 0.0
        %2484 = vadd.xlane.f32.xlu0 %v2483
        %v2485 = vpop.xlane.xlu0 %2484
        %v2486 = vsel %vm403, %v2474, 0.0
        %2487 = vadd.xlane.f32.xlu0 %v2486
        %v2488 = vpop.xlane.xlu0 %2487
        %v2489 = vsel %vm403, %v2475, 0.0
        %2490 = vadd.xlane.f32.xlu0 %v2489
        %v2491 = vpop.xlane.xlu0 %2490
        %v2492 = vsel %vm403, %v2476, 0.0
        %2493 = vadd.xlane.f32.xlu0 %v2492
        %v2494 = vpop.xlane.xlu0 %2493
        %v2495 = vsel %vm403, %v2477, 0.0
        %2496 = vadd.xlane.f32.xlu0 %v2495
        %v2497 = vpop.xlane.xlu0 %2496
        %v2498 = vsel %vm403, %v2478, 0.0
        %2499 = vadd.xlane.f32.xlu0 %v2498
        %v2500 = vpop.xlane.xlu0 %2499
        %v2501 = vsel %vm403, %v2479, 0.0
        %2502 = vadd.xlane.f32.xlu0 %v2501
        %v2503 = vpop.xlane.xlu0 %2502
        %v2504 = vmul.f32 %v2482, %v434
        %v2505 = vmul.f32 %v2485, %v434
        %v2506 = vmul.f32 %v2488, %v434
        %v2507 = vmul.f32 %v2491, %v434
        %v2508 = vmul.f32 %v2494, %v434
        %v2509 = vmul.f32 %v2497, %v434
        %v2510 = vmul.f32 %v2500, %v434
        %v2511 = vmul.f32 %v2503, %v434
        %v2512 = vsub.f32 %v2472, %v2504
        %v2513 = vsub.f32 %v2473, %v2505
        %v2514 = vsub.f32 %v2474, %v2506
        %v2515 = vsub.f32 %v2475, %v2507
        %v2516 = vsub.f32 %v2476, %v2508
        %v2517 = vsub.f32 %v2477, %v2509
        %v2518 = vsub.f32 %v2478, %v2510
        %v2519 = vsub.f32 %v2479, %v2511
        %v2520 = vmul.f32 %v2512, %v2512
        %v2521 = vmul.f32 %v2513, %v2513
        %v2522 = vmul.f32 %v2514, %v2514
        %v2523 = vmul.f32 %v2515, %v2515
        %v2524 = vmul.f32 %v2516, %v2516
        %v2525 = vmul.f32 %v2517, %v2517
        %v2526 = vmul.f32 %v2518, %v2518
        %v2527 = vmul.f32 %v2519, %v2519
        %v2528 = vsel %vm403, %v2520, 0.0
        %2529 = vadd.xlane.f32.xlu0 %v2528
        %v2530 = vpop.xlane.xlu0 %2529
        %v2531 = vsel %vm403, %v2521, 0.0
        %2532 = vadd.xlane.f32.xlu0 %v2531
        %v2533 = vpop.xlane.xlu0 %2532
        %v2534 = vsel %vm403, %v2522, 0.0
        %2535 = vadd.xlane.f32.xlu0 %v2534
        %v2536 = vpop.xlane.xlu0 %2535
        %v2537 = vsel %vm403, %v2523, 0.0
        %2538 = vadd.xlane.f32.xlu0 %v2537
        %v2539 = vpop.xlane.xlu0 %2538
        %v2540 = vsel %vm403, %v2524, 0.0
        %2541 = vadd.xlane.f32.xlu0 %v2540
        %v2542 = vpop.xlane.xlu0 %2541
        %v2543 = vsel %vm403, %v2525, 0.0
        %2544 = vadd.xlane.f32.xlu0 %v2543
        %v2545 = vpop.xlane.xlu0 %2544
        %v2546 = vsel %vm403, %v2526, 0.0
        %2547 = vadd.xlane.f32.xlu0 %v2546
        %v2548 = vpop.xlane.xlu0 %2547
        %v2549 = vsel %vm403, %v2527, 0.0
        %2550 = vadd.xlane.f32.xlu0 %v2549
        %v2551 = vpop.xlane.xlu0 %2550
        %v2552 = vmul.f32 %v2530, %v434
        %v2553 = vmul.f32 %v2533, %v434
        %v2554 = vmul.f32 %v2536, %v434
        %v2555 = vmul.f32 %v2539, %v434
        %v2556 = vmul.f32 %v2542, %v434
        %v2557 = vmul.f32 %v2545, %v434
        %v2558 = vmul.f32 %v2548, %v434
        %v2559 = vmul.f32 %v2551, %v434
        %v2560 = vadd.f32 %v2552, 1e-06
        %v2561 = vadd.f32 %v2553, 1e-06
        %v2562 = vadd.f32 %v2554, 1e-06
        %v2563 = vadd.f32 %v2555, 1e-06
        %v2564 = vadd.f32 %v2556, 1e-06
        %v2565 = vadd.f32 %v2557, 1e-06
        %v2566 = vadd.f32 %v2558, 1e-06
        %v2567 = vadd.f32 %v2559, 1e-06
        %v2568 = vrsqrt.pop %v2560
        %v2569 = vmul.f32 %v2568, %v2560
        %v2570 = vmul.f32 %v2569, %v2568
        %v2571 = vmul.f32 0.5, %v2570
        %v2572 = vsub.f32 1.5, %v2571
        %v2573 = vmul.f32 %v2568, %v2572
        %vm2574 = vweird.f32 %v2560
        %vm2575 = vweird.f32 %v2568
        %vm2576 = vmor %vm2574, %vm2575
        %v2577 = vsel %vm2576, %v2568, %v2573
        %v2578 = vrsqrt.pop %v2561
        %v2579 = vmul.f32 %v2578, %v2561
        %v2580 = vmul.f32 %v2579, %v2578
        %v2581 = vmul.f32 0.5, %v2580
        %v2582 = vsub.f32 1.5, %v2581
        %v2583 = vmul.f32 %v2578, %v2582
        %vm2584 = vweird.f32 %v2561
        %vm2585 = vweird.f32 %v2578
        %vm2586 = vmor %vm2584, %vm2585
        %v2587 = vsel %vm2586, %v2578, %v2583
        %v2588 = vrsqrt.pop %v2562
        %v2589 = vmul.f32 %v2588, %v2562
        %v2590 = vmul.f32 %v2589, %v2588
        %v2591 = vmul.f32 0.5, %v2590
        %v2592 = vsub.f32 1.5, %v2591
        %v2593 = vmul.f32 %v2588, %v2592
        %vm2594 = vweird.f32 %v2562
        %vm2595 = vweird.f32 %v2588
        %vm2596 = vmor %vm2594, %vm2595
        %v2597 = vsel %vm2596, %v2588, %v2593
        %v2598 = vrsqrt.pop %v2563
        %v2599 = vmul.f32 %v2598, %v2563
        %v2600 = vmul.f32 %v2599, %v2598
        %v2601 = vmul.f32 0.5, %v2600
        %v2602 = vsub.f32 1.5, %v2601
        %v2603 = vmul.f32 %v2598, %v2602
        %vm2604 = vweird.f32 %v2563
        %vm2605 = vweird.f32 %v2598
        %vm2606 = vmor %vm2604, %vm2605
        %v2607 = vsel %vm2606, %v2598, %v2603
        %v2608 = vrsqrt.pop %v2564
        %v2609 = vmul.f32 %v2608, %v2564
        %v2610 = vmul.f32 %v2609, %v2608
        %v2611 = vmul.f32 0.5, %v2610
        %v2612 = vsub.f32 1.5, %v2611
        %v2613 = vmul.f32 %v2608, %v2612
        %vm2614 = vweird.f32 %v2564
        %vm2615 = vweird.f32 %v2608
        %vm2616 = vmor %vm2614, %vm2615
        %v2617 = vsel %vm2616, %v2608, %v2613
        %v2618 = vrsqrt.pop %v2565
        %v2619 = vmul.f32 %v2618, %v2565
        %v2620 = vmul.f32 %v2619, %v2618
        %v2621 = vmul.f32 0.5, %v2620
        %v2622 = vsub.f32 1.5, %v2621
        %v2623 = vmul.f32 %v2618, %v2622
        %vm2624 = vweird.f32 %v2565
        %vm2625 = vweird.f32 %v2618
        %vm2626 = vmor %vm2624, %vm2625
        %v2627 = vsel %vm2626, %v2618, %v2623
        %v2628 = vrsqrt.pop %v2566
        %v2629 = vmul.f32 %v2628, %v2566
        %v2630 = vmul.f32 %v2629, %v2628
        %v2631 = vmul.f32 0.5, %v2630
        %v2632 = vsub.f32 1.5, %v2631
        %v2633 = vmul.f32 %v2628, %v2632
        %vm2634 = vweird.f32 %v2566
        %vm2635 = vweird.f32 %v2628
        %vm2636 = vmor %vm2634, %vm2635
        %v2637 = vsel %vm2636, %v2628, %v2633
        %v2638 = vrsqrt.pop %v2567
        %v2639 = vmul.f32 %v2638, %v2567
        %v2640 = vmul.f32 %v2639, %v2638
        %v2641 = vmul.f32 0.5, %v2640
        %v2642 = vsub.f32 1.5, %v2641
        %v2643 = vmul.f32 %v2638, %v2642
        %vm2644 = vweird.f32 %v2567
        %vm2645 = vweird.f32 %v2638
        %vm2646 = vmor %vm2644, %vm2645
        %v2647 = vsel %vm2646, %v2638, %v2643
        %v2648 = vmul.f32 %v2512, %v2577
        %v2649 = vmul.f32 %v2513, %v2587
        %v2650 = vmul.f32 %v2514, %v2597
        %v2651 = vmul.f32 %v2515, %v2607
        %v2652 = vmul.f32 %v2516, %v2617
        %v2653 = vmul.f32 %v2517, %v2627
        %v2654 = vmul.f32 %v2518, %v2637
        %v2655 = vmul.f32 %v2519, %v2647
        %v2656 = vperm.slane %v386, 1
        %v2657 = vmul.f32 %v2648, %v2656
        %v2658 = vmul.f32 %v2649, %v2656
        %v2659 = vmul.f32 %v2650, %v2656
        %v2660 = vmul.f32 %v2651, %v2656
        %v2661 = vmul.f32 %v2652, %v2656
        %v2662 = vmul.f32 %v2653, %v2656
        %v2663 = vmul.f32 %v2654, %v2656
        %v2664 = vmul.f32 %v2655, %v2656
        %v2665 = vperm.slane %v386, 2
        %v2666 = vadd.f32 %v2657, %v2665
        %v2667 = vadd.f32 %v2658, %v2665
        %v2668 = vadd.f32 %v2659, %v2665
        %v2669 = vadd.f32 %v2660, %v2665
        %v2670 = vadd.f32 %v2661, %v2665
        %v2671 = vadd.f32 %v2662, %v2665
        %v2672 = vadd.f32 %v2663, %v2665
        %v2673 = vadd.f32 %v2664, %v2665
        %v2674 = vld [vmem:[%s8] sm:$0xff]
        %v2675 = vld [vmem:[%s8 + $0x8] sm:$0xff]
        %v2676 = vld [vmem:[%s8 + $0x10] sm:$0xff]
        %v2677 = vld [vmem:[%s8 + $0x18] sm:$0xff]
        %v2678 = vperm.slane %v386, 3
        %v2680 = vsel %vm403, %v2666, 0
        %v2683 = vsel %vm403, %v2667, 0
        %v2686 = vsel %vm403, %v2668, 0
        %v2689 = vsel %vm403, %v2669, 0
        %v2692 = vsel %vm403, %v2670, 0
        %v2695 = vsel %vm403, %v2671, 0
        %v2698 = vsel %vm403, %v2672, 0
        %v2701 = vsel %vm403, %v2673, 0
        %2703 = vmatpush.msra.mxu0 0.0
        %2704 = vmatpush.msra.mxu0 0.0
        %2705 = vmatpush.msra.mxu0 0.0
        %2706 = vmatpush.msra.mxu0 0.0
        %2707 = vmatpush.msra.mxu0 0.0
        %2708 = vmatpush.msra.mxu0 0.0
        %2709 = vmatpush.msra.mxu0 0.0
        %2710 = vmatpush.msra.mxu0 0.0
        %2711 = vmatpush.msra.mxu0 0.0
        %2712 = vmatpush.msra.mxu0 0.0
        %2713 = vmatpush.msra.mxu0 0.0
        %2714 = vmatpush.msra.mxu0 0.0
        %2715 = vmatpush.msra.mxu0 %v2677
        %2716 = vmatpush.msra.mxu0 %v2676
        %2717 = vmatpush.msra.mxu0 %v2675
        %2718 = vmatpush.msra.mxu0 %v2674
        %2719 = vmatmul.f32.gmra.mxu0 %v2680
        %v2720 = vpop.f32.mrf.mxu0
        %v2721 = vadd.f32 %v2678, %v2720
        %2722 = vmatmul.f32.gmra.mxu0 %v2683
        %v2723 = vpop.f32.mrf.mxu0
        %v2724 = vadd.f32 %v2678, %v2723
        %2725 = vmatmul.f32.gmra.mxu0 %v2686
        %v2726 = vpop.f32.mrf.mxu0
        %v2727 = vadd.f32 %v2678, %v2726
        %2728 = vmatmul.f32.gmra.mxu0 %v2689
        %v2729 = vpop.f32.mrf.mxu0
        %v2730 = vadd.f32 %v2678, %v2729
        %2731 = vmatmul.f32.gmra.mxu0 %v2692
        %v2732 = vpop.f32.mrf.mxu0
        %v2733 = vadd.f32 %v2678, %v2732
        %2734 = vmatmul.f32.gmra.mxu0 %v2695
        %v2735 = vpop.f32.mrf.mxu0
        %v2736 = vadd.f32 %v2678, %v2735
        %2737 = vmatmul.f32.gmra.mxu0 %v2698
        %v2738 = vpop.f32.mrf.mxu0
        %v2739 = vadd.f32 %v2678, %v2738
        %2740 = vmatmul.f32.gmra.mxu0 %v2701
        %v2741 = vpop.f32.mrf.mxu0
        %v2742 = vadd.f32 %v2678, %v2741
        %2743 = vdwg.mxu0
        %v2744 = vmul.f32 %v2721, 0.5
        %v2745 = vmul.f32 %v2724, 0.5
        %v2746 = vmul.f32 %v2727, 0.5
        %v2747 = vmul.f32 %v2730, 0.5
        %v2748 = vmul.f32 %v2733, 0.5
        %v2749 = vmul.f32 %v2736, 0.5
        %v2750 = vmul.f32 %v2739, 0.5
        %v2751 = vmul.f32 %v2742, 0.5
        %v2752 = vmul.f32 %v2721, 0.70710677
        %v2753 = vmul.f32 %v2724, 0.70710677
        %v2754 = vmul.f32 %v2727, 0.70710677
        %v2755 = vmul.f32 %v2730, 0.70710677
        %v2756 = vmul.f32 %v2733, 0.70710677
        %v2757 = vmul.f32 %v2736, 0.70710677
        %v2758 = vmul.f32 %v2739, 0.70710677
        %v2759 = vmul.f32 %v2742, 0.70710677
        %v2760 = vmul.f32 %v2752, %v2752
        %v2761 = vmin.f32 16.0, %v2760
        %v2762 = vmul.f32 %v2761, 2.1237322e-06
        %v2763 = vadd.f32 %v2762, 0.00028619796
        %v2764 = vmul.f32 %v2761, %v2763
        %v2765 = vadd.f32 %v2764, 0.0036580483
        %v2766 = vmul.f32 %v2761, %v2765
        %v2767 = vadd.f32 %v2766, 0.05243302
        %v2768 = vmul.f32 %v2761, %v2767
        %v2769 = vadd.f32 %v2768, 0.18741608
        %v2770 = vmul.f32 %v2761, %v2769
        %v2771 = vadd.f32 %v2770, 1.1283791
        %v2772 = vmul.f32 %v2752, %v2771
        %v2773 = vmul.f32 %v2761, 3.8918573e-05
        %v2774 = vadd.f32 %v2773, 0.001143296
        %v2775 = vmul.f32 %v2761, %v2774
        %v2776 = vadd.f32 %v2775, 0.014752088
        %v2777 = vmul.f32 %v2761, %v2776
        %v2778 = vadd.f32 %v2777, 0.112945676
        %v2779 = vmul.f32 %v2761, %v2778
        %v2780 = vadd.f32 %v2779, 0.4994258
        %v2781 = vmul.f32 %v2761, %v2780
        %v2782 = vadd.f32 %v2781, 1.0
        %v2783 = vrcp.pop %v2782
        %v2784 = vmul.f32 %v2782, %v2783
        %v2785 = vsub.f32 1.0, %v2784
        %v2786 = vmul.f32 %v2783, %v2785
        %v2787 = vadd.f32 %v2783, %v2786
        %vm2788 = vweird.f32 %v2782
        %vm2789 = vweird.f32 %v2783
        %vm2790 = vmor %vm2788, %vm2789
        %v2791 = vsel %vm2790, %v2783, %v2787
        %v2792 = vand.u32 2147483647, %v2782
        %vm2793 = vcmp.eq.f32.partialorder %v2792, 8.507059e+37
        %v2794 = vand.u32 %v2782, 2147483648
        %v2795 = vor.u32 1.1754944e-38, %v2794
        %v2796 = vsel %vm2793, %v2795, %v2791
        %v2797 = vmul.f32 %v2772, %v2796
        %v2798 = vmin.f32 %v2797, 1.0
        %v2799 = vmax.f32 %v2798, -1.0
        %v2800 = vmul.f32 %v2753, %v2753
        %v2801 = vmin.f32 16.0, %v2800
        %v2802 = vmul.f32 %v2801, 2.1237322e-06
        %v2803 = vadd.f32 %v2802, 0.00028619796
        %v2804 = vmul.f32 %v2801, %v2803
        %v2805 = vadd.f32 %v2804, 0.0036580483
        %v2806 = vmul.f32 %v2801, %v2805
        %v2807 = vadd.f32 %v2806, 0.05243302
        %v2808 = vmul.f32 %v2801, %v2807
        %v2809 = vadd.f32 %v2808, 0.18741608
        %v2810 = vmul.f32 %v2801, %v2809
        %v2811 = vadd.f32 %v2810, 1.1283791
        %v2812 = vmul.f32 %v2753, %v2811
        %v2813 = vmul.f32 %v2801, 3.8918573e-05
        %v2814 = vadd.f32 %v2813, 0.001143296
        %v2815 = vmul.f32 %v2801, %v2814
        %v2816 = vadd.f32 %v2815, 0.014752088
        %v2817 = vmul.f32 %v2801, %v2816
        %v2818 = vadd.f32 %v2817, 0.112945676
        %v2819 = vmul.f32 %v2801, %v2818
        %v2820 = vadd.f32 %v2819, 0.4994258
        %v2821 = vmul.f32 %v2801, %v2820
        %v2822 = vadd.f32 %v2821, 1.0
        %v2823 = vrcp.pop %v2822
        %v2824 = vmul.f32 %v2822, %v2823
        %v2825 = vsub.f32 1.0, %v2824
        %v2826 = vmul.f32 %v2823, %v2825
        %v2827 = vadd.f32 %v2823, %v2826
        %vm2828 = vweird.f32 %v2822
        %vm2829 = vweird.f32 %v2823
        %vm2830 = vmor %vm2828, %vm2829
        %v2831 = vsel %vm2830, %v2823, %v2827
        %v2832 = vand.u32 2147483647, %v2822
        %vm2833 = vcmp.eq.f32.partialorder %v2832, 8.507059e+37
        %v2834 = vand.u32 %v2822, 2147483648
        %v2835 = vor.u32 1.1754944e-38, %v2834
        %v2836 = vsel %vm2833, %v2835, %v2831
        %v2837 = vmul.f32 %v2812, %v2836
        %v2838 = vmin.f32 %v2837, 1.0
        %v2839 = vmax.f32 %v2838, -1.0
        %v2840 = vmul.f32 %v2754, %v2754
        %v2841 = vmin.f32 16.0, %v2840
        %v2842 = vmul.f32 %v2841, 2.1237322e-06
        %v2843 = vadd.f32 %v2842, 0.00028619796
        %v2844 = vmul.f32 %v2841, %v2843
        %v2845 = vadd.f32 %v2844, 0.0036580483
        %v2846 = vmul.f32 %v2841, %v2845
        %v2847 = vadd.f32 %v2846, 0.05243302
        %v2848 = vmul.f32 %v2841, %v2847
        %v2849 = vadd.f32 %v2848, 0.18741608
        %v2850 = vmul.f32 %v2841, %v2849
        %v2851 = vadd.f32 %v2850, 1.1283791
        %v2852 = vmul.f32 %v2754, %v2851
        %v2853 = vmul.f32 %v2841, 3.8918573e-05
        %v2854 = vadd.f32 %v2853, 0.001143296
        %v2855 = vmul.f32 %v2841, %v2854
        %v2856 = vadd.f32 %v2855, 0.014752088
        %v2857 = vmul.f32 %v2841, %v2856
        %v2858 = vadd.f32 %v2857, 0.112945676
        %v2859 = vmul.f32 %v2841, %v2858
        %v2860 = vadd.f32 %v2859, 0.4994258
        %v2861 = vmul.f32 %v2841, %v2860
        %v2862 = vadd.f32 %v2861, 1.0
        %v2863 = vrcp.pop %v2862
        %v2864 = vmul.f32 %v2862, %v2863
        %v2865 = vsub.f32 1.0, %v2864
        %v2866 = vmul.f32 %v2863, %v2865
        %v2867 = vadd.f32 %v2863, %v2866
        %vm2868 = vweird.f32 %v2862
        %vm2869 = vweird.f32 %v2863
        %vm2870 = vmor %vm2868, %vm2869
        %v2871 = vsel %vm2870, %v2863, %v2867
        %v2872 = vand.u32 2147483647, %v2862
        %vm2873 = vcmp.eq.f32.partialorder %v2872, 8.507059e+37
        %v2874 = vand.u32 %v2862, 2147483648
        %v2875 = vor.u32 1.1754944e-38, %v2874
        %v2876 = vsel %vm2873, %v2875, %v2871
        %v2877 = vmul.f32 %v2852, %v2876
        %v2878 = vmin.f32 %v2877, 1.0
        %v2879 = vmax.f32 %v2878, -1.0
        %v2880 = vmul.f32 %v2755, %v2755
        %v2881 = vmin.f32 16.0, %v2880
        %v2882 = vmul.f32 %v2881, 2.1237322e-06
        %v2883 = vadd.f32 %v2882, 0.00028619796
        %v2884 = vmul.f32 %v2881, %v2883
        %v2885 = vadd.f32 %v2884, 0.0036580483
        %v2886 = vmul.f32 %v2881, %v2885
        %v2887 = vadd.f32 %v2886, 0.05243302
        %v2888 = vmul.f32 %v2881, %v2887
        %v2889 = vadd.f32 %v2888, 0.18741608
        %v2890 = vmul.f32 %v2881, %v2889
        %v2891 = vadd.f32 %v2890, 1.1283791
        %v2892 = vmul.f32 %v2755, %v2891
        %v2893 = vmul.f32 %v2881, 3.8918573e-05
        %v2894 = vadd.f32 %v2893, 0.001143296
        %v2895 = vmul.f32 %v2881, %v2894
        %v2896 = vadd.f32 %v2895, 0.014752088
        %v2897 = vmul.f32 %v2881, %v2896
        %v2898 = vadd.f32 %v2897, 0.112945676
        %v2899 = vmul.f32 %v2881, %v2898
        %v2900 = vadd.f32 %v2899, 0.4994258
        %v2901 = vmul.f32 %v2881, %v2900
        %v2902 = vadd.f32 %v2901, 1.0
        %v2903 = vrcp.pop %v2902
        %v2904 = vmul.f32 %v2902, %v2903
        %v2905 = vsub.f32 1.0, %v2904
        %v2906 = vmul.f32 %v2903, %v2905
        %v2907 = vadd.f32 %v2903, %v2906
        %vm2908 = vweird.f32 %v2902
        %vm2909 = vweird.f32 %v2903
        %vm2910 = vmor %vm2908, %vm2909
        %v2911 = vsel %vm2910, %v2903, %v2907
        %v2912 = vand.u32 2147483647, %v2902
        %vm2913 = vcmp.eq.f32.partialorder %v2912, 8.507059e+37
        %v2914 = vand.u32 %v2902, 2147483648
        %v2915 = vor.u32 1.1754944e-38, %v2914
        %v2916 = vsel %vm2913, %v2915, %v2911
        %v2917 = vmul.f32 %v2892, %v2916
        %v2918 = vmin.f32 %v2917, 1.0
        %v2919 = vmax.f32 %v2918, -1.0
        %v2920 = vmul.f32 %v2756, %v2756
        %v2921 = vmin.f32 16.0, %v2920
        %v2922 = vmul.f32 %v2921, 2.1237322e-06
        %v2923 = vadd.f32 %v2922, 0.00028619796
        %v2924 = vmul.f32 %v2921, %v2923
        %v2925 = vadd.f32 %v2924, 0.0036580483
        %v2926 = vmul.f32 %v2921, %v2925
        %v2927 = vadd.f32 %v2926, 0.05243302
        %v2928 = vmul.f32 %v2921, %v2927
        %v2929 = vadd.f32 %v2928, 0.18741608
        %v2930 = vmul.f32 %v2921, %v2929
        %v2931 = vadd.f32 %v2930, 1.1283791
        %v2932 = vmul.f32 %v2756, %v2931
        %v2933 = vmul.f32 %v2921, 3.8918573e-05
        %v2934 = vadd.f32 %v2933, 0.001143296
        %v2935 = vmul.f32 %v2921, %v2934
        %v2936 = vadd.f32 %v2935, 0.014752088
        %v2937 = vmul.f32 %v2921, %v2936
        %v2938 = vadd.f32 %v2937, 0.112945676
        %v2939 = vmul.f32 %v2921, %v2938
        %v2940 = vadd.f32 %v2939, 0.4994258
        %v2941 = vmul.f32 %v2921, %v2940
        %v2942 = vadd.f32 %v2941, 1.0
        %v2943 = vrcp.pop %v2942
        %v2944 = vmul.f32 %v2942, %v2943
        %v2945 = vsub.f32 1.0, %v2944
        %v2946 = vmul.f32 %v2943, %v2945
        %v2947 = vadd.f32 %v2943, %v2946
        %vm2948 = vweird.f32 %v2942
        %vm2949 = vweird.f32 %v2943
        %vm2950 = vmor %vm2948, %vm2949
        %v2951 = vsel %vm2950, %v2943, %v2947
        %v2952 = vand.u32 2147483647, %v2942
        %vm2953 = vcmp.eq.f32.partialorder %v2952, 8.507059e+37
        %v2954 = vand.u32 %v2942, 2147483648
        %v2955 = vor.u32 1.1754944e-38, %v2954
        %v2956 = vsel %vm2953, %v2955, %v2951
        %v2957 = vmul.f32 %v2932, %v2956
        %v2958 = vmin.f32 %v2957, 1.0
        %v2959 = vmax.f32 %v2958, -1.0
        %v2960 = vmul.f32 %v2757, %v2757
        %v2961 = vmin.f32 16.0, %v2960
        %v2962 = vmul.f32 %v2961, 2.1237322e-06
        %v2963 = vadd.f32 %v2962, 0.00028619796
        %v2964 = vmul.f32 %v2961, %v2963
        %v2965 = vadd.f32 %v2964, 0.0036580483
        %v2966 = vmul.f32 %v2961, %v2965
        %v2967 = vadd.f32 %v2966, 0.05243302
        %v2968 = vmul.f32 %v2961, %v2967
        %v2969 = vadd.f32 %v2968, 0.18741608
        %v2970 = vmul.f32 %v2961, %v2969
        %v2971 = vadd.f32 %v2970, 1.1283791
        %v2972 = vmul.f32 %v2757, %v2971
        %v2973 = vmul.f32 %v2961, 3.8918573e-05
        %v2974 = vadd.f32 %v2973, 0.001143296
        %v2975 = vmul.f32 %v2961, %v2974
        %v2976 = vadd.f32 %v2975, 0.014752088
        %v2977 = vmul.f32 %v2961, %v2976
        %v2978 = vadd.f32 %v2977, 0.112945676
        %v2979 = vmul.f32 %v2961, %v2978
        %v2980 = vadd.f32 %v2979, 0.4994258
        %v2981 = vmul.f32 %v2961, %v2980
        %v2982 = vadd.f32 %v2981, 1.0
        %v2983 = vrcp.pop %v2982
        %v2984 = vmul.f32 %v2982, %v2983
        %v2985 = vsub.f32 1.0, %v2984
        %v2986 = vmul.f32 %v2983, %v2985
        %v2987 = vadd.f32 %v2983, %v2986
        %vm2988 = vweird.f32 %v2982
        %vm2989 = vweird.f32 %v2983
        %vm2990 = vmor %vm2988, %vm2989
        %v2991 = vsel %vm2990, %v2983, %v2987
        %v2992 = vand.u32 2147483647, %v2982
        %vm2993 = vcmp.eq.f32.partialorder %v2992, 8.507059e+37
        %v2994 = vand.u32 %v2982, 2147483648
        %v2995 = vor.u32 1.1754944e-38, %v2994
        %v2996 = vsel %vm2993, %v2995, %v2991
        %v2997 = vmul.f32 %v2972, %v2996
        %v2998 = vmin.f32 %v2997, 1.0
        %v2999 = vmax.f32 %v2998, -1.0
        %v3000 = vmul.f32 %v2758, %v2758
        %v3001 = vmin.f32 16.0, %v3000
        %v3002 = vmul.f32 %v3001, 2.1237322e-06
        %v3003 = vadd.f32 %v3002, 0.00028619796
        %v3004 = vmul.f32 %v3001, %v3003
        %v3005 = vadd.f32 %v3004, 0.0036580483
        %v3006 = vmul.f32 %v3001, %v3005
        %v3007 = vadd.f32 %v3006, 0.05243302
        %v3008 = vmul.f32 %v3001, %v3007
        %v3009 = vadd.f32 %v3008, 0.18741608
        %v3010 = vmul.f32 %v3001, %v3009
        %v3011 = vadd.f32 %v3010, 1.1283791
        %v3012 = vmul.f32 %v2758, %v3011
        %v3013 = vmul.f32 %v3001, 3.8918573e-05
        %v3014 = vadd.f32 %v3013, 0.001143296
        %v3015 = vmul.f32 %v3001, %v3014
        %v3016 = vadd.f32 %v3015, 0.014752088
        %v3017 = vmul.f32 %v3001, %v3016
        %v3018 = vadd.f32 %v3017, 0.112945676
        %v3019 = vmul.f32 %v3001, %v3018
        %v3020 = vadd.f32 %v3019, 0.4994258
        %v3021 = vmul.f32 %v3001, %v3020
        %v3022 = vadd.f32 %v3021, 1.0
        %v3023 = vrcp.pop %v3022
        %v3024 = vmul.f32 %v3022, %v3023
        %v3025 = vsub.f32 1.0, %v3024
        %v3026 = vmul.f32 %v3023, %v3025
        %v3027 = vadd.f32 %v3023, %v3026
        %vm3028 = vweird.f32 %v3022
        %vm3029 = vweird.f32 %v3023
        %vm3030 = vmor %vm3028, %vm3029
        %v3031 = vsel %vm3030, %v3023, %v3027
        %v3032 = vand.u32 2147483647, %v3022
        %vm3033 = vcmp.eq.f32.partialorder %v3032, 8.507059e+37
        %v3034 = vand.u32 %v3022, 2147483648
        %v3035 = vor.u32 1.1754944e-38, %v3034
        %v3036 = vsel %vm3033, %v3035, %v3031
        %v3037 = vmul.f32 %v3012, %v3036
        %v3038 = vmin.f32 %v3037, 1.0
        %v3039 = vmax.f32 %v3038, -1.0
        %v3040 = vmul.f32 %v2759, %v2759
        %v3041 = vmin.f32 16.0, %v3040
        %v3042 = vmul.f32 %v3041, 2.1237322e-06
        %v3043 = vadd.f32 %v3042, 0.00028619796
        %v3044 = vmul.f32 %v3041, %v3043
        %v3045 = vadd.f32 %v3044, 0.0036580483
        %v3046 = vmul.f32 %v3041, %v3045
        %v3047 = vadd.f32 %v3046, 0.05243302
        %v3048 = vmul.f32 %v3041, %v3047
        %v3049 = vadd.f32 %v3048, 0.18741608
        %v3050 = vmul.f32 %v3041, %v3049
        %v3051 = vadd.f32 %v3050, 1.1283791
        %v3052 = vmul.f32 %v2759, %v3051
        %v3053 = vmul.f32 %v3041, 3.8918573e-05
        %v3054 = vadd.f32 %v3053, 0.001143296
        %v3055 = vmul.f32 %v3041, %v3054
        %v3056 = vadd.f32 %v3055, 0.014752088
        %v3057 = vmul.f32 %v3041, %v3056
        %v3058 = vadd.f32 %v3057, 0.112945676
        %v3059 = vmul.f32 %v3041, %v3058
        %v3060 = vadd.f32 %v3059, 0.4994258
        %v3061 = vmul.f32 %v3041, %v3060
        %v3062 = vadd.f32 %v3061, 1.0
        %v3063 = vrcp.pop %v3062
        %v3064 = vmul.f32 %v3062, %v3063
        %v3065 = vsub.f32 1.0, %v3064
        %v3066 = vmul.f32 %v3063, %v3065
        %v3067 = vadd.f32 %v3063, %v3066
        %vm3068 = vweird.f32 %v3062
        %vm3069 = vweird.f32 %v3063
        %vm3070 = vmor %vm3068, %vm3069
        %v3071 = vsel %vm3070, %v3063, %v3067
        %v3072 = vand.u32 2147483647, %v3062
        %vm3073 = vcmp.eq.f32.partialorder %v3072, 8.507059e+37
        %v3074 = vand.u32 %v3062, 2147483648
        %v3075 = vor.u32 1.1754944e-38, %v3074
        %v3076 = vsel %vm3073, %v3075, %v3071
        %v3077 = vmul.f32 %v3052, %v3076
        %v3078 = vmin.f32 %v3077, 1.0
        %v3079 = vmax.f32 %v3078, -1.0
        %v3080 = vadd.f32 %v2799, 1.0
        %v3081 = vadd.f32 %v2839, 1.0
        %v3082 = vadd.f32 %v2879, 1.0
        %v3083 = vadd.f32 %v2919, 1.0
        %v3084 = vadd.f32 %v2959, 1.0
        %v3085 = vadd.f32 %v2999, 1.0
        %v3086 = vadd.f32 %v3039, 1.0
        %v3087 = vadd.f32 %v3079, 1.0
        %v3088 = vmul.f32 %v2744, %v3080
        %v3089 = vmul.f32 %v2745, %v3081
        %v3090 = vmul.f32 %v2746, %v3082
        %v3091 = vmul.f32 %v2747, %v3083
        %v3092 = vmul.f32 %v2748, %v3084
        %v3093 = vmul.f32 %v2749, %v3085
        %v3094 = vmul.f32 %v2750, %v3086
        %v3095 = vmul.f32 %v2751, %v3087
        %3104 = vrot.lane.b32.xlu0 %v3088, 112
        %v3105 = vpop.permute.xlu0 %3104
        %3106 = vrot.lane.b32.xlu0 %v3089, 112
        %v3107 = vpop.permute.xlu0 %3106
        %3108 = vrot.lane.b32.xlu0 %v3090, 112
        %v3109 = vpop.permute.xlu0 %3108
        %3110 = vrot.lane.b32.xlu0 %v3091, 112
        %v3111 = vpop.permute.xlu0 %3110
        %3112 = vrot.lane.b32.xlu0 %v3092, 112
        %v3113 = vpop.permute.xlu0 %3112
        %3114 = vrot.lane.b32.xlu0 %v3093, 112
        %v3115 = vpop.permute.xlu0 %3114
        %3116 = vrot.lane.b32.xlu0 %v3094, 112
        %v3117 = vpop.permute.xlu0 %3116
        %3118 = vrot.lane.b32.xlu0 %v3095, 112
        %v3119 = vpop.permute.xlu0 %3118
        %vm3128 = vcmask 130048
        %v3129 = vsel %vm3128, %v3105, 0.0
        %3130 = vadd.xlane.f32.xlu0 %v3129
        %v3131 = vpop.xlane.xlu0 %3130
        %v3132 = vsel %vm3128, %v3107, 0.0
        %3133 = vadd.xlane.f32.xlu0 %v3132
        %v3134 = vpop.xlane.xlu0 %3133
        %v3135 = vsel %vm3128, %v3109, 0.0
        %3136 = vadd.xlane.f32.xlu0 %v3135
        %v3137 = vpop.xlane.xlu0 %3136
        %v3138 = vsel %vm3128, %v3111, 0.0
        %3139 = vadd.xlane.f32.xlu0 %v3138
        %v3140 = vpop.xlane.xlu0 %3139
        %v3141 = vsel %vm3128, %v3113, 0.0
        %3142 = vadd.xlane.f32.xlu0 %v3141
        %v3143 = vpop.xlane.xlu0 %3142
        %v3144 = vsel %vm3128, %v3115, 0.0
        %3145 = vadd.xlane.f32.xlu0 %v3144
        %v3146 = vpop.xlane.xlu0 %3145
        %v3147 = vsel %vm3128, %v3117, 0.0
        %3148 = vadd.xlane.f32.xlu0 %v3147
        %v3149 = vpop.xlane.xlu0 %3148
        %v3150 = vsel %vm3128, %v3119, 0.0
        %3151 = vadd.xlane.f32.xlu0 %v3150
        %v3152 = vpop.xlane.xlu0 %3151
        %v3153 = vrcp.pop 16.0
        %v3154 = vmul.f32 16.0, %v3153
        %v3155 = vsub.f32 1.0, %v3154
        %v3156 = vmul.f32 %v3153, %v3155
        %v3157 = vadd.f32 %v3153, %v3156
        %vm3158 = vweird.f32 %v3153
        %v3159 = vsel %vm3158, %v3153, %v3157
        %v3160 = vmul.f32 %v3131, %v3159
        %v3161 = vmul.f32 %v3134, %v3159
        %v3162 = vmul.f32 %v3137, %v3159
        %v3163 = vmul.f32 %v3140, %v3159
        %v3164 = vmul.f32 %v3143, %v3159
        %v3165 = vmul.f32 %v3146, %v3159
        %v3166 = vmul.f32 %v3149, %v3159
        %v3167 = vmul.f32 %v3152, %v3159
        %v3168 = vsub.f32 %v3088, %v3160
        %v3169 = vsub.f32 %v3089, %v3161
        %v3170 = vsub.f32 %v3090, %v3162
        %v3171 = vsub.f32 %v3091, %v3163
        %v3172 = vsub.f32 %v3092, %v3164
        %v3173 = vsub.f32 %v3093, %v3165
        %v3174 = vsub.f32 %v3094, %v3166
        %v3175 = vsub.f32 %v3095, %v3167
        %v3176 = vmul.f32 %v3168, %v3168
        %v3177 = vmul.f32 %v3169, %v3169
        %v3178 = vmul.f32 %v3170, %v3170
        %v3179 = vmul.f32 %v3171, %v3171
        %v3180 = vmul.f32 %v3172, %v3172
        %v3181 = vmul.f32 %v3173, %v3173
        %v3182 = vmul.f32 %v3174, %v3174
        %v3183 = vmul.f32 %v3175, %v3175
        %3192 = vrot.lane.b32.xlu0 %v3176, 112
        %v3193 = vpop.permute.xlu0 %3192
        %3194 = vrot.lane.b32.xlu0 %v3177, 112
        %v3195 = vpop.permute.xlu0 %3194
        %3196 = vrot.lane.b32.xlu0 %v3178, 112
        %v3197 = vpop.permute.xlu0 %3196
        %3198 = vrot.lane.b32.xlu0 %v3179, 112
        %v3199 = vpop.permute.xlu0 %3198
        %3200 = vrot.lane.b32.xlu0 %v3180, 112
        %v3201 = vpop.permute.xlu0 %3200
        %3202 = vrot.lane.b32.xlu0 %v3181, 112
        %v3203 = vpop.permute.xlu0 %3202
        %3204 = vrot.lane.b32.xlu0 %v3182, 112
        %v3205 = vpop.permute.xlu0 %3204
        %3206 = vrot.lane.b32.xlu0 %v3183, 112
        %v3207 = vpop.permute.xlu0 %3206
        %v3216 = vsel %vm3128, %v3193, 0.0
        %3217 = vadd.xlane.f32.xlu0 %v3216
        %v3218 = vpop.xlane.xlu0 %3217
        %v3219 = vsel %vm3128, %v3195, 0.0
        %3220 = vadd.xlane.f32.xlu0 %v3219
        %v3221 = vpop.xlane.xlu0 %3220
        %v3222 = vsel %vm3128, %v3197, 0.0
        %3223 = vadd.xlane.f32.xlu0 %v3222
        %v3224 = vpop.xlane.xlu0 %3223
        %v3225 = vsel %vm3128, %v3199, 0.0
        %3226 = vadd.xlane.f32.xlu0 %v3225
        %v3227 = vpop.xlane.xlu0 %3226
        %v3228 = vsel %vm3128, %v3201, 0.0
        %3229 = vadd.xlane.f32.xlu0 %v3228
        %v3230 = vpop.xlane.xlu0 %3229
        %v3231 = vsel %vm3128, %v3203, 0.0
        %3232 = vadd.xlane.f32.xlu0 %v3231
        %v3233 = vpop.xlane.xlu0 %3232
        %v3234 = vsel %vm3128, %v3205, 0.0
        %3235 = vadd.xlane.f32.xlu0 %v3234
        %v3236 = vpop.xlane.xlu0 %3235
        %v3237 = vsel %vm3128, %v3207, 0.0
        %3238 = vadd.xlane.f32.xlu0 %v3237
        %v3239 = vpop.xlane.xlu0 %3238
        %v3240 = vmul.f32 %v3218, %v3159
        %v3241 = vmul.f32 %v3221, %v3159
        %v3242 = vmul.f32 %v3224, %v3159
        %v3243 = vmul.f32 %v3227, %v3159
        %v3244 = vmul.f32 %v3230, %v3159
        %v3245 = vmul.f32 %v3233, %v3159
        %v3246 = vmul.f32 %v3236, %v3159
        %v3247 = vmul.f32 %v3239, %v3159
        %v3248 = vadd.f32 %v3240, 1e-05
        %v3249 = vadd.f32 %v3241, 1e-05
        %v3250 = vadd.f32 %v3242, 1e-05
        %v3251 = vadd.f32 %v3243, 1e-05
        %v3252 = vadd.f32 %v3244, 1e-05
        %v3253 = vadd.f32 %v3245, 1e-05
        %v3254 = vadd.f32 %v3246, 1e-05
        %v3255 = vadd.f32 %v3247, 1e-05
        %v3256 = vrsqrt.pop %v3248
        %v3257 = vmul.f32 %v3256, %v3248
        %v3258 = vmul.f32 %v3257, %v3256
        %v3259 = vmul.f32 0.5, %v3258
        %v3260 = vsub.f32 1.5, %v3259
        %v3261 = vmul.f32 %v3256, %v3260
        %vm3262 = vweird.f32 %v3248
        %vm3263 = vweird.f32 %v3256
        %vm3264 = vmor %vm3262, %vm3263
        %v3265 = vsel %vm3264, %v3256, %v3261
        %v3266 = vrsqrt.pop %v3249
        %v3267 = vmul.f32 %v3266, %v3249
        %v3268 = vmul.f32 %v3267, %v3266
        %v3269 = vmul.f32 0.5, %v3268
        %v3270 = vsub.f32 1.5, %v3269
        %v3271 = vmul.f32 %v3266, %v3270
        %vm3272 = vweird.f32 %v3249
        %vm3273 = vweird.f32 %v3266
        %vm3274 = vmor %vm3272, %vm3273
        %v3275 = vsel %vm3274, %v3266, %v3271
        %v3276 = vrsqrt.pop %v3250
        %v3277 = vmul.f32 %v3276, %v3250
        %v3278 = vmul.f32 %v3277, %v3276
        %v3279 = vmul.f32 0.5, %v3278
        %v3280 = vsub.f32 1.5, %v3279
        %v3281 = vmul.f32 %v3276, %v3280
        %vm3282 = vweird.f32 %v3250
        %vm3283 = vweird.f32 %v3276
        %vm3284 = vmor %vm3282, %vm3283
        %v3285 = vsel %vm3284, %v3276, %v3281
        %v3286 = vrsqrt.pop %v3251
        %v3287 = vmul.f32 %v3286, %v3251
        %v3288 = vmul.f32 %v3287, %v3286
        %v3289 = vmul.f32 0.5, %v3288
        %v3290 = vsub.f32 1.5, %v3289
        %v3291 = vmul.f32 %v3286, %v3290
        %vm3292 = vweird.f32 %v3251
        %vm3293 = vweird.f32 %v3286
        %vm3294 = vmor %vm3292, %vm3293
        %v3295 = vsel %vm3294, %v3286, %v3291
        %v3296 = vrsqrt.pop %v3252
        %v3297 = vmul.f32 %v3296, %v3252
        %v3298 = vmul.f32 %v3297, %v3296
        %v3299 = vmul.f32 0.5, %v3298
        %v3300 = vsub.f32 1.5, %v3299
        %v3301 = vmul.f32 %v3296, %v3300
        %vm3302 = vweird.f32 %v3252
        %vm3303 = vweird.f32 %v3296
        %vm3304 = vmor %vm3302, %vm3303
        %v3305 = vsel %vm3304, %v3296, %v3301
        %v3306 = vrsqrt.pop %v3253
        %v3307 = vmul.f32 %v3306, %v3253
        %v3308 = vmul.f32 %v3307, %v3306
        %v3309 = vmul.f32 0.5, %v3308
        %v3310 = vsub.f32 1.5, %v3309
        %v3311 = vmul.f32 %v3306, %v3310
        %vm3312 = vweird.f32 %v3253
        %vm3313 = vweird.f32 %v3306
        %vm3314 = vmor %vm3312, %vm3313
        %v3315 = vsel %vm3314, %v3306, %v3311
        %v3316 = vrsqrt.pop %v3254
        %v3317 = vmul.f32 %v3316, %v3254
        %v3318 = vmul.f32 %v3317, %v3316
        %v3319 = vmul.f32 0.5, %v3318
        %v3320 = vsub.f32 1.5, %v3319
        %v3321 = vmul.f32 %v3316, %v3320
        %vm3322 = vweird.f32 %v3254
        %vm3323 = vweird.f32 %v3316
        %vm3324 = vmor %vm3322, %vm3323
        %v3325 = vsel %vm3324, %v3316, %v3321
        %v3326 = vrsqrt.pop %v3255
        %v3327 = vmul.f32 %v3326, %v3255
        %v3328 = vmul.f32 %v3327, %v3326
        %v3329 = vmul.f32 0.5, %v3328
        %v3330 = vsub.f32 1.5, %v3329
        %v3331 = vmul.f32 %v3326, %v3330
        %vm3332 = vweird.f32 %v3255
        %vm3333 = vweird.f32 %v3326
        %vm3334 = vmor %vm3332, %vm3333
        %v3335 = vsel %vm3334, %v3326, %v3331
        %v3336 = vmul.f32 %v3168, %v3265
        %v3337 = vmul.f32 %v3169, %v3275
        %v3338 = vmul.f32 %v3170, %v3285
        %v3339 = vmul.f32 %v3171, %v3295
        %v3340 = vmul.f32 %v3172, %v3305
        %v3341 = vmul.f32 %v3173, %v3315
        %v3342 = vmul.f32 %v3174, %v3325
        %v3343 = vmul.f32 %v3175, %v3335
        %v3344 = vperm.slane %v386, 4
        %3346 = vrot.lane.b32.xlu0 %v3344, 16
        %v3347 = vpop.permute.xlu0 %3346
        %v3349 = vmul.f32 %v3336, %v3347
        %v3350 = vmul.f32 %v3337, %v3347
        %v3351 = vmul.f32 %v3338, %v3347
        %v3352 = vmul.f32 %v3339, %v3347
        %v3353 = vmul.f32 %v3340, %v3347
        %v3354 = vmul.f32 %v3341, %v3347
        %v3355 = vmul.f32 %v3342, %v3347
        %v3356 = vmul.f32 %v3343, %v3347
        %v3357 = vperm.slane %v386, 5
        %3359 = vrot.lane.b32.xlu0 %v3357, 16
        %v3360 = vpop.permute.xlu0 %3359
        %v3362 = vadd.f32 %v3349, %v3360
        %v3363 = vadd.f32 %v3350, %v3360
        %v3364 = vadd.f32 %v3351, %v3360
        %v3365 = vadd.f32 %v3352, %v3360
        %v3366 = vadd.f32 %v3353, %v3360
        %v3367 = vadd.f32 %v3354, %v3360
        %v3368 = vadd.f32 %v3355, %v3360
        %v3369 = vadd.f32 %v3356, %v3360
        %v3370 = vld [vmem:[%s9] sm:$0x7]
        %v3371 = vld [vmem:[%s9 + $0x4] sm:$0x7]
        %v3372 = vld [vmem:[%s9 + $0x8] sm:$0x7]
        %3381 = vrot.lane.b32.xlu0 %v3362, 112
        %v3382 = vpop.permute.xlu0 %3381
        %3383 = vrot.lane.b32.xlu0 %v3363, 112
        %v3384 = vpop.permute.xlu0 %3383
        %3385 = vrot.lane.b32.xlu0 %v3364, 112
        %v3386 = vpop.permute.xlu0 %3385
        %3387 = vrot.lane.b32.xlu0 %v3365, 112
        %v3388 = vpop.permute.xlu0 %3387
        %3389 = vrot.lane.b32.xlu0 %v3366, 112
        %v3390 = vpop.permute.xlu0 %3389
        %3391 = vrot.lane.b32.xlu0 %v3367, 112
        %v3392 = vpop.permute.xlu0 %3391
        %3393 = vrot.lane.b32.xlu0 %v3368, 112
        %v3394 = vpop.permute.xlu0 %3393
        %3395 = vrot.lane.b32.xlu0 %v3369, 112
        %v3396 = vpop.permute.xlu0 %3395
        %v3405 = vperm.slane %v3370, 0
        %v3406 = vmul.f32 %v3405, 0.0
        %v3407 = vmul.f32 %v3382, %v3405
        %v3408 = vmul.f32 %v3384, %v3405
        %v3409 = vmul.f32 %v3386, %v3405
        %v3410 = vmul.f32 %v3388, %v3405
        %v3411 = vmul.f32 %v3390, %v3405
        %v3412 = vmul.f32 %v3392, %v3405
        %v3413 = vmul.f32 %v3394, %v3405
        %v3414 = vmul.f32 %v3406, %v650
        %v3415 = vmul.f32 %v3406, %v652
        %v3416 = vmul.f32 %v3407, %v654
        %v3417 = vmul.f32 %v3408, %v656
        %v3418 = vmul.f32 %v3409, %v658
        %v3419 = vmul.f32 %v3410, %v660
        %v3420 = vmul.f32 %v3411, %v662
        %v3421 = vmul.f32 %v3412, %v664
        %v3422 = vmul.f32 %v3413, %v663
        %v3423 = vperm.slane %v3370, 1
        %v3424 = vmul.f32 %v3423, 0.0
        %v3425 = vmul.f32 %v3382, %v3423
        %v3426 = vmul.f32 %v3384, %v3423
        %v3427 = vmul.f32 %v3386, %v3423
        %v3428 = vmul.f32 %v3388, %v3423
        %v3429 = vmul.f32 %v3390, %v3423
        %v3430 = vmul.f32 %v3392, %v3423
        %v3431 = vmul.f32 %v3394, %v3423
        %v3440 = vrot.slane %v3424, 1
        %v3441 = vrot.slane %v3425, 1
        %v3442 = vsel %vm649, %v3440, %v3441
        %v3443 = vrot.slane %v3426, 1
        %v3444 = vsel %vm649, %v3441, %v3443
        %v3445 = vrot.slane %v3427, 1
        %v3446 = vsel %vm649, %v3443, %v3445
        %v3447 = vrot.slane %v3428, 1
        %v3448 = vsel %vm649, %v3445, %v3447
        %v3449 = vrot.slane %v3429, 1
        %v3450 = vsel %vm649, %v3447, %v3449
        %v3451 = vrot.slane %v3430, 1
        %v3452 = vsel %vm649, %v3449, %v3451
        %v3453 = vrot.slane %v3431, 1
        %v3454 = vsel %vm649, %v3451, %v3453
        %v3464 = vadd.f32 %v3414, %v3440
        %v3465 = vadd.f32 %v3415, %v3442
        %v3466 = vadd.f32 %v3416, %v3444
        %v3467 = vadd.f32 %v3417, %v3446
        %v3468 = vadd.f32 %v3418, %v3448
        %v3469 = vadd.f32 %v3419, %v3450
        %v3470 = vadd.f32 %v3420, %v3452
        %v3471 = vadd.f32 %v3421, %v3454
        %v3472 = vadd.f32 %v3422, %v3453
        %v3473 = vperm.slane %v3370, 2
        %v3474 = vmul.f32 %v3473, 0.0
        %v3475 = vmul.f32 %v3382, %v3473
        %v3476 = vmul.f32 %v3384, %v3473
        %v3477 = vmul.f32 %v3386, %v3473
        %v3478 = vmul.f32 %v3388, %v3473
        %v3479 = vmul.f32 %v3390, %v3473
        %v3480 = vmul.f32 %v3392, %v3473
        %v3481 = vmul.f32 %v3394, %v3473
        %v3482 = vmul.f32 %v3396, %v3473
        %v3483 = vmul.f32 %v3474, %v768
        %v3484 = vmul.f32 %v3475, %v770
        %v3485 = vmul.f32 %v3476, %v772
        %v3486 = vmul.f32 %v3477, %v774
        %v3487 = vmul.f32 %v3478, %v776
        %v3488 = vmul.f32 %v3479, %v778
        %v3489 = vmul.f32 %v3480, %v780
        %v3490 = vmul.f32 %v3481, %v782
        %v3491 = vmul.f32 %v3482, %v781
        %v3501 = vrot.slane %v3483, 2
        %v3502 = vrot.slane %v3484, 2
        %v3503 = vsel %vm810, %v3501, %v3502
        %v3504 = vrot.slane %v3485, 2
        %v3505 = vsel %vm810, %v3502, %v3504
        %v3506 = vrot.slane %v3486, 2
        %v3507 = vsel %vm810, %v3504, %v3506
        %v3508 = vrot.slane %v3487, 2
        %v3509 = vsel %vm810, %v3506, %v3508
        %v3510 = vrot.slane %v3488, 2
        %v3511 = vsel %vm810, %v3508, %v3510
        %v3512 = vrot.slane %v3489, 2
        %v3513 = vsel %vm810, %v3510, %v3512
        %v3514 = vrot.slane %v3490, 2
        %v3515 = vsel %vm810, %v3512, %v3514
        %v3516 = vrot.slane %v3491, 2
        %v3517 = vsel %vm810, %v3514, %v3516
        %v3527 = vadd.f32 %v3464, %v3501
        %v3528 = vadd.f32 %v3465, %v3503
        %v3529 = vadd.f32 %v3466, %v3505
        %v3530 = vadd.f32 %v3467, %v3507
        %v3531 = vadd.f32 %v3468, %v3509
        %v3532 = vadd.f32 %v3469, %v3511
        %v3533 = vadd.f32 %v3470, %v3513
        %v3534 = vadd.f32 %v3471, %v3515
        %v3535 = vadd.f32 %v3472, %v3517
        %v3536 = vperm.slane %v3371, 0
        %v3537 = vmul.f32 %v3536, 0.0
        %v3538 = vmul.f32 %v3382, %v3536
        %v3539 = vmul.f32 %v3384, %v3536
        %v3540 = vmul.f32 %v3386, %v3536
        %v3541 = vmul.f32 %v3388, %v3536
        %v3542 = vmul.f32 %v3390, %v3536
        %v3543 = vmul.f32 %v3392, %v3536
        %v3544 = vmul.f32 %v3394, %v3536
        %v3545 = vmul.f32 %v3396, %v3536
        %v3546 = vmul.f32 %v3537, %v650
        %v3547 = vmul.f32 %v3538, %v652
        %v3548 = vmul.f32 %v3539, %v654
        %v3549 = vmul.f32 %v3540, %v656
        %v3550 = vmul.f32 %v3541, %v658
        %v3551 = vmul.f32 %v3542, %v660
        %v3552 = vmul.f32 %v3543, %v662
        %v3553 = vmul.f32 %v3544, %v664
        %v3554 = vmul.f32 %v3545, %v663
        %v3555 = vadd.f32 %v3527, %v3546
        %v3556 = vadd.f32 %v3528, %v3547
        %v3557 = vadd.f32 %v3529, %v3548
        %v3558 = vadd.f32 %v3530, %v3549
        %v3559 = vadd.f32 %v3531, %v3550
        %v3560 = vadd.f32 %v3532, %v3551
        %v3561 = vadd.f32 %v3533, %v3552
        %v3562 = vadd.f32 %v3534, %v3553
        %v3563 = vadd.f32 %v3535, %v3554
        %v3564 = vperm.slane %v3371, 1
        %v3565 = vmul.f32 %v3382, %v3564
        %v3566 = vmul.f32 %v3384, %v3564
        %v3567 = vmul.f32 %v3386, %v3564
        %v3568 = vmul.f32 %v3388, %v3564
        %v3569 = vmul.f32 %v3390, %v3564
        %v3570 = vmul.f32 %v3392, %v3564
        %v3571 = vmul.f32 %v3394, %v3564
        %v3572 = vmul.f32 %v3396, %v3564
        %v3581 = vrot.slane %v3565, 1
        %v3582 = vrot.slane %v3566, 1
        %v3583 = vsel %vm649, %v3581, %v3582
        %v3584 = vrot.slane %v3567, 1
        %v3585 = vsel %vm649, %v3582, %v3584
        %v3586 = vrot.slane %v3568, 1
        %v3587 = vsel %vm649, %v3584, %v3586
        %v3588 = vrot.slane %v3569, 1
        %v3589 = vsel %vm649, %v3586, %v3588
        %v3590 = vrot.slane %v3570, 1
        %v3591 = vsel %vm649, %v3588, %v3590
        %v3592 = vrot.slane %v3571, 1
        %v3593 = vsel %vm649, %v3590, %v3592
        %v3594 = vrot.slane %v3572, 1
        %v3595 = vsel %vm649, %v3592, %v3594
        %v3605 = vadd.f32 %v3555, %v3581
        %v3606 = vadd.f32 %v3556, %v3583
        %v3607 = vadd.f32 %v3557, %v3585
        %v3608 = vadd.f32 %v3558, %v3587
        %v3609 = vadd.f32 %v3559, %v3589
        %v3610 = vadd.f32 %v3560, %v3591
        %v3611 = vadd.f32 %v3561, %v3593
        %v3612 = vadd.f32 %v3562, %v3595
        %v3613 = vadd.f32 %v3563, %v3594
        %v3614 = vperm.slane %v3371, 2
        %v3615 = vmul.f32 %v3382, %v3614
        %v3616 = vmul.f32 %v3384, %v3614
        %v3617 = vmul.f32 %v3386, %v3614
        %v3618 = vmul.f32 %v3388, %v3614
        %v3619 = vmul.f32 %v3390, %v3614
        %v3620 = vmul.f32 %v3392, %v3614
        %v3621 = vmul.f32 %v3394, %v3614
        %v3622 = vmul.f32 %v3396, %v3614
        %v3623 = vmul.f32 %v3614, 0.0
        %v3624 = vmul.f32 %v3615, %v768
        %v3625 = vmul.f32 %v3616, %v770
        %v3626 = vmul.f32 %v3617, %v772
        %v3627 = vmul.f32 %v3618, %v774
        %v3628 = vmul.f32 %v3619, %v776
        %v3629 = vmul.f32 %v3620, %v778
        %v3630 = vmul.f32 %v3621, %v780
        %v3631 = vmul.f32 %v3622, %v782
        %v3632 = vmul.f32 %v3623, %v781
        %v3642 = vrot.slane %v3624, 2
        %v3643 = vrot.slane %v3625, 2
        %v3644 = vsel %vm810, %v3642, %v3643
        %v3645 = vrot.slane %v3626, 2
        %v3646 = vsel %vm810, %v3643, %v3645
        %v3647 = vrot.slane %v3627, 2
        %v3648 = vsel %vm810, %v3645, %v3647
        %v3649 = vrot.slane %v3628, 2
        %v3650 = vsel %vm810, %v3647, %v3649
        %v3651 = vrot.slane %v3629, 2
        %v3652 = vsel %vm810, %v3649, %v3651
        %v3653 = vrot.slane %v3630, 2
        %v3654 = vsel %vm810, %v3651, %v3653
        %v3655 = vrot.slane %v3631, 2
        %v3656 = vsel %vm810, %v3653, %v3655
        %v3657 = vrot.slane %v3632, 2
        %v3658 = vsel %vm810, %v3655, %v3657
        %v3668 = vadd.f32 %v3605, %v3642
        %v3669 = vadd.f32 %v3606, %v3644
        %v3670 = vadd.f32 %v3607, %v3646
        %v3671 = vadd.f32 %v3608, %v3648
        %v3672 = vadd.f32 %v3609, %v3650
        %v3673 = vadd.f32 %v3610, %v3652
        %v3674 = vadd.f32 %v3611, %v3654
        %v3675 = vadd.f32 %v3612, %v3656
        %v3676 = vadd.f32 %v3613, %v3658
        %v3677 = vperm.slane %v3372, 0
        %v3678 = vmul.f32 %v3382, %v3677
        %v3679 = vmul.f32 %v3384, %v3677
        %v3680 = vmul.f32 %v3386, %v3677
        %v3681 = vmul.f32 %v3388, %v3677
        %v3682 = vmul.f32 %v3390, %v3677
        %v3683 = vmul.f32 %v3392, %v3677
        %v3684 = vmul.f32 %v3394, %v3677
        %v3685 = vmul.f32 %v3396, %v3677
        %v3686 = vmul.f32 %v3677, 0.0
        %v3687 = vmul.f32 %v3678, %v650
        %v3688 = vmul.f32 %v3679, %v652
        %v3689 = vmul.f32 %v3680, %v654
        %v3690 = vmul.f32 %v3681, %v656
        %v3691 = vmul.f32 %v3682, %v658
        %v3692 = vmul.f32 %v3683, %v660
        %v3693 = vmul.f32 %v3684, %v662
        %v3694 = vmul.f32 %v3685, %v664
        %v3695 = vmul.f32 %v3686, %v663
        %v3696 = vadd.f32 %v3668, %v3687
        %v3697 = vadd.f32 %v3669, %v3688
        %v3698 = vadd.f32 %v3670, %v3689
        %v3699 = vadd.f32 %v3671, %v3690
        %v3700 = vadd.f32 %v3672, %v3691
        %v3701 = vadd.f32 %v3673, %v3692
        %v3702 = vadd.f32 %v3674, %v3693
        %v3703 = vadd.f32 %v3675, %v3694
        %v3704 = vadd.f32 %v3676, %v3695
        %v3705 = vperm.slane %v3372, 1
        %v3706 = vmul.f32 %v3384, %v3705
        %v3707 = vmul.f32 %v3386, %v3705
        %v3708 = vmul.f32 %v3388, %v3705
        %v3709 = vmul.f32 %v3390, %v3705
        %v3710 = vmul.f32 %v3392, %v3705
        %v3711 = vmul.f32 %v3394, %v3705
        %v3712 = vmul.f32 %v3396, %v3705
        %v3713 = vmul.f32 %v3705, 0.0
        %v3722 = vrot.slane %v3706, 1
        %v3723 = vrot.slane %v3707, 1
        %v3724 = vsel %vm649, %v3722, %v3723
        %v3725 = vrot.slane %v3708, 1
        %v3726 = vsel %vm649, %v3723, %v3725
        %v3727 = vrot.slane %v3709, 1
        %v3728 = vsel %vm649, %v3725, %v3727
        %v3729 = vrot.slane %v3710, 1
        %v3730 = vsel %vm649, %v3727, %v3729
        %v3731 = vrot.slane %v3711, 1
        %v3732 = vsel %vm649, %v3729, %v3731
        %v3733 = vrot.slane %v3712, 1
        %v3734 = vsel %vm649, %v3731, %v3733
        %v3735 = vrot.slane %v3713, 1
        %v3736 = vsel %vm649, %v3733, %v3735
        %v3746 = vadd.f32 %v3696, %v3722
        %v3747 = vadd.f32 %v3697, %v3724
        %v3748 = vadd.f32 %v3698, %v3726
        %v3749 = vadd.f32 %v3699, %v3728
        %v3750 = vadd.f32 %v3700, %v3730
        %v3751 = vadd.f32 %v3701, %v3732
        %v3752 = vadd.f32 %v3702, %v3734
        %v3753 = vadd.f32 %v3703, %v3736
        %v3754 = vadd.f32 %v3704, %v3735
        %v3755 = vperm.slane %v3372, 2
        %v3756 = vmul.f32 %v3384, %v3755
        %v3757 = vmul.f32 %v3386, %v3755
        %v3758 = vmul.f32 %v3388, %v3755
        %v3759 = vmul.f32 %v3390, %v3755
        %v3760 = vmul.f32 %v3392, %v3755
        %v3761 = vmul.f32 %v3394, %v3755
        %v3762 = vmul.f32 %v3396, %v3755
        %v3763 = vmul.f32 %v3755, 0.0
        %v3764 = vmul.f32 %v3756, %v768
        %v3765 = vmul.f32 %v3757, %v770
        %v3766 = vmul.f32 %v3758, %v772
        %v3767 = vmul.f32 %v3759, %v774
        %v3768 = vmul.f32 %v3760, %v776
        %v3769 = vmul.f32 %v3761, %v778
        %v3770 = vmul.f32 %v3762, %v780
        %v3771 = vmul.f32 %v3763, %v782
        %v3772 = vmul.f32 %v3763, %v781
        %v3782 = vrot.slane %v3764, 2
        %v3783 = vrot.slane %v3765, 2
        %v3784 = vsel %vm810, %v3782, %v3783
        %v3785 = vrot.slane %v3766, 2
        %v3786 = vsel %vm810, %v3783, %v3785
        %v3787 = vrot.slane %v3767, 2
        %v3788 = vsel %vm810, %v3785, %v3787
        %v3789 = vrot.slane %v3768, 2
        %v3790 = vsel %vm810, %v3787, %v3789
        %v3791 = vrot.slane %v3769, 2
        %v3792 = vsel %vm810, %v3789, %v3791
        %v3793 = vrot.slane %v3770, 2
        %v3794 = vsel %vm810, %v3791, %v3793
        %v3795 = vrot.slane %v3771, 2
        %v3796 = vsel %vm810, %v3793, %v3795
        %v3797 = vrot.slane %v3772, 2
        %v3798 = vsel %vm810, %v3795, %v3797
        %v3808 = vadd.f32 %v3746, %v3782
        %v3809 = vadd.f32 %v3747, %v3784
        %v3810 = vadd.f32 %v3748, %v3786
        %v3811 = vadd.f32 %v3749, %v3788
        %v3812 = vadd.f32 %v3750, %v3790
        %v3813 = vadd.f32 %v3751, %v3792
        %v3814 = vadd.f32 %v3752, %v3794
        %v3815 = vadd.f32 %v3753, %v3796
        %v3816 = vadd.f32 %v3754, %v3798
        %v3817 = vperm.slane %v386, 6
        %v3818 = vadd.f32 %v3808, %v3817
        %v3819 = vadd.f32 %v3809, %v3817
        %v3820 = vadd.f32 %v3810, %v3817
        %v3821 = vadd.f32 %v3811, %v3817
        %v3822 = vadd.f32 %v3812, %v3817
        %v3823 = vadd.f32 %v3813, %v3817
        %v3824 = vadd.f32 %v3814, %v3817
        %v3825 = vadd.f32 %v3815, %v3817
        %v3826 = vadd.f32 %v3816, %v3817
        %v3836 = vrot.slane %v3818, 7
        %v3837 = vrot.slane %v3819, 7
        %v3838 = vsel %vm767, %v3836, %v3837
        %v3839 = vrot.slane %v3820, 7
        %v3840 = vsel %vm767, %v3837, %v3839
        %v3841 = vrot.slane %v3821, 7
        %v3842 = vsel %vm767, %v3839, %v3841
        %v3843 = vrot.slane %v3822, 7
        %v3844 = vsel %vm767, %v3841, %v3843
        %v3845 = vrot.slane %v3823, 7
        %v3846 = vsel %vm767, %v3843, %v3845
        %v3847 = vrot.slane %v3824, 7
        %v3848 = vsel %vm767, %v3845, %v3847
        %v3849 = vrot.slane %v3825, 7
        %v3850 = vsel %vm767, %v3847, %v3849
        %v3851 = vrot.slane %v3826, 7
        %v3852 = vsel %vm767, %v3849, %v3851
        %v3861 = vmul.f32 %v3088, %v3838
        %v3862 = vmul.f32 %v3089, %v3840
        %v3863 = vmul.f32 %v3090, %v3842
        %v3864 = vmul.f32 %v3091, %v3844
        %v3865 = vmul.f32 %v3092, %v3846
        %v3866 = vmul.f32 %v3093, %v3848
        %v3867 = vmul.f32 %v3094, %v3850
        %v3868 = vmul.f32 %v3095, %v3852
        %v3869 = vld [vmem:[%s10] sm:$0xff]
        %v3870 = vld [vmem:[%s10 + $0x8] sm:$0xff]
        %v3871 = vperm.slane %v386, 7
        %v3873 = vsel %vm3128, %v3861, 0
        %v3876 = vsel %vm3128, %v3862, 0
        %v3879 = vsel %vm3128, %v3863, 0
        %v3882 = vsel %vm3128, %v3864, 0
        %v3885 = vsel %vm3128, %v3865, 0
        %v3888 = vsel %vm3128, %v3866, 0
        %v3891 = vsel %vm3128, %v3867, 0
        %v3894 = vsel %vm3128, %v3868, 0
        %3896 = vmatpush.msra.mxu0 0.0
        %3897 = vmatpush.msra.mxu0 0.0
        %3898 = vmatpush.msra.mxu0 0.0
        %3899 = vmatpush.msra.mxu0 0.0
        %3900 = vmatpush.msra.mxu0 0.0
        %3901 = vmatpush.msra.mxu0 0.0
        %3902 = vmatpush.msra.mxu0 0.0
        %3903 = vmatpush.msra.mxu0 0.0
        %3904 = vmatpush.msra.mxu0 0.0
        %3905 = vmatpush.msra.mxu0 0.0
        %3906 = vmatpush.msra.mxu0 0.0
        %3907 = vmatpush.msra.mxu0 0.0
        %3908 = vmatpush.msra.mxu0 0.0
        %3909 = vmatpush.msra.mxu0 0.0
        %3910 = vmatpush.msra.mxu0 %v3870
        %3911 = vmatpush.msra.mxu0 %v3869
        %3912 = vmatmul.f32.gmra.mxu0 %v3873
        %v3913 = vpop.f32.mrf.mxu0
        %v3914 = vadd.f32 %v3871, %v3913
        %3915 = vmatmul.f32.gmra.mxu0 %v3876
        %v3916 = vpop.f32.mrf.mxu0
        %v3917 = vadd.f32 %v3871, %v3916
        %3918 = vmatmul.f32.gmra.mxu0 %v3879
        %v3919 = vpop.f32.mrf.mxu0
        %v3920 = vadd.f32 %v3871, %v3919
        %3921 = vmatmul.f32.gmra.mxu0 %v3882
        %v3922 = vpop.f32.mrf.mxu0
        %v3923 = vadd.f32 %v3871, %v3922
        %3924 = vmatmul.f32.gmra.mxu0 %v3885
        %v3925 = vpop.f32.mrf.mxu0
        %v3926 = vadd.f32 %v3871, %v3925
        %3927 = vmatmul.f32.gmra.mxu0 %v3888
        %v3928 = vpop.f32.mrf.mxu0
        %v3929 = vadd.f32 %v3871, %v3928
        %3930 = vmatmul.f32.gmra.mxu0 %v3891
        %v3931 = vpop.f32.mrf.mxu0
        %v3932 = vadd.f32 %v3871, %v3931
        %3933 = vmatmul.f32.gmra.mxu0 %v3894
        %v3934 = vpop.f32.mrf.mxu0
        %v3935 = vadd.f32 %v3871, %v3934
        %3936 = vdwg.mxu0
        %v3937 = vadd.f32 %v3914, %v2666
        %v3938 = vadd.f32 %v3917, %v2667
        %v3939 = vadd.f32 %v3920, %v2668
        %v3940 = vadd.f32 %v3923, %v2669
        %v3941 = vadd.f32 %v3926, %v2670
        %v3942 = vadd.f32 %v3929, %v2671
        %v3943 = vadd.f32 %v3932, %v2672
        %v3944 = vadd.f32 %v3935, %v2673
        %3945 = vst.msk [vmem:[%s379] sm:$0xff] %vm403, %v3937
        %3946 = vst.msk [vmem:[%s379 + $0x8] sm:$0xff] %vm403, %v3938
        %3947 = vst.msk [vmem:[%s379 + $0x10] sm:$0xff] %vm403, %v3939
        %3948 = vst.msk [vmem:[%s379 + $0x18] sm:$0xff] %vm403, %v3940
        %3949 = vst.msk [vmem:[%s379 + $0x20] sm:$0xff] %vm403, %v3941
        %3950 = vst.msk [vmem:[%s379 + $0x28] sm:$0xff] %vm403, %v3942
        %3951 = vst.msk [vmem:[%s379 + $0x30] sm:$0xff] %vm403, %v3943
        %3952 = vst.msk [vmem:[%s379 + $0x38] sm:$0xff] %vm403, %v3944
        %s3953 = sand.u32 %s269, 1
        %s3954 = scalar_lea.sflag [#allocation3], %s3953
        %s3955 = sand.u32 %s269, 1
        %s3956 = smul.addr %s3955, 64
        %s3957 = scalar_lea.vmem [#allocation2], %s3956
        // Predicated region
        $region65: #{vss_block_forward.1} parent=63 // pred_check
          %p3958 = pneg %p279
        $region66: #{vss_block_forward.1} parent=63 // pred_check_branch
          %3960 = sbr.rel (%p3958) target = $region68
        $region67: #{vss_block_forward.1} parent=63 // pred_region
          %3962 = vsyncadd %s3954, 0
          %s3963 = smul.addr %s25, 8
          %s3964 = smul.addr %s3963, 8
          %s3965 = scalar_lea.hbm %s11, %s3964
          %s3966 = sshll.u32 %s3957, 4
          %s3967 = int_to_ptr.vmem [resolvable:$true] %s3966
          %s3968 = sshll.u32 %s3965, 4
          %s3969 = int_to_ptr.hbm [resolvable:$true] %s3968
          %3974 = dma.vmem_to_hbm [thread:$0]  %s3967, 1024, %s3969, %s3954, 128, 128, 8
        $region68: #{vss_block_forward.1} parent=63 // pred_fallthru
          _
      $region64: #{vss_block_forward.1} parent=5 // pred_fallthru
        _
      %p3975 = scmp.le.s32.totalorder 2, %s20
      // Predicated region
      $region69: #{vss_block_forward.1} parent=5 // pred_check
        %p3976 = pneg %p3975
      $region70: #{vss_block_forward.1} parent=5 // pred_check_branch
        %3978 = sbr.rel (%p3976) target = $region72
      $region71: #{vss_block_forward.1} parent=5 // pred_region
        %s3979 = ssub.s32 %s20, 2
        // Predicated region
        $region73: #{vss_block_forward.1} parent=71 // pred_check
          %p3980 = pneg %p285
        $region74: #{vss_block_forward.1} parent=71 // pred_check_branch
          %3982 = sbr.rel (%p3980) target = $region76
        $region75: #{vss_block_forward.1} parent=71 // pred_region
          %s3983 = sand.u32 %s270, 1
          %s3984 = scalar_lea.sflag [#allocation3], %s3983
          %s3985 = sand.u32 %s270, 1
          %s3986 = smul.addr %s3985, 64
          %s3987 = scalar_lea.vmem [#allocation2], %s3986
          %3989 = dma.done %s3984, 1024
        $region76: #{vss_block_forward.1} parent=71 // pred_fallthru
          _
      $region72: #{vss_block_forward.1} parent=5 // pred_fallthru
        _
    $region6: #{vss_block_forward.1} parent=1 // loop_footer
      %s24 = sadd.s32 1, %s20
    $region7: #{vss_block_forward.1} parent=1 // loop_footer_branch
      %19 = sbr.rel target = $region3
    $region8: #{vss_block_forward.1} parent=1 // loop_exit
      _
    %3990 = vsyncpa [#allocation3], 1
    %s3991 = scalar_lea.sflag [#allocation3], 1
    %3992 = vsyncpa %s3991, 1

</llo_original>
